<compile_context>
chip_gen: v7x
topology: tpu7x:2x2x1
jax: 0.10.0
libtpu: 0.0.40
codegen_flags: <defaults>
</compile_context>

<pallas_src>
import functools

import jax
import jax.numpy as jnp
from jax import lax
from jax.experimental import pallas as pl
from jax.experimental.pallas import tpu as pltpu

H = 100          # PyTorch LSTM hidden size (fixed in the module)
HP = 128         # padded hidden size (lane-aligned)
BN_EPS = 1e-5
COMPUTE_DTYPE = jnp.bfloat16   # MXU operand dtype; set to jnp.float32 for exact f32 math

# Kernel gate order (host-packed): i, f, o, g  -> sigmoid covers a contiguous 3*HP slab.
GATE_ORDER = (0, 1, 3, 2)      # from PyTorch's (i, f, g, o)


def _round_up(x, m):
    return ((x + m - 1) // m) * m


def _cdiv(a, b):
    return (a + b - 1) // b


# ----------------------------------------------------------------------------
# Pallas kernel: per-(batch-block, time-chunk) grid step.
# Grid = (num_batch_blocks [parallel], num_time_chunks [arbitrary]).
# h/c live in VMEM scratch and persist across the time axis; output is written
# only on the last time chunk (accumulator pattern).
# ----------------------------------------------------------------------------
def lstm_emb_kernel(x_ref,        # (T_blk, B_blk, EP)  bf16  input chunk (time-major)
                    wih_ref,      # (EP, 4*HP)          bf16  input->gates
                    whh_ref,      # (HP, 4*HP)          bf16  hidden->gates
                    b_ref,        # (1, 4*HP)           f32   combined bias (b_ih + b_hh)
                    wout_ref,     # (HP, CP)            bf16  BN-folded output Linear weight
                    bout_ref,     # (1, CP)             f32   BN-folded output Linear bias
                    out_ref,      # (B_blk, CP)         f32
                    h_ref,        # (B_blk, HP)         f32 VMEM scratch
                    c_ref,        # (B_blk, HP)         f32 VMEM scratch
                    *, t_blk, tail_steps):
    t_idx = pl.program_id(1)
    n_t = pl.num_programs(1)

    @pl.when(t_idx == 0)
    def _init():
        h_ref[...] = jnp.zeros_like(h_ref)
        c_ref[...] = jnp.zeros_like(c_ref)

    def run_steps(n_steps):
        def step(s, carry):
            # Per-step input projection: no dependence on the recurrence, so with the
            # loop fully unrolled the scheduler hides it under the serial chain.
            pre = jnp.dot(x_ref[s], wih_ref[...], preferred_element_type=jnp.float32)
            gates = (pre
                     + jnp.dot(h_ref[...].astype(COMPUTE_DTYPE), whh_ref[...],
                               preferred_element_type=jnp.float32)
                     + b_ref[...])                                   # (B_blk, 4*HP) f32
            # Gate order: i, f, o, g
            sig = jax.nn.sigmoid(gates[:, :3 * HP])
            i_g = sig[:, 0 * HP:1 * HP]
            f_g = sig[:, 1 * HP:2 * HP]
            o_g = sig[:, 2 * HP:3 * HP]
            g_g = jnp.tanh(gates[:, 3 * HP:4 * HP])
            c_new = f_g * c_ref[...] + i_g * g_g
            h_new = o_g * jnp.tanh(c_new)
            c_ref[...] = c_new
            h_ref[...] = h_new
            return carry

        lax.fori_loop(0, n_steps, step, 0, unroll=True)

    if tail_steps == t_blk:
        # No time padding: every chunk runs the full, select-free loop.
        run_steps(t_blk)
    else:
        # Only the final chunk has zero-padded timesteps; it statically runs fewer
        # steps (no jnp.where masking anywhere).
        @pl.when(t_idx < n_t - 1)
        def _body():
            run_steps(t_blk)

        @pl.when(t_idx == n_t - 1)
        def _tail():
            run_steps(tail_steps)

    # ---- epilogue on the last time chunk: BN is pre-folded into wout/bout ----
    @pl.when(t_idx == n_t - 1)
    def _finish():
        out_ref[...] = (jnp.dot(h_ref[...].astype(wout_ref.dtype), wout_ref[...],
                                preferred_element_type=jnp.float32)
                        + bout_ref[...])


# ----------------------------------------------------------------------------
# Host-side parameter preparation
# ----------------------------------------------------------------------------
def _pack_gates(w, h, hp):
    """(4*h, X) PyTorch (i,f,g,o)-stacked -> (4*hp, X) in (i,f,o,g) order.

    Each gate block is zero-padded from h to hp rows, so padded hidden lanes stay
    exactly zero through the recurrence (gates=0 -> g=tanh(0)=0, c stays 0, h stays 0).
    """
    blocks = [w[k * h:(k + 1) * h] for k in GATE_ORDER]
    blocks = [jnp.pad(blk, ((0, hp - h),) + ((0, 0),) * (blk.ndim - 1)) for blk in blocks]
    return jnp.concatenate(blocks, axis=0)


def _fold_bn_into_linear(params):
    """Fold eval-mode BatchNorm1d into the output Linear: returns (H, C) weight, (C,) bias."""
    scale = params["bn_gamma"] * lax.rsqrt(params["bn_var"] + BN_EPS)       # (H,)
    wout_f = scale[:, None] * params["w_out"].T                             # (H, C)
    bout_f = (params["bn_beta"] - params["bn_mean"] * scale) @ params["w_out"].T + params["b_out"]
    return wout_f, bout_f


# ----------------------------------------------------------------------------
# Wrapper: padding + pallas_call
# ----------------------------------------------------------------------------
@jax.jit
def lstm_embeddings_forward(x, params):
    """x: (B, T, E) float32 batch-first (PyTorch convention).  Returns (B, C) logits."""
    B, T, E = x.shape
    w_ih, w_hh, b_ih, b_hh = params["w_ih"], params["w_hh"], params["b_ih"], params["b_hh"]
    C = params["w_out"].shape[0]

    # --- tiling choices (all static) ---
    if B <= 16:
        NB = 1                                       # tiny batch: one block
        B_BLK = _round_up(max(B, 1), 16)
    else:
        # >=2 blocks so the parallel axis shards across both v7x TensorCores;
        # near-128-row blocks for large B keeps padding waste bounded.
        NB = max(2, _cdiv(B, 128))
        B_BLK = _round_up(_cdiv(B, NB), 16)          # multiple of 16: bf16 sublane tile
    Bp = NB * B_BLK
    T_BLK = T if T <= 32 else 32                     # fully unrolled inside the kernel
    Tp = _round_up(T, T_BLK)
    tail_steps = T - (Tp - T_BLK)                    # valid steps in the final chunk
    EP = _round_up(E, 128)                           # lane-aligned embedding dim
    CP = _round_up(C, 128)                           # lane-dense output

    # --- pad / reorder / cast parameters ---
    wih_p = _pack_gates(w_ih, H, HP).T                                     # (E, 4*HP)
    wih_p = jnp.pad(wih_p, ((0, EP - E), (0, 0))).astype(COMPUTE_DTYPE)    # (EP, 4*HP)
    whh_cols = jnp.pad(w_hh, ((0, 0), (0, HP - H)))                        # (4H, HP)
    whh_p = _pack_gates(whh_cols, H, HP).T.astype(COMPUTE_DTYPE)           # (HP, 4*HP)
    b_p = _pack_gates((b_ih + b_hh)[:, None], H, HP).T                     # (1, 4*HP) f32

    wout_f, bout_f = _fold_bn_into_linear(params)                          # (H, C), (C,)
    wout_p = jnp.pad(wout_f, ((0, HP - H), (0, CP - C))).astype(COMPUTE_DTYPE)  # (HP, CP)
    bout_p = jnp.pad(bout_f, (0, CP - C))[None, :]                         # (1, CP) f32

    # --- bf16 input, pre-blocked over batch, time-major inside each block ---
    x_bf = x.astype(COMPUTE_DTYPE)                                         # (B, T, E)
    x_bf = jnp.pad(x_bf, ((0, Bp - B), (0, Tp - T), (0, EP - E)))          # (Bp, Tp, EP)
    x_blk = jnp.transpose(x_bf.reshape(NB, B_BLK, Tp, EP), (0, 2, 1, 3))   # (NB, Tp, B_BLK, EP)

    kernel = functools.partial(lstm_emb_kernel, t_blk=T_BLK, tail_steps=tail_steps)

    out = pl.pallas_call(
        kernel,
        out_shape=jax.ShapeDtypeStruct((Bp, CP), jnp.float32),
        grid=(NB, Tp // T_BLK),
        in_specs=[
            # contiguous per-block DMA, pipelined over the time axis
            pl.BlockSpec((None, T_BLK, B_BLK, EP), lambda b, t: (b, t, 0, 0)),
            pl.BlockSpec((EP, 4 * HP), lambda b, t: (0, 0)),
            pl.BlockSpec((HP, 4 * HP), lambda b, t: (0, 0)),
            pl.BlockSpec((1, 4 * HP), lambda b, t: (0, 0)),
            pl.BlockSpec((HP, CP), lambda b, t: (0, 0)),
            pl.BlockSpec((1, CP), lambda b, t: (0, 0)),
        ],
        out_specs=pl.BlockSpec((B_BLK, CP), lambda b, t: (b, 0)),
        scratch_shapes=[
            pltpu.VMEM((B_BLK, HP), jnp.float32),               # h
            pltpu.VMEM((B_BLK, HP), jnp.float32),               # c
        ],
        compiler_params=pltpu.CompilerParams(
            dimension_semantics=("parallel", "arbitrary"),
        ),
    )(x_blk, wih_p, whh_p, b_p, wout_p, bout_p)

    return out[:B, :C]


# ----------------------------------------------------------------------------
# Pure-JAX references
#   mirror_kernel_precision=False: exact PyTorch f32 semantics
#   mirror_kernel_precision=True : same bf16 operand quantization as the kernel
# ----------------------------------------------------------------------------
def reference_forward(x, params, *, mirror_kernel_precision=False):
    w_ih, w_hh = params["w_ih"], params["w_hh"]
    b = params["b_ih"] + params["b_hh"]
    gamma, beta, rmean, rvar = (params["bn_gamma"], params["bn_beta"],
                                params["bn_mean"], params["bn_var"])
    w_out, b_out = params["w_out"], params["b_out"]
    B, T, E = x.shape
    hp = lax.Precision.HIGHEST

    if mirror_kernel_precision:
        q = lambda a: a.astype(COMPUTE_DTYPE).astype(jnp.float32)
    else:
        q = lambda a: a
    w_ih_q, w_hh_q = q(w_ih), q(w_hh)

    h = jnp.zeros((B, H), jnp.float32)
    c = jnp.zeros((B, H), jnp.float32)
    for t in range(T):
        gates = (jnp.dot(q(x[:, t, :]), w_ih_q.T, precision=hp)
                 + jnp.dot(q(h), w_hh_q.T, precision=hp) + b)
        i_g = jax.nn.sigmoid(gates[:, 0 * H:1 * H])
        f_g = jax.nn.sigmoid(gates[:, 1 * H:2 * H])
        g_g = jnp.tanh(gates[:, 2 * H:3 * H])
        o_g = jax.nn.sigmoid(gates[:, 3 * H:4 * H])
        c = f_g * c + i_g * g_g
        h = o_g * jnp.tanh(c)

    if mirror_kernel_precision:
        wout_f, bout_f = _fold_bn_into_linear(params)
        return jnp.dot(q(h), q(wout_f), precision=hp) + bout_f
    h_bn = (h - rmean) / jnp.sqrt(rvar + BN_EPS) * gamma + beta
    return jnp.dot(h_bn, w_out.T, precision=hp) + b_out


# ----------------------------------------------------------------------------
# Deterministic parameter initialization (matches nn.Module shapes)
# ----------------------------------------------------------------------------
def init_params(key, emb_size, num_categories):
    ks = jax.random.split(key, 10)
    s = 1.0 / jnp.sqrt(jnp.float32(H))
    return {
        "w_ih": jax.random.uniform(ks[0], (4 * H, emb_size), jnp.float32, -s, s),
        "w_hh": jax.random.uniform(ks[1], (4 * H, H), jnp.float32, -s, s),
        "b_ih": jax.random.uniform(ks[2], (4 * H,), jnp.float32, -s, s),
        "b_hh": jax.random.uniform(ks[3], (4 * H,), jnp.float32, -s, s),
        "bn_gamma": jax.random.uniform(ks[4], (H,), jnp.float32, 0.5, 1.5),
        "bn_beta": jax.random.uniform(ks[5], (H,), jnp.float32, -0.1, 0.1),
        "bn_mean": jax.random.uniform(ks[6], (H,), jnp.float32, -0.1, 0.1),
        "bn_var": jax.random.uniform(ks[7], (H,), jnp.float32, 0.5, 1.5),
        "w_out": jax.random.uniform(ks[8], (num_categories, H), jnp.float32, -s, s),
        "b_out": jax.random.uniform(ks[9], (num_categories,), jnp.float32, -s, s),
    }


if __name__ == "__main__":
    key = jax.random.PRNGKey(0)
    B, T, E, C = 4, 8, 32, 16          # batch, prefix length, embedding size, num_categories

    k_x, k_p = jax.random.split(key)
    x = jax.random.normal(k_x, (B, T, E), jnp.float32) * 0.1   # padded embedded prefixes
    params = init_params(k_p, E, C)

    out = jax.block_until_ready(lstm_embeddings_forward(x, params))
    assert out.shape == (B, C), out.shape

    # Strict check vs a reference using the same bf16 operand quantization as the kernel.
    ref_mirror = jax.block_until_ready(
        reference_forward(x, params, mirror_kernel_precision=True))
    err_m = float(jnp.max(jnp.abs(out - ref_mirror)))
    assert jnp.allclose(out, ref_mirror, atol=2e-3, rtol=2e-3), err_m

    # Sanity check vs exact f32 PyTorch semantics (loose: bf16 operand rounding only).
    ref_f32 = jax.block_until_ready(reference_forward(x, params))
    err_f = float(jnp.max(jnp.abs(out - ref_f32)))
    assert jnp.allclose(out, ref_f32, atol=5e-2, rtol=5e-2), err_f

    print("KERNEL_OK")
</pallas_src>

<mosaic_0001>
module attributes {stable_mosaic.version = 11 : i64} {
  func.func @lstm_emb_kernel(%arg0: i32, %arg1: i32, %arg2: memref<1x8x16x128xbf16, #tpu.memory_space<vmem>>, %arg3: memref<128x512xbf16, #tpu.memory_space<vmem>>, %arg4: memref<128x512xbf16, #tpu.memory_space<vmem>>, %arg5: memref<1x512xf32, #tpu.memory_space<vmem>>, %arg6: memref<128x128xbf16, #tpu.memory_space<vmem>>, %arg7: memref<1x128xf32, #tpu.memory_space<vmem>>, %arg8: memref<16x128xf32, #tpu.memory_space<vmem>>, %arg9: memref<16x128xf32, #tpu.memory_space<vmem>>, %arg10: memref<16x128xf32, #tpu.memory_space<vmem>>) attributes {dimension_semantics = [#tpu.dimension_semantics<parallel>, #tpu.dimension_semantics<arbitrary>], iteration_bounds = array<i64: 1, 1>, scalar_prefetch = 0 : i64, scratch_operands = 2 : i64, tpu.core_type = #tpu.core_type<tc>, window_params = [{transform_indices = @transform_0, window_bounds = array<i64: 1, 8, 16, 128>}, {pipeline_mode = #tpu.pipeline_mode<synchronous>, transform_indices = @transform_1, window_bounds = array<i64: 128, 512>}, {pipeline_mode = #tpu.pipeline_mode<synchronous>, transform_indices = @transform_2, window_bounds = array<i64: 128, 512>}, {pipeline_mode = #tpu.pipeline_mode<synchronous>, transform_indices = @transform_3, window_bounds = array<i64: 1, 512>}, {pipeline_mode = #tpu.pipeline_mode<synchronous>, transform_indices = @transform_4, window_bounds = array<i64: 128, 128>}, {pipeline_mode = #tpu.pipeline_mode<synchronous>, transform_indices = @transform_5, window_bounds = array<i64: 1, 128>}, {transform_indices = @transform_6, window_bounds = array<i64: 16, 128>}]} {
    %c0_i32 = arith.constant 0 : i32
    %0 = arith.cmpi eq, %arg1, %c0_i32 : i32
    %1 = arith.extui %0 : i1 to i32
    %c0_i32_0 = arith.constant 0 : i32
    %2 = arith.cmpi ne, %1, %c0_i32_0 : i32
    scf.if %2 {
      %cst_162 = arith.constant 0.000000e+00 : f32
      %262 = vector.broadcast %cst_162 : f32 to vector<16x128xf32>
      %c0_163 = arith.constant 0 : index
      %c0_164 = arith.constant 0 : index
      %263 = vector.load %arg9[%c0_163, %c0_164] : memref<16x128xf32, #tpu.memory_space<vmem>>, vector<16x128xf32>
      tpu.vector_store %arg9[%c0_163, %c0_164], %262 {strides = array<i32>} : memref<16x128xf32, #tpu.memory_space<vmem>>, vector<16x128xf32>,
      %cst_165 = arith.constant 0.000000e+00 : f32
      %264 = vector.broadcast %cst_165 : f32 to vector<16x128xf32>
      %c0_166 = arith.constant 0 : index
      %c0_167 = arith.constant 0 : index
      %265 = vector.load %arg10[%c0_166, %c0_167] : memref<16x128xf32, #tpu.memory_space<vmem>>, vector<16x128xf32>
      tpu.vector_store %arg10[%c0_166, %c0_167], %264 {strides = array<i32>} : memref<16x128xf32, #tpu.memory_space<vmem>>, vector<16x128xf32>,
    } else {
    }
    %c0_i32_1 = arith.constant 0 : i32
    %c0 = arith.constant 0 : index
    %3 = arith.index_cast %c0_i32_1 : i32 to index
    %c0_2 = arith.constant 0 : index
    %c0_3 = arith.constant 0 : index
    %4 = vector.load %arg2[%c0, %3, %c0_2, %c0_3] : memref<1x8x16x128xbf16, #tpu.memory_space<vmem>>, vector<1x1x16x128xbf16>
    %5 = vector.shape_cast %4 : vector<1x1x16x128xbf16> to vector<16x128xbf16>
    %c0_4 = arith.constant 0 : index
    %c0_5 = arith.constant 0 : index
    %6 = vector.load %arg3[%c0_4, %c0_5] : memref<128x512xbf16, #tpu.memory_space<vmem>>, vector<128x512xbf16>
    %cst = arith.constant dense<0.000000e+00> : vector<16x512xf32>
    %7 = tpu.matmul %5, %6, %cst {dimension_numbers = #tpu.dot_dimension_numbers<[1], [0], [0], [1], [0, 0, 1, 1], [], []>} : vector<16x128xbf16>, vector<128x512xbf16>, vector<16x512xf32> -> vector<16x512xf32>
    %c0_6 = arith.constant 0 : index
    %c0_7 = arith.constant 0 : index
    %8 = vector.load %arg9[%c0_6, %c0_7] : memref<16x128xf32, #tpu.memory_space<vmem>>, vector<16x128xf32>
    %9 = arith.truncf %8 : vector<16x128xf32> to vector<16x128xbf16>
    %c0_8 = arith.constant 0 : index
    %c0_9 = arith.constant 0 : index
    %10 = vector.load %arg4[%c0_8, %c0_9] : memref<128x512xbf16, #tpu.memory_space<vmem>>, vector<128x512xbf16>
    %cst_10 = arith.constant dense<0.000000e+00> : vector<16x512xf32>
    %11 = tpu.matmul %9, %10, %cst_10 {dimension_numbers = #tpu.dot_dimension_numbers<[1], [0], [0], [1], [0, 0, 1, 1], [], []>} : vector<16x128xbf16>, vector<128x512xbf16>, vector<16x512xf32> -> vector<16x512xf32>
    %12 = arith.addf %7, %11 : vector<16x512xf32>
    %c0_11 = arith.constant 0 : index
    %c0_12 = arith.constant 0 : index
    %13 = vector.load %arg5[%c0_11, %c0_12] : memref<1x512xf32, #tpu.memory_space<vmem>>, vector<1x512xf32>
    %14 = vector.broadcast %13 : vector<1x512xf32> to vector<16x512xf32>
    %15 = arith.addf %12, %14 : vector<16x512xf32>
    %16 = vector.extract_strided_slice %15 {offsets = [0, 0], sizes = [16, 384], strides = [1, 1]} : vector<16x512xf32> to vector<16x384xf32>
    %17 = arith.negf %16 : vector<16x384xf32>
    %18 = math.exp %17 : vector<16x384xf32>
    %cst_13 = arith.constant 1.000000e+00 : f32
    %19 = vector.broadcast %cst_13 : f32 to vector<16x384xf32>
    %20 = arith.addf %19, %18 : vector<16x384xf32>
    %21 = arith.divf %19, %20 : vector<16x384xf32>
    %22 = vector.extract_strided_slice %21 {offsets = [0, 0], sizes = [16, 128], strides = [1, 1]} : vector<16x384xf32> to vector<16x128xf32>
    %23 = vector.extract_strided_slice %21 {offsets = [0, 128], sizes = [16, 128], strides = [1, 1]} : vector<16x384xf32> to vector<16x128xf32>
    %24 = vector.extract_strided_slice %21 {offsets = [0, 256], sizes = [16, 128], strides = [1, 1]} : vector<16x384xf32> to vector<16x128xf32>
    %25 = vector.extract_strided_slice %15 {offsets = [0, 384], sizes = [16, 128], strides = [1, 1]} : vector<16x512xf32> to vector<16x128xf32>
    %26 = math.tanh %25 : vector<16x128xf32>
    %c0_14 = arith.constant 0 : index
    %c0_15 = arith.constant 0 : index
    %27 = vector.load %arg10[%c0_14, %c0_15] : memref<16x128xf32, #tpu.memory_space<vmem>>, vector<16x128xf32>
    %28 = arith.mulf %23, %27 : vector<16x128xf32>
    %29 = arith.mulf %22, %26 : vector<16x128xf32>
    %30 = arith.addf %28, %29 : vector<16x128xf32>
    %31 = math.tanh %30 : vector<16x128xf32>
    %32 = arith.mulf %24, %31 : vector<16x128xf32>
    %c0_16 = arith.constant 0 : index
    %c0_17 = arith.constant 0 : index
    %33 = vector.load %arg10[%c0_16, %c0_17] : memref<16x128xf32, #tpu.memory_space<vmem>>, vector<16x128xf32>
    tpu.vector_store %arg10[%c0_16, %c0_17], %30 {strides = array<i32>} : memref<16x128xf32, #tpu.memory_space<vmem>>, vector<16x128xf32>,
    %c0_18 = arith.constant 0 : index
    %c0_19 = arith.constant 0 : index
    %34 = vector.load %arg9[%c0_18, %c0_19] : memref<16x128xf32, #tpu.memory_space<vmem>>, vector<16x128xf32>
    tpu.vector_store %arg9[%c0_18, %c0_19], %32 {strides = array<i32>} : memref<16x128xf32, #tpu.memory_space<vmem>>, vector<16x128xf32>,
    %c1_i32 = arith.constant 1 : i32
    %c0_20 = arith.constant 0 : index
    %35 = arith.index_cast %c1_i32 : i32 to index
    %c0_21 = arith.constant 0 : index
    %c0_22 = arith.constant 0 : index
    %36 = vector.load %arg2[%c0_20, %35, %c0_21, %c0_22] : memref<1x8x16x128xbf16, #tpu.memory_space<vmem>>, vector<1x1x16x128xbf16>
    %37 = vector.shape_cast %36 : vector<1x1x16x128xbf16> to vector<16x128xbf16>
    %c0_23 = arith.constant 0 : index
    %c0_24 = arith.constant 0 : index
    %38 = vector.load %arg3[%c0_23, %c0_24] : memref<128x512xbf16, #tpu.memory_space<vmem>>, vector<128x512xbf16>
    %cst_25 = arith.constant dense<0.000000e+00> : vector<16x512xf32>
    %39 = tpu.matmul %37, %38, %cst_25 {dimension_numbers = #tpu.dot_dimension_numbers<[1], [0], [0], [1], [0, 0, 1, 1], [], []>} : vector<16x128xbf16>, vector<128x512xbf16>, vector<16x512xf32> -> vector<16x512xf32>
    %c0_26 = arith.constant 0 : index
    %c0_27 = arith.constant 0 : index
    %40 = vector.load %arg9[%c0_26, %c0_27] : memref<16x128xf32, #tpu.memory_space<vmem>>, vector<16x128xf32>
    %41 = arith.truncf %40 : vector<16x128xf32> to vector<16x128xbf16>
    %c0_28 = arith.constant 0 : index
    %c0_29 = arith.constant 0 : index
    %42 = vector.load %arg4[%c0_28, %c0_29] : memref<128x512xbf16, #tpu.memory_space<vmem>>, vector<128x512xbf16>
    %cst_30 = arith.constant dense<0.000000e+00> : vector<16x512xf32>
    %43 = tpu.matmul %41, %42, %cst_30 {dimension_numbers = #tpu.dot_dimension_numbers<[1], [0], [0], [1], [0, 0, 1, 1], [], []>} : vector<16x128xbf16>, vector<128x512xbf16>, vector<16x512xf32> -> vector<16x512xf32>
    %44 = arith.addf %39, %43 : vector<16x512xf32>
    %c0_31 = arith.constant 0 : index
    %c0_32 = arith.constant 0 : index
    %45 = vector.load %arg5[%c0_31, %c0_32] : memref<1x512xf32, #tpu.memory_space<vmem>>, vector<1x512xf32>
    %46 = vector.broadcast %45 : vector<1x512xf32> to vector<16x512xf32>
    %47 = arith.addf %44, %46 : vector<16x512xf32>
    %48 = vector.extract_strided_slice %47 {offsets = [0, 0], sizes = [16, 384], strides = [1, 1]} : vector<16x512xf32> to vector<16x384xf32>
    %49 = arith.negf %48 : vector<16x384xf32>
    %50 = math.exp %49 : vector<16x384xf32>
    %cst_33 = arith.constant 1.000000e+00 : f32
    %51 = vector.broadcast %cst_33 : f32 to vector<16x384xf32>
    %52 = arith.addf %51, %50 : vector<16x384xf32>
    %53 = arith.divf %51, %52 : vector<16x384xf32>
    %54 = vector.extract_strided_slice %53 {offsets = [0, 0], sizes = [16, 128], strides = [1, 1]} : vector<16x384xf32> to vector<16x128xf32>
    %55 = vector.extract_strided_slice %53 {offsets = [0, 128], sizes = [16, 128], strides = [1, 1]} : vector<16x384xf32> to vector<16x128xf32>
    %56 = vector.extract_strided_slice %53 {offsets = [0, 256], sizes = [16, 128], strides = [1, 1]} : vector<16x384xf32> to vector<16x128xf32>
    %57 = vector.extract_strided_slice %47 {offsets = [0, 384], sizes = [16, 128], strides = [1, 1]} : vector<16x512xf32> to vector<16x128xf32>
    %58 = math.tanh %57 : vector<16x128xf32>
    %c0_34 = arith.constant 0 : index
    %c0_35 = arith.constant 0 : index
    %59 = vector.load %arg10[%c0_34, %c0_35] : memref<16x128xf32, #tpu.memory_space<vmem>>, vector<16x128xf32>
    %60 = arith.mulf %55, %59 : vector<16x128xf32>
    %61 = arith.mulf %54, %58 : vector<16x128xf32>
    %62 = arith.addf %60, %61 : vector<16x128xf32>
    %63 = math.tanh %62 : vector<16x128xf32>
    %64 = arith.mulf %56, %63 : vector<16x128xf32>
    %c0_36 = arith.constant 0 : index
    %c0_37 = arith.constant 0 : index
    %65 = vector.load %arg10[%c0_36, %c0_37] : memref<16x128xf32, #tpu.memory_space<vmem>>, vector<16x128xf32>
    tpu.vector_store %arg10[%c0_36, %c0_37], %62 {strides = array<i32>} : memref<16x128xf32, #tpu.memory_space<vmem>>, vector<16x128xf32>,
    %c0_38 = arith.constant 0 : index
    %c0_39 = arith.constant 0 : index
    %66 = vector.load %arg9[%c0_38, %c0_39] : memref<16x128xf32, #tpu.memory_space<vmem>>, vector<16x128xf32>
    tpu.vector_store %arg9[%c0_38, %c0_39], %64 {strides = array<i32>} : memref<16x128xf32, #tpu.memory_space<vmem>>, vector<16x128xf32>,
    %c2_i32 = arith.constant 2 : i32
    %c0_40 = arith.constant 0 : index
    %67 = arith.index_cast %c2_i32 : i32 to index
    %c0_41 = arith.constant 0 : index
    %c0_42 = arith.constant 0 : index
    %68 = vector.load %arg2[%c0_40, %67, %c0_41, %c0_42] : memref<1x8x16x128xbf16, #tpu.memory_space<vmem>>, vector<1x1x16x128xbf16>
    %69 = vector.shape_cast %68 : vector<1x1x16x128xbf16> to vector<16x128xbf16>
    %c0_43 = arith.constant 0 : index
    %c0_44 = arith.constant 0 : index
    %70 = vector.load %arg3[%c0_43, %c0_44] : memref<128x512xbf16, #tpu.memory_space<vmem>>, vector<128x512xbf16>
    %cst_45 = arith.constant dense<0.000000e+00> : vector<16x512xf32>
    %71 = tpu.matmul %69, %70, %cst_45 {dimension_numbers = #tpu.dot_dimension_numbers<[1], [0], [0], [1], [0, 0, 1, 1], [], []>} : vector<16x128xbf16>, vector<128x512xbf16>, vector<16x512xf32> -> vector<16x512xf32>
    %c0_46 = arith.constant 0 : index
    %c0_47 = arith.constant 0 : index
    %72 = vector.load %arg9[%c0_46, %c0_47] : memref<16x128xf32, #tpu.memory_space<vmem>>, vector<16x128xf32>
    %73 = arith.truncf %72 : vector<16x128xf32> to vector<16x128xbf16>
    %c0_48 = arith.constant 0 : index
    %c0_49 = arith.constant 0 : index
    %74 = vector.load %arg4[%c0_48, %c0_49] : memref<128x512xbf16, #tpu.memory_space<vmem>>, vector<128x512xbf16>
    %cst_50 = arith.constant dense<0.000000e+00> : vector<16x512xf32>
    %75 = tpu.matmul %73, %74, %cst_50 {dimension_numbers = #tpu.dot_dimension_numbers<[1], [0], [0], [1], [0, 0, 1, 1], [], []>} : vector<16x128xbf16>, vector<128x512xbf16>, vector<16x512xf32> -> vector<16x512xf32>
    %76 = arith.addf %71, %75 : vector<16x512xf32>
    %c0_51 = arith.constant 0 : index
    %c0_52 = arith.constant 0 : index
    %77 = vector.load %arg5[%c0_51, %c0_52] : memref<1x512xf32, #tpu.memory_space<vmem>>, vector<1x512xf32>
    %78 = vector.broadcast %77 : vector<1x512xf32> to vector<16x512xf32>
    %79 = arith.addf %76, %78 : vector<16x512xf32>
    %80 = vector.extract_strided_slice %79 {offsets = [0, 0], sizes = [16, 384], strides = [1, 1]} : vector<16x512xf32> to vector<16x384xf32>
    %81 = arith.negf %80 : vector<16x384xf32>
    %82 = math.exp %81 : vector<16x384xf32>
    %cst_53 = arith.constant 1.000000e+00 : f32
    %83 = vector.broadcast %cst_53 : f32 to vector<16x384xf32>
    %84 = arith.addf %83, %82 : vector<16x384xf32>
    %85 = arith.divf %83, %84 : vector<16x384xf32>
    %86 = vector.extract_strided_slice %85 {offsets = [0, 0], sizes = [16, 128], strides = [1, 1]} : vector<16x384xf32> to vector<16x128xf32>
    %87 = vector.extract_strided_slice %85 {offsets = [0, 128], sizes = [16, 128], strides = [1, 1]} : vector<16x384xf32> to vector<16x128xf32>
    %88 = vector.extract_strided_slice %85 {offsets = [0, 256], sizes = [16, 128], strides = [1, 1]} : vector<16x384xf32> to vector<16x128xf32>
    %89 = vector.extract_strided_slice %79 {offsets = [0, 384], sizes = [16, 128], strides = [1, 1]} : vector<16x512xf32> to vector<16x128xf32>
    %90 = math.tanh %89 : vector<16x128xf32>
    %c0_54 = arith.constant 0 : index
    %c0_55 = arith.constant 0 : index
    %91 = vector.load %arg10[%c0_54, %c0_55] : memref<16x128xf32, #tpu.memory_space<vmem>>, vector<16x128xf32>
    %92 = arith.mulf %87, %91 : vector<16x128xf32>
    %93 = arith.mulf %86, %90 : vector<16x128xf32>
    %94 = arith.addf %92, %93 : vector<16x128xf32>
    %95 = math.tanh %94 : vector<16x128xf32>
    %96 = arith.mulf %88, %95 : vector<16x128xf32>
    %c0_56 = arith.constant 0 : index
    %c0_57 = arith.constant 0 : index
    %97 = vector.load %arg10[%c0_56, %c0_57] : memref<16x128xf32, #tpu.memory_space<vmem>>, vector<16x128xf32>
    tpu.vector_store %arg10[%c0_56, %c0_57], %94 {strides = array<i32>} : memref<16x128xf32, #tpu.memory_space<vmem>>, vector<16x128xf32>,
    %c0_58 = arith.constant 0 : index
    %c0_59 = arith.constant 0 : index
    %98 = vector.load %arg9[%c0_58, %c0_59] : memref<16x128xf32, #tpu.memory_space<vmem>>, vector<16x128xf32>
    tpu.vector_store %arg9[%c0_58, %c0_59], %96 {strides = array<i32>} : memref<16x128xf32, #tpu.memory_space<vmem>>, vector<16x128xf32>,
    %c3_i32 = arith.constant 3 : i32
    %c0_60 = arith.constant 0 : index
    %99 = arith.index_cast %c3_i32 : i32 to index
    %c0_61 = arith.constant 0 : index
    %c0_62 = arith.constant 0 : index
    %100 = vector.load %arg2[%c0_60, %99, %c0_61, %c0_62] : memref<1x8x16x128xbf16, #tpu.memory_space<vmem>>, vector<1x1x16x128xbf16>
    %101 = vector.shape_cast %100 : vector<1x1x16x128xbf16> to vector<16x128xbf16>
    %c0_63 = arith.constant 0 : index
    %c0_64 = arith.constant 0 : index
    %102 = vector.load %arg3[%c0_63, %c0_64] : memref<128x512xbf16, #tpu.memory_space<vmem>>, vector<128x512xbf16>
    %cst_65 = arith.constant dense<0.000000e+00> : vector<16x512xf32>
    %103 = tpu.matmul %101, %102, %cst_65 {dimension_numbers = #tpu.dot_dimension_numbers<[1], [0], [0], [1], [0, 0, 1, 1], [], []>} : vector<16x128xbf16>, vector<128x512xbf16>, vector<16x512xf32> -> vector<16x512xf32>
    %c0_66 = arith.constant 0 : index
    %c0_67 = arith.constant 0 : index
    %104 = vector.load %arg9[%c0_66, %c0_67] : memref<16x128xf32, #tpu.memory_space<vmem>>, vector<16x128xf32>
    %105 = arith.truncf %104 : vector<16x128xf32> to vector<16x128xbf16>
    %c0_68 = arith.constant 0 : index
    %c0_69 = arith.constant 0 : index
    %106 = vector.load %arg4[%c0_68, %c0_69] : memref<128x512xbf16, #tpu.memory_space<vmem>>, vector<128x512xbf16>
    %cst_70 = arith.constant dense<0.000000e+00> : vector<16x512xf32>
    %107 = tpu.matmul %105, %106, %cst_70 {dimension_numbers = #tpu.dot_dimension_numbers<[1], [0], [0], [1], [0, 0, 1, 1], [], []>} : vector<16x128xbf16>, vector<128x512xbf16>, vector<16x512xf32> -> vector<16x512xf32>
    %108 = arith.addf %103, %107 : vector<16x512xf32>
    %c0_71 = arith.constant 0 : index
    %c0_72 = arith.constant 0 : index
    %109 = vector.load %arg5[%c0_71, %c0_72] : memref<1x512xf32, #tpu.memory_space<vmem>>, vector<1x512xf32>
    %110 = vector.broadcast %109 : vector<1x512xf32> to vector<16x512xf32>
    %111 = arith.addf %108, %110 : vector<16x512xf32>
    %112 = vector.extract_strided_slice %111 {offsets = [0, 0], sizes = [16, 384], strides = [1, 1]} : vector<16x512xf32> to vector<16x384xf32>
    %113 = arith.negf %112 : vector<16x384xf32>
    %114 = math.exp %113 : vector<16x384xf32>
    %cst_73 = arith.constant 1.000000e+00 : f32
    %115 = vector.broadcast %cst_73 : f32 to vector<16x384xf32>
    %116 = arith.addf %115, %114 : vector<16x384xf32>
    %117 = arith.divf %115, %116 : vector<16x384xf32>
    %118 = vector.extract_strided_slice %117 {offsets = [0, 0], sizes = [16, 128], strides = [1, 1]} : vector<16x384xf32> to vector<16x128xf32>
    %119 = vector.extract_strided_slice %117 {offsets = [0, 128], sizes = [16, 128], strides = [1, 1]} : vector<16x384xf32> to vector<16x128xf32>
    %120 = vector.extract_strided_slice %117 {offsets = [0, 256], sizes = [16, 128], strides = [1, 1]} : vector<16x384xf32> to vector<16x128xf32>
    %121 = vector.extract_strided_slice %111 {offsets = [0, 384], sizes = [16, 128], strides = [1, 1]} : vector<16x512xf32> to vector<16x128xf32>
    %122 = math.tanh %121 : vector<16x128xf32>
    %c0_74 = arith.constant 0 : index
    %c0_75 = arith.constant 0 : index
    %123 = vector.load %arg10[%c0_74, %c0_75] : memref<16x128xf32, #tpu.memory_space<vmem>>, vector<16x128xf32>
    %124 = arith.mulf %119, %123 : vector<16x128xf32>
    %125 = arith.mulf %118, %122 : vector<16x128xf32>
    %126 = arith.addf %124, %125 : vector<16x128xf32>
    %127 = math.tanh %126 : vector<16x128xf32>
    %128 = arith.mulf %120, %127 : vector<16x128xf32>
    %c0_76 = arith.constant 0 : index
    %c0_77 = arith.constant 0 : index
    %129 = vector.load %arg10[%c0_76, %c0_77] : memref<16x128xf32, #tpu.memory_space<vmem>>, vector<16x128xf32>
    tpu.vector_store %arg10[%c0_76, %c0_77], %126 {strides = array<i32>} : memref<16x128xf32, #tpu.memory_space<vmem>>, vector<16x128xf32>,
    %c0_78 = arith.constant 0 : index
    %c0_79 = arith.constant 0 : index
    %130 = vector.load %arg9[%c0_78, %c0_79] : memref<16x128xf32, #tpu.memory_space<vmem>>, vector<16x128xf32>
    tpu.vector_store %arg9[%c0_78, %c0_79], %128 {strides = array<i32>} : memref<16x128xf32, #tpu.memory_space<vmem>>, vector<16x128xf32>,
    %c4_i32 = arith.constant 4 : i32
    %c0_80 = arith.constant 0 : index
    %131 = arith.index_cast %c4_i32 : i32 to index
    %c0_81 = arith.constant 0 : index
    %c0_82 = arith.constant 0 : index
    %132 = vector.load %arg2[%c0_80, %131, %c0_81, %c0_82] : memref<1x8x16x128xbf16, #tpu.memory_space<vmem>>, vector<1x1x16x128xbf16>
    %133 = vector.shape_cast %132 : vector<1x1x16x128xbf16> to vector<16x128xbf16>
    %c0_83 = arith.constant 0 : index
    %c0_84 = arith.constant 0 : index
    %134 = vector.load %arg3[%c0_83, %c0_84] : memref<128x512xbf16, #tpu.memory_space<vmem>>, vector<128x512xbf16>
    %cst_85 = arith.constant dense<0.000000e+00> : vector<16x512xf32>
    %135 = tpu.matmul %133, %134, %cst_85 {dimension_numbers = #tpu.dot_dimension_numbers<[1], [0], [0], [1], [0, 0, 1, 1], [], []>} : vector<16x128xbf16>, vector<128x512xbf16>, vector<16x512xf32> -> vector<16x512xf32>
    %c0_86 = arith.constant 0 : index
    %c0_87 = arith.constant 0 : index
    %136 = vector.load %arg9[%c0_86, %c0_87] : memref<16x128xf32, #tpu.memory_space<vmem>>, vector<16x128xf32>
    %137 = arith.truncf %136 : vector<16x128xf32> to vector<16x128xbf16>
    %c0_88 = arith.constant 0 : index
    %c0_89 = arith.constant 0 : index
    %138 = vector.load %arg4[%c0_88, %c0_89] : memref<128x512xbf16, #tpu.memory_space<vmem>>, vector<128x512xbf16>
    %cst_90 = arith.constant dense<0.000000e+00> : vector<16x512xf32>
    %139 = tpu.matmul %137, %138, %cst_90 {dimension_numbers = #tpu.dot_dimension_numbers<[1], [0], [0], [1], [0, 0, 1, 1], [], []>} : vector<16x128xbf16>, vector<128x512xbf16>, vector<16x512xf32> -> vector<16x512xf32>
    %140 = arith.addf %135, %139 : vector<16x512xf32>
    %c0_91 = arith.constant 0 : index
    %c0_92 = arith.constant 0 : index
    %141 = vector.load %arg5[%c0_91, %c0_92] : memref<1x512xf32, #tpu.memory_space<vmem>>, vector<1x512xf32>
    %142 = vector.broadcast %141 : vector<1x512xf32> to vector<16x512xf32>
    %143 = arith.addf %140, %142 : vector<16x512xf32>
    %144 = vector.extract_strided_slice %143 {offsets = [0, 0], sizes = [16, 384], strides = [1, 1]} : vector<16x512xf32> to vector<16x384xf32>
    %145 = arith.negf %144 : vector<16x384xf32>
    %146 = math.exp %145 : vector<16x384xf32>
    %cst_93 = arith.constant 1.000000e+00 : f32
    %147 = vector.broadcast %cst_93 : f32 to vector<16x384xf32>
    %148 = arith.addf %147, %146 : vector<16x384xf32>
    %149 = arith.divf %147, %148 : vector<16x384xf32>
    %150 = vector.extract_strided_slice %149 {offsets = [0, 0], sizes = [16, 128], strides = [1, 1]} : vector<16x384xf32> to vector<16x128xf32>
    %151 = vector.extract_strided_slice %149 {offsets = [0, 128], sizes = [16, 128], strides = [1, 1]} : vector<16x384xf32> to vector<16x128xf32>
    %152 = vector.extract_strided_slice %149 {offsets = [0, 256], sizes = [16, 128], strides = [1, 1]} : vector<16x384xf32> to vector<16x128xf32>
    %153 = vector.extract_strided_slice %143 {offsets = [0, 384], sizes = [16, 128], strides = [1, 1]} : vector<16x512xf32> to vector<16x128xf32>
    %154 = math.tanh %153 : vector<16x128xf32>
    %c0_94 = arith.constant 0 : index
    %c0_95 = arith.constant 0 : index
    %155 = vector.load %arg10[%c0_94, %c0_95] : memref<16x128xf32, #tpu.memory_space<vmem>>, vector<16x128xf32>
    %156 = arith.mulf %151, %155 : vector<16x128xf32>
    %157 = arith.mulf %150, %154 : vector<16x128xf32>
    %158 = arith.addf %156, %157 : vector<16x128xf32>
    %159 = math.tanh %158 : vector<16x128xf32>
    %160 = arith.mulf %152, %159 : vector<16x128xf32>
    %c0_96 = arith.constant 0 : index
    %c0_97 = arith.constant 0 : index
    %161 = vector.load %arg10[%c0_96, %c0_97] : memref<16x128xf32, #tpu.memory_space<vmem>>, vector<16x128xf32>
    tpu.vector_store %arg10[%c0_96, %c0_97], %158 {strides = array<i32>} : memref<16x128xf32, #tpu.memory_space<vmem>>, vector<16x128xf32>,
    %c0_98 = arith.constant 0 : index
    %c0_99 = arith.constant 0 : index
    %162 = vector.load %arg9[%c0_98, %c0_99] : memref<16x128xf32, #tpu.memory_space<vmem>>, vector<16x128xf32>
    tpu.vector_store %arg9[%c0_98, %c0_99], %160 {strides = array<i32>} : memref<16x128xf32, #tpu.memory_space<vmem>>, vector<16x128xf32>,
    %c5_i32 = arith.constant 5 : i32
    %c0_100 = arith.constant 0 : index
    %163 = arith.index_cast %c5_i32 : i32 to index
    %c0_101 = arith.constant 0 : index
    %c0_102 = arith.constant 0 : index
    %164 = vector.load %arg2[%c0_100, %163, %c0_101, %c0_102] : memref<1x8x16x128xbf16, #tpu.memory_space<vmem>>, vector<1x1x16x128xbf16>
    %165 = vector.shape_cast %164 : vector<1x1x16x128xbf16> to vector<16x128xbf16>
    %c0_103 = arith.constant 0 : index
    %c0_104 = arith.constant 0 : index
    %166 = vector.load %arg3[%c0_103, %c0_104] : memref<128x512xbf16, #tpu.memory_space<vmem>>, vector<128x512xbf16>
    %cst_105 = arith.constant dense<0.000000e+00> : vector<16x512xf32>
    %167 = tpu.matmul %165, %166, %cst_105 {dimension_numbers = #tpu.dot_dimension_numbers<[1], [0], [0], [1], [0, 0, 1, 1], [], []>} : vector<16x128xbf16>, vector<128x512xbf16>, vector<16x512xf32> -> vector<16x512xf32>
    %c0_106 = arith.constant 0 : index
    %c0_107 = arith.constant 0 : index
    %168 = vector.load %arg9[%c0_106, %c0_107] : memref<16x128xf32, #tpu.memory_space<vmem>>, vector<16x128xf32>
    %169 = arith.truncf %168 : vector<16x128xf32> to vector<16x128xbf16>
    %c0_108 = arith.constant 0 : index
    %c0_109 = arith.constant 0 : index
    %170 = vector.load %arg4[%c0_108, %c0_109] : memref<128x512xbf16, #tpu.memory_space<vmem>>, vector<128x512xbf16>
    %cst_110 = arith.constant dense<0.000000e+00> : vector<16x512xf32>
    %171 = tpu.matmul %169, %170, %cst_110 {dimension_numbers = #tpu.dot_dimension_numbers<[1], [0], [0], [1], [0, 0, 1, 1], [], []>} : vector<16x128xbf16>, vector<128x512xbf16>, vector<16x512xf32> -> vector<16x512xf32>
    %172 = arith.addf %167, %171 : vector<16x512xf32>
    %c0_111 = arith.constant 0 : index
    %c0_112 = arith.constant 0 : index
    %173 = vector.load %arg5[%c0_111, %c0_112] : memref<1x512xf32, #tpu.memory_space<vmem>>, vector<1x512xf32>
    %174 = vector.broadcast %173 : vector<1x512xf32> to vector<16x512xf32>
    %175 = arith.addf %172, %174 : vector<16x512xf32>
    %176 = vector.extract_strided_slice %175 {offsets = [0, 0], sizes = [16, 384], strides = [1, 1]} : vector<16x512xf32> to vector<16x384xf32>
    %177 = arith.negf %176 : vector<16x384xf32>
    %178 = math.exp %177 : vector<16x384xf32>
    %cst_113 = arith.constant 1.000000e+00 : f32
    %179 = vector.broadcast %cst_113 : f32 to vector<16x384xf32>
    %180 = arith.addf %179, %178 : vector<16x384xf32>
    %181 = arith.divf %179, %180 : vector<16x384xf32>
    %182 = vector.extract_strided_slice %181 {offsets = [0, 0], sizes = [16, 128], strides = [1, 1]} : vector<16x384xf32> to vector<16x128xf32>
    %183 = vector.extract_strided_slice %181 {offsets = [0, 128], sizes = [16, 128], strides = [1, 1]} : vector<16x384xf32> to vector<16x128xf32>
    %184 = vector.extract_strided_slice %181 {offsets = [0, 256], sizes = [16, 128], strides = [1, 1]} : vector<16x384xf32> to vector<16x128xf32>
    %185 = vector.extract_strided_slice %175 {offsets = [0, 384], sizes = [16, 128], strides = [1, 1]} : vector<16x512xf32> to vector<16x128xf32>
    %186 = math.tanh %185 : vector<16x128xf32>
    %c0_114 = arith.constant 0 : index
    %c0_115 = arith.constant 0 : index
    %187 = vector.load %arg10[%c0_114, %c0_115] : memref<16x128xf32, #tpu.memory_space<vmem>>, vector<16x128xf32>
    %188 = arith.mulf %183, %187 : vector<16x128xf32>
    %189 = arith.mulf %182, %186 : vector<16x128xf32>
    %190 = arith.addf %188, %189 : vector<16x128xf32>
    %191 = math.tanh %190 : vector<16x128xf32>
    %192 = arith.mulf %184, %191 : vector<16x128xf32>
    %c0_116 = arith.constant 0 : index
    %c0_117 = arith.constant 0 : index
    %193 = vector.load %arg10[%c0_116, %c0_117] : memref<16x128xf32, #tpu.memory_space<vmem>>, vector<16x128xf32>
    tpu.vector_store %arg10[%c0_116, %c0_117], %190 {strides = array<i32>} : memref<16x128xf32, #tpu.memory_space<vmem>>, vector<16x128xf32>,
    %c0_118 = arith.constant 0 : index
    %c0_119 = arith.constant 0 : index
    %194 = vector.load %arg9[%c0_118, %c0_119] : memref<16x128xf32, #tpu.memory_space<vmem>>, vector<16x128xf32>
    tpu.vector_store %arg9[%c0_118, %c0_119], %192 {strides = array<i32>} : memref<16x128xf32, #tpu.memory_space<vmem>>, vector<16x128xf32>,
    %c6_i32 = arith.constant 6 : i32
    %c0_120 = arith.constant 0 : index
    %195 = arith.index_cast %c6_i32 : i32 to index
    %c0_121 = arith.constant 0 : index
    %c0_122 = arith.constant 0 : index
    %196 = vector.load %arg2[%c0_120, %195, %c0_121, %c0_122] : memref<1x8x16x128xbf16, #tpu.memory_space<vmem>>, vector<1x1x16x128xbf16>
    %197 = vector.shape_cast %196 : vector<1x1x16x128xbf16> to vector<16x128xbf16>
    %c0_123 = arith.constant 0 : index
    %c0_124 = arith.constant 0 : index
    %198 = vector.load %arg3[%c0_123, %c0_124] : memref<128x512xbf16, #tpu.memory_space<vmem>>, vector<128x512xbf16>
    %cst_125 = arith.constant dense<0.000000e+00> : vector<16x512xf32>
    %199 = tpu.matmul %197, %198, %cst_125 {dimension_numbers = #tpu.dot_dimension_numbers<[1], [0], [0], [1], [0, 0, 1, 1], [], []>} : vector<16x128xbf16>, vector<128x512xbf16>, vector<16x512xf32> -> vector<16x512xf32>
    %c0_126 = arith.constant 0 : index
    %c0_127 = arith.constant 0 : index
    %200 = vector.load %arg9[%c0_126, %c0_127] : memref<16x128xf32, #tpu.memory_space<vmem>>, vector<16x128xf32>
    %201 = arith.truncf %200 : vector<16x128xf32> to vector<16x128xbf16>
    %c0_128 = arith.constant 0 : index
    %c0_129 = arith.constant 0 : index
    %202 = vector.load %arg4[%c0_128, %c0_129] : memref<128x512xbf16, #tpu.memory_space<vmem>>, vector<128x512xbf16>
    %cst_130 = arith.constant dense<0.000000e+00> : vector<16x512xf32>
    %203 = tpu.matmul %201, %202, %cst_130 {dimension_numbers = #tpu.dot_dimension_numbers<[1], [0], [0], [1], [0, 0, 1, 1], [], []>} : vector<16x128xbf16>, vector<128x512xbf16>, vector<16x512xf32> -> vector<16x512xf32>
    %204 = arith.addf %199, %203 : vector<16x512xf32>
    %c0_131 = arith.constant 0 : index
    %c0_132 = arith.constant 0 : index
    %205 = vector.load %arg5[%c0_131, %c0_132] : memref<1x512xf32, #tpu.memory_space<vmem>>, vector<1x512xf32>
    %206 = vector.broadcast %205 : vector<1x512xf32> to vector<16x512xf32>
    %207 = arith.addf %204, %206 : vector<16x512xf32>
    %208 = vector.extract_strided_slice %207 {offsets = [0, 0], sizes = [16, 384], strides = [1, 1]} : vector<16x512xf32> to vector<16x384xf32>
    %209 = arith.negf %208 : vector<16x384xf32>
    %210 = math.exp %209 : vector<16x384xf32>
    %cst_133 = arith.constant 1.000000e+00 : f32
    %211 = vector.broadcast %cst_133 : f32 to vector<16x384xf32>
    %212 = arith.addf %211, %210 : vector<16x384xf32>
    %213 = arith.divf %211, %212 : vector<16x384xf32>
    %214 = vector.extract_strided_slice %213 {offsets = [0, 0], sizes = [16, 128], strides = [1, 1]} : vector<16x384xf32> to vector<16x128xf32>
    %215 = vector.extract_strided_slice %213 {offsets = [0, 128], sizes = [16, 128], strides = [1, 1]} : vector<16x384xf32> to vector<16x128xf32>
    %216 = vector.extract_strided_slice %213 {offsets = [0, 256], sizes = [16, 128], strides = [1, 1]} : vector<16x384xf32> to vector<16x128xf32>
    %217 = vector.extract_strided_slice %207 {offsets = [0, 384], sizes = [16, 128], strides = [1, 1]} : vector<16x512xf32> to vector<16x128xf32>
    %218 = math.tanh %217 : vector<16x128xf32>
    %c0_134 = arith.constant 0 : index
    %c0_135 = arith.constant 0 : index
    %219 = vector.load %arg10[%c0_134, %c0_135] : memref<16x128xf32, #tpu.memory_space<vmem>>, vector<16x128xf32>
    %220 = arith.mulf %215, %219 : vector<16x128xf32>
    %221 = arith.mulf %214, %218 : vector<16x128xf32>
    %222 = arith.addf %220, %221 : vector<16x128xf32>
    %223 = math.tanh %222 : vector<16x128xf32>
    %224 = arith.mulf %216, %223 : vector<16x128xf32>
    %c0_136 = arith.constant 0 : index
    %c0_137 = arith.constant 0 : index
    %225 = vector.load %arg10[%c0_136, %c0_137] : memref<16x128xf32, #tpu.memory_space<vmem>>, vector<16x128xf32>
    tpu.vector_store %arg10[%c0_136, %c0_137], %222 {strides = array<i32>} : memref<16x128xf32, #tpu.memory_space<vmem>>, vector<16x128xf32>,
    %c0_138 = arith.constant 0 : index
    %c0_139 = arith.constant 0 : index
    %226 = vector.load %arg9[%c0_138, %c0_139] : memref<16x128xf32, #tpu.memory_space<vmem>>, vector<16x128xf32>
    tpu.vector_store %arg9[%c0_138, %c0_139], %224 {strides = array<i32>} : memref<16x128xf32, #tpu.memory_space<vmem>>, vector<16x128xf32>,
    %c7_i32 = arith.constant 7 : i32
    %c0_140 = arith.constant 0 : index
    %227 = arith.index_cast %c7_i32 : i32 to index
    %c0_141 = arith.constant 0 : index
    %c0_142 = arith.constant 0 : index
    %228 = vector.load %arg2[%c0_140, %227, %c0_141, %c0_142] : memref<1x8x16x128xbf16, #tpu.memory_space<vmem>>, vector<1x1x16x128xbf16>
    %229 = vector.shape_cast %228 : vector<1x1x16x128xbf16> to vector<16x128xbf16>
    %c0_143 = arith.constant 0 : index
    %c0_144 = arith.constant 0 : index
    %230 = vector.load %arg3[%c0_143, %c0_144] : memref<128x512xbf16, #tpu.memory_space<vmem>>, vector<128x512xbf16>
    %cst_145 = arith.constant dense<0.000000e+00> : vector<16x512xf32>
    %231 = tpu.matmul %229, %230, %cst_145 {dimension_numbers = #tpu.dot_dimension_numbers<[1], [0], [0], [1], [0, 0, 1, 1], [], []>} : vector<16x128xbf16>, vector<128x512xbf16>, vector<16x512xf32> -> vector<16x512xf32>
    %c0_146 = arith.constant 0 : index
    %c0_147 = arith.constant 0 : index
    %232 = vector.load %arg9[%c0_146, %c0_147] : memref<16x128xf32, #tpu.memory_space<vmem>>, vector<16x128xf32>
    %233 = arith.truncf %232 : vector<16x128xf32> to vector<16x128xbf16>
    %c0_148 = arith.constant 0 : index
    %c0_149 = arith.constant 0 : index
    %234 = vector.load %arg4[%c0_148, %c0_149] : memref<128x512xbf16, #tpu.memory_space<vmem>>, vector<128x512xbf16>
    %cst_150 = arith.constant dense<0.000000e+00> : vector<16x512xf32>
    %235 = tpu.matmul %233, %234, %cst_150 {dimension_numbers = #tpu.dot_dimension_numbers<[1], [0], [0], [1], [0, 0, 1, 1], [], []>} : vector<16x128xbf16>, vector<128x512xbf16>, vector<16x512xf32> -> vector<16x512xf32>
    %236 = arith.addf %231, %235 : vector<16x512xf32>
    %c0_151 = arith.constant 0 : index
    %c0_152 = arith.constant 0 : index
    %237 = vector.load %arg5[%c0_151, %c0_152] : memref<1x512xf32, #tpu.memory_space<vmem>>, vector<1x512xf32>
    %238 = vector.broadcast %237 : vector<1x512xf32> to vector<16x512xf32>
    %239 = arith.addf %236, %238 : vector<16x512xf32>
    %240 = vector.extract_strided_slice %239 {offsets = [0, 0], sizes = [16, 384], strides = [1, 1]} : vector<16x512xf32> to vector<16x384xf32>
    %241 = arith.negf %240 : vector<16x384xf32>
    %242 = math.exp %241 : vector<16x384xf32>
    %cst_153 = arith.constant 1.000000e+00 : f32
    %243 = vector.broadcast %cst_153 : f32 to vector<16x384xf32>
    %244 = arith.addf %243, %242 : vector<16x384xf32>
    %245 = arith.divf %243, %244 : vector<16x384xf32>
    %246 = vector.extract_strided_slice %245 {offsets = [0, 0], sizes = [16, 128], strides = [1, 1]} : vector<16x384xf32> to vector<16x128xf32>
    %247 = vector.extract_strided_slice %245 {offsets = [0, 128], sizes = [16, 128], strides = [1, 1]} : vector<16x384xf32> to vector<16x128xf32>
    %248 = vector.extract_strided_slice %245 {offsets = [0, 256], sizes = [16, 128], strides = [1, 1]} : vector<16x384xf32> to vector<16x128xf32>
    %249 = vector.extract_strided_slice %239 {offsets = [0, 384], sizes = [16, 128], strides = [1, 1]} : vector<16x512xf32> to vector<16x128xf32>
    %250 = math.tanh %249 : vector<16x128xf32>
    %c0_154 = arith.constant 0 : index
    %c0_155 = arith.constant 0 : index
    %251 = vector.load %arg10[%c0_154, %c0_155] : memref<16x128xf32, #tpu.memory_space<vmem>>, vector<16x128xf32>
    %252 = arith.mulf %247, %251 : vector<16x128xf32>
    %253 = arith.mulf %246, %250 : vector<16x128xf32>
    %254 = arith.addf %252, %253 : vector<16x128xf32>
    %255 = math.tanh %254 : vector<16x128xf32>
    %256 = arith.mulf %248, %255 : vector<16x128xf32>
    %c0_156 = arith.constant 0 : index
    %c0_157 = arith.constant 0 : index
    %257 = vector.load %arg10[%c0_156, %c0_157] : memref<16x128xf32, #tpu.memory_space<vmem>>, vector<16x128xf32>
    tpu.vector_store %arg10[%c0_156, %c0_157], %254 {strides = array<i32>} : memref<16x128xf32, #tpu.memory_space<vmem>>, vector<16x128xf32>,
    %c0_158 = arith.constant 0 : index
    %c0_159 = arith.constant 0 : index
    %258 = vector.load %arg9[%c0_158, %c0_159] : memref<16x128xf32, #tpu.memory_space<vmem>>, vector<16x128xf32>
    tpu.vector_store %arg9[%c0_158, %c0_159], %256 {strides = array<i32>} : memref<16x128xf32, #tpu.memory_space<vmem>>, vector<16x128xf32>,
    %c8_i32 = arith.constant 8 : i32
    %c0_i32_160 = arith.constant 0 : i32
    %259 = arith.cmpi eq, %arg1, %c0_i32_160 : i32
    %260 = arith.extui %259 : i1 to i32
    %c0_i32_161 = arith.constant 0 : i32
    %261 = arith.cmpi ne, %260, %c0_i32_161 : i32
    scf.if %261 {
      %c0_162 = arith.constant 0 : index
      %c0_163 = arith.constant 0 : index
      %262 = vector.load %arg9[%c0_162, %c0_163] : memref<16x128xf32, #tpu.memory_space<vmem>>, vector<16x128xf32>
      %263 = arith.truncf %262 : vector<16x128xf32> to vector<16x128xbf16>
      %c0_164 = arith.constant 0 : index
      %c0_165 = arith.constant 0 : index
      %264 = vector.load %arg6[%c0_164, %c0_165] : memref<128x128xbf16, #tpu.memory_space<vmem>>, vector<128x128xbf16>
      %cst_166 = arith.constant dense<0.000000e+00> : vector<16x128xf32>
      %265 = tpu.matmul %263, %264, %cst_166 {dimension_numbers = #tpu.dot_dimension_numbers<[1], [0], [0], [1], [0, 0, 1, 1], [], []>} : vector<16x128xbf16>, vector<128x128xbf16>, vector<16x128xf32> -> vector<16x128xf32>
      %c0_167 = arith.constant 0 : index
      %c0_168 = arith.constant 0 : index
      %266 = vector.load %arg7[%c0_167, %c0_168] : memref<1x128xf32, #tpu.memory_space<vmem>>, vector<1x128xf32>
      %267 = vector.broadcast %266 : vector<1x128xf32> to vector<16x128xf32>
      %268 = arith.addf %265, %267 : vector<16x128xf32>
      %c0_169 = arith.constant 0 : index
      %c0_170 = arith.constant 0 : index
      %269 = vector.load %arg8[%c0_169, %c0_170] : memref<16x128xf32, #tpu.memory_space<vmem>>, vector<16x128xf32>
      tpu.vector_store %arg8[%c0_169, %c0_170], %268 {strides = array<i32>} : memref<16x128xf32, #tpu.memory_space<vmem>>, vector<16x128xf32>,
    } else {
    }
    return
  }
  func.func @transform_0(%arg0: i32, %arg1: i32) -> (i32, i32, i32, i32) {
    %c0_i32 = arith.constant 0 : i32
    %c0_i32_0 = arith.constant 0 : i32
    %c0_i32_1 = arith.constant 0 : i32
    return %arg0, %arg1, %c0_i32, %c0_i32_0 : i32, i32, i32, i32
  }
  func.func @transform_1(%arg0: i32, %arg1: i32) -> (i32, i32) {
    %c0_i32 = arith.constant 0 : i32
    %c0_i32_0 = arith.constant 0 : i32
    %c0_i32_1 = arith.constant 0 : i32
    return %c0_i32, %c0_i32_0 : i32, i32
  }
  func.func @transform_2(%arg0: i32, %arg1: i32) -> (i32, i32) {
    %c0_i32 = arith.constant 0 : i32
    %c0_i32_0 = arith.constant 0 : i32
    %c0_i32_1 = arith.constant 0 : i32
    return %c0_i32, %c0_i32_0 : i32, i32
  }
  func.func @transform_3(%arg0: i32, %arg1: i32) -> (i32, i32) {
    %c0_i32 = arith.constant 0 : i32
    %c0_i32_0 = arith.constant 0 : i32
    %c0_i32_1 = arith.constant 0 : i32
    return %c0_i32, %c0_i32_0 : i32, i32
  }
  func.func @transform_4(%arg0: i32, %arg1: i32) -> (i32, i32) {
    %c0_i32 = arith.constant 0 : i32
    %c0_i32_0 = arith.constant 0 : i32
    %c0_i32_1 = arith.constant 0 : i32
    return %c0_i32, %c0_i32_0 : i32, i32
  }
  func.func @transform_5(%arg0: i32, %arg1: i32) -> (i32, i32) {
    %c0_i32 = arith.constant 0 : i32
    %c0_i32_0 = arith.constant 0 : i32
    %c0_i32_1 = arith.constant 0 : i32
    return %c0_i32, %c0_i32_0 : i32, i32
  }
  func.func @transform_6(%arg0: i32, %arg1: i32) -> (i32, i32) {
    %c0_i32 = arith.constant 0 : i32
    %c0_i32_0 = arith.constant 0 : i32
    return %arg0, %c0_i32 : i32, i32
  }
}

</mosaic_0001>

<llo_original>
// kernel: lstm_embeddings_forward.1
$region0: #{lstm_embeddings_forward.1}
  #allocation0 [shape = 'u32[]', space=smem, size = 0x4, offset = 0x4, fixed_abs, tag = 'smem constant byte address 0x4 - core index']
  #allocation1 [shape = 'u32[144,128]{1,0:T(1,128)}', space=vmem, size = 0x12000, scoped, tag = 'internal scratch']
  #allocation2 [shape = 'f32[16,128]{1,0:T(8,128)}', space=vmem, size = 0x2000, scoped, tag = 'scratch operand']
  #allocation3 [shape = 'f32[16,128]{1,0:T(8,128)}', space=vmem, size = 0x2000, scoped, tag = 'scratch operand']
  %s0 = inlined_call_operand.vmem [shape: bf16[1,8,16,128], index: 0, kind: input, shape index: {}]
  %s1 = inlined_call_operand.vmem [shape: bf16[128,512], index: 1, kind: input, shape index: {}]
  %s2 = inlined_call_operand.vmem [shape: bf16[128,512], index: 2, kind: input, shape index: {}]
  %s3 = inlined_call_operand.vmem [shape: f32[1,512], index: 3, kind: input, shape index: {}]
  %s4 = inlined_call_operand.vmem [shape: bf16[128,128], index: 4, kind: input, shape index: {}]
  %s5 = inlined_call_operand.vmem [shape: f32[1,128], index: 5, kind: input, shape index: {}]
  %s6 = inlined_call_operand.vmem [shape: f32[16,128], index: 6, kind: output, shape index: {}]
  %s7 = sld [smem:[#allocation0]]
  $region42: #{lstm_embeddings_forward.1} parent=0
    _
  %s9 = ssub.s32 1, %s7
  %s10 = scalar_select 0, %s9, %s7
  // Predicated region
  $region2: #{lstm_embeddings_forward.1} parent=0 // pred_check
    _
  $region3: #{lstm_embeddings_forward.1} parent=0 // pred_check_branch
    %12 = sbr.rel (0) target = $region5
  $region4: #{lstm_embeddings_forward.1} parent=0 // pred_region
    _
  $region5: #{lstm_embeddings_forward.1} parent=0 // pred_fallthru
    _
  // Predicated region
  $region6: #{lstm_embeddings_forward.1} parent=0 // pred_check
    _
  $region7: #{lstm_embeddings_forward.1} parent=0 // pred_check_branch
    %14 = sbr.rel (0) target = $region9
  $region8: #{lstm_embeddings_forward.1} parent=0 // pred_region
    _
  $region9: #{lstm_embeddings_forward.1} parent=0 // pred_fallthru
    _
  // Predicated region
  $region10: #{lstm_embeddings_forward.1} parent=0 // pred_check
    _
  $region11: #{lstm_embeddings_forward.1} parent=0 // pred_check_branch
    %16 = sbr.rel (0) target = $region13
  $region12: #{lstm_embeddings_forward.1} parent=0 // pred_region
    _
  $region13: #{lstm_embeddings_forward.1} parent=0 // pred_fallthru
    _
  // Predicated region
  $region14: #{lstm_embeddings_forward.1} parent=0 // pred_check
    _
  $region15: #{lstm_embeddings_forward.1} parent=0 // pred_check_branch
    %18 = sbr.rel (0) target = $region17
  $region16: #{lstm_embeddings_forward.1} parent=0 // pred_region
    _
  $region17: #{lstm_embeddings_forward.1} parent=0 // pred_fallthru
    _
  // Predicated region
  $region18: #{lstm_embeddings_forward.1} parent=0 // pred_check
    _
  $region19: #{lstm_embeddings_forward.1} parent=0 // pred_check_branch
    %20 = sbr.rel (0) target = $region21
  $region20: #{lstm_embeddings_forward.1} parent=0 // pred_region
    _
  $region21: #{lstm_embeddings_forward.1} parent=0 // pred_fallthru
    _
  // Predicated region
  $region22: #{lstm_embeddings_forward.1} parent=0 // pred_check
    _
  $region23: #{lstm_embeddings_forward.1} parent=0 // pred_check_branch
    %22 = sbr.rel (0) target = $region25
  $region24: #{lstm_embeddings_forward.1} parent=0 // pred_region
    _
  $region25: #{lstm_embeddings_forward.1} parent=0 // pred_fallthru
    _
  %p24 = scmp.eq.s32.totalorder 0, 0
  // Predicated region
  $region26: #{lstm_embeddings_forward.1} parent=0 // pred_check
    %p25 = pneg %p24
  $region27: #{lstm_embeddings_forward.1} parent=0 // pred_check_branch
    %27 = sbr.rel (%p25) target = $region29
  $region28: #{lstm_embeddings_forward.1} parent=0 // pred_region
    %28 = vst [vmem:[#allocation2] sm:$0xff] 0.0
    %29 = vst [vmem:[#allocation2 + $0x8] sm:$0xff] 0.0
    %30 = vst [vmem:[#allocation3] sm:$0xff] 0.0
    %31 = vst [vmem:[#allocation3 + $0x8] sm:$0xff] 0.0
  $region29: #{lstm_embeddings_forward.1} parent=0 // pred_fallthru
    _
  %v32 = vld [vmem:[%s0] sm:$0xf]
  %v33 = vld [vmem:[%s0 + $0x4] sm:$0xf]
  %v34 = vld [vmem:[%s1] sm:$0xff]
  %v35 = vld [vmem:[%s1 + $0x8] sm:$0xff]
  %v36 = vld [vmem:[%s1 + $0x10] sm:$0xff]
  %v37 = vld [vmem:[%s1 + $0x18] sm:$0xff]
  %v38 = vld [vmem:[%s1 + $0x20] sm:$0xff]
  %v39 = vld [vmem:[%s1 + $0x28] sm:$0xff]
  %v40 = vld [vmem:[%s1 + $0x30] sm:$0xff]
  %v41 = vld [vmem:[%s1 + $0x38] sm:$0xff]
  %v42 = vld [vmem:[%s1 + $0x40] sm:$0xff]
  %v43 = vld [vmem:[%s1 + $0x48] sm:$0xff]
  %v44 = vld [vmem:[%s1 + $0x50] sm:$0xff]
  %v45 = vld [vmem:[%s1 + $0x58] sm:$0xff]
  %v46 = vld [vmem:[%s1 + $0x60] sm:$0xff]
  %v47 = vld [vmem:[%s1 + $0x68] sm:$0xff]
  %v48 = vld [vmem:[%s1 + $0x70] sm:$0xff]
  %v49 = vld [vmem:[%s1 + $0x78] sm:$0xff]
  %v50 = vld [vmem:[%s1 + $0x80] sm:$0xff]
  %v51 = vld [vmem:[%s1 + $0x88] sm:$0xff]
  %v52 = vld [vmem:[%s1 + $0x90] sm:$0xff]
  %v53 = vld [vmem:[%s1 + $0x98] sm:$0xff]
  %v54 = vld [vmem:[%s1 + $0xa0] sm:$0xff]
  %v55 = vld [vmem:[%s1 + $0xa8] sm:$0xff]
  %v56 = vld [vmem:[%s1 + $0xb0] sm:$0xff]
  %v57 = vld [vmem:[%s1 + $0xb8] sm:$0xff]
  %v58 = vld [vmem:[%s1 + $0xc0] sm:$0xff]
  %v59 = vld [vmem:[%s1 + $0xc8] sm:$0xff]
  %v60 = vld [vmem:[%s1 + $0xd0] sm:$0xff]
  %v61 = vld [vmem:[%s1 + $0xd8] sm:$0xff]
  %v62 = vld [vmem:[%s1 + $0xe0] sm:$0xff]
  %v63 = vld [vmem:[%s1 + $0xe8] sm:$0xff]
  %v64 = vld [vmem:[%s1 + $0xf0] sm:$0xff]
  %v65 = vld [vmem:[%s1 + $0xf8] sm:$0xff]
  %v66 = vld [vmem:[#allocation2] sm:$0xff]
  %v67 = vld [vmem:[#allocation2 + $0x8] sm:$0xff]
  %v68 = vpack.c.bf16 %v67, %v66
  %v69 = vld [vmem:[%s2] sm:$0xff]
  %v70 = vld [vmem:[%s2 + $0x8] sm:$0xff]
  %v71 = vld [vmem:[%s2 + $0x10] sm:$0xff]
  %v72 = vld [vmem:[%s2 + $0x18] sm:$0xff]
  %v73 = vld [vmem:[%s2 + $0x20] sm:$0xff]
  %v74 = vld [vmem:[%s2 + $0x28] sm:$0xff]
  %v75 = vld [vmem:[%s2 + $0x30] sm:$0xff]
  %v76 = vld [vmem:[%s2 + $0x38] sm:$0xff]
  %v77 = vld [vmem:[%s2 + $0x40] sm:$0xff]
  %v78 = vld [vmem:[%s2 + $0x48] sm:$0xff]
  %v79 = vld [vmem:[%s2 + $0x50] sm:$0xff]
  %v80 = vld [vmem:[%s2 + $0x58] sm:$0xff]
  %v81 = vld [vmem:[%s2 + $0x60] sm:$0xff]
  %v82 = vld [vmem:[%s2 + $0x68] sm:$0xff]
  %v83 = vld [vmem:[%s2 + $0x70] sm:$0xff]
  %v84 = vld [vmem:[%s2 + $0x78] sm:$0xff]
  %v85 = vld [vmem:[%s2 + $0x80] sm:$0xff]
  %v86 = vld [vmem:[%s2 + $0x88] sm:$0xff]
  %v87 = vld [vmem:[%s2 + $0x90] sm:$0xff]
  %v88 = vld [vmem:[%s2 + $0x98] sm:$0xff]
  %v89 = vld [vmem:[%s2 + $0xa0] sm:$0xff]
  %v90 = vld [vmem:[%s2 + $0xa8] sm:$0xff]
  %v91 = vld [vmem:[%s2 + $0xb0] sm:$0xff]
  %v92 = vld [vmem:[%s2 + $0xb8] sm:$0xff]
  %v93 = vld [vmem:[%s2 + $0xc0] sm:$0xff]
  %v94 = vld [vmem:[%s2 + $0xc8] sm:$0xff]
  %v95 = vld [vmem:[%s2 + $0xd0] sm:$0xff]
  %v96 = vld [vmem:[%s2 + $0xd8] sm:$0xff]
  %v97 = vld [vmem:[%s2 + $0xe0] sm:$0xff]
  %v98 = vld [vmem:[%s2 + $0xe8] sm:$0xff]
  %v99 = vld [vmem:[%s2 + $0xf0] sm:$0xff]
  %v100 = vld [vmem:[%s2 + $0xf8] sm:$0xff]
  %v133 = vunpack.c.l.b16 %v69
  %v134 = vunpack.c.h.b16 %v69
  %v135 = vunpack.c.l.b16 %v70
  %v136 = vunpack.c.h.b16 %v70
  %v137 = vunpack.c.l.b16 %v71
  %v138 = vunpack.c.h.b16 %v71
  %v139 = vunpack.c.l.b16 %v72
  %v140 = vunpack.c.h.b16 %v72
  %v141 = vunpack.c.l.b16 %v73
  %v142 = vunpack.c.h.b16 %v73
  %v143 = vunpack.c.l.b16 %v74
  %v144 = vunpack.c.h.b16 %v74
  %v145 = vunpack.c.l.b16 %v75
  %v146 = vunpack.c.h.b16 %v75
  %v147 = vunpack.c.l.b16 %v76
  %v148 = vunpack.c.h.b16 %v76
  %v149 = vunpack.c.l.b16 %v77
  %v150 = vunpack.c.h.b16 %v77
  %v151 = vunpack.c.l.b16 %v78
  %v152 = vunpack.c.h.b16 %v78
  %v153 = vunpack.c.l.b16 %v79
  %v154 = vunpack.c.h.b16 %v79
  %v155 = vunpack.c.l.b16 %v80
  %v156 = vunpack.c.h.b16 %v80
  %v157 = vunpack.c.l.b16 %v81
  %v158 = vunpack.c.h.b16 %v81
  %v159 = vunpack.c.l.b16 %v82
  %v160 = vunpack.c.h.b16 %v82
  %v161 = vunpack.c.l.b16 %v83
  %v162 = vunpack.c.h.b16 %v83
  %v163 = vunpack.c.l.b16 %v84
  %v164 = vunpack.c.h.b16 %v84
  %v165 = vunpack.c.l.b16 %v85
  %v166 = vunpack.c.h.b16 %v85
  %v167 = vunpack.c.l.b16 %v86
  %v168 = vunpack.c.h.b16 %v86
  %v169 = vunpack.c.l.b16 %v87
  %v170 = vunpack.c.h.b16 %v87
  %v171 = vunpack.c.l.b16 %v88
  %v172 = vunpack.c.h.b16 %v88
  %v173 = vunpack.c.l.b16 %v89
  %v174 = vunpack.c.h.b16 %v89
  %v175 = vunpack.c.l.b16 %v90
  %v176 = vunpack.c.h.b16 %v90
  %v177 = vunpack.c.l.b16 %v91
  %v178 = vunpack.c.h.b16 %v91
  %v179 = vunpack.c.l.b16 %v92
  %v180 = vunpack.c.h.b16 %v92
  %v181 = vunpack.c.l.b16 %v93
  %v182 = vunpack.c.h.b16 %v93
  %v183 = vunpack.c.l.b16 %v94
  %v184 = vunpack.c.h.b16 %v94
  %v185 = vunpack.c.l.b16 %v95
  %v186 = vunpack.c.h.b16 %v95
  %v187 = vunpack.c.l.b16 %v96
  %v188 = vunpack.c.h.b16 %v96
  %v189 = vunpack.c.l.b16 %v97
  %v190 = vunpack.c.h.b16 %v97
  %v191 = vunpack.c.l.b16 %v98
  %v192 = vunpack.c.h.b16 %v98
  %v193 = vunpack.c.l.b16 %v99
  %v194 = vunpack.c.h.b16 %v99
  %v195 = vunpack.c.l.b16 %v100
  %v196 = vunpack.c.h.b16 %v100
  %v197 = vpack.c.b16 %v137, %v133
  %v198 = vpack.c.b16 %v138, %v134
  %v199 = vpack.c.b16 %v139, %v135
  %v200 = vpack.c.b16 %v140, %v136
  %v201 = vpack.c.b16 %v145, %v141
  %v202 = vpack.c.b16 %v146, %v142
  %v203 = vpack.c.b16 %v147, %v143
  %v204 = vpack.c.b16 %v148, %v144
  %v205 = vpack.c.b16 %v153, %v149
  %v206 = vpack.c.b16 %v154, %v150
  %v207 = vpack.c.b16 %v155, %v151
  %v208 = vpack.c.b16 %v156, %v152
  %v209 = vpack.c.b16 %v161, %v157
  %v210 = vpack.c.b16 %v162, %v158
  %v211 = vpack.c.b16 %v163, %v159
  %v212 = vpack.c.b16 %v164, %v160
  %v213 = vpack.c.b16 %v169, %v165
  %v214 = vpack.c.b16 %v170, %v166
  %v215 = vpack.c.b16 %v171, %v167
  %v216 = vpack.c.b16 %v172, %v168
  %v217 = vpack.c.b16 %v177, %v173
  %v218 = vpack.c.b16 %v178, %v174
  %v219 = vpack.c.b16 %v179, %v175
  %v220 = vpack.c.b16 %v180, %v176
  %v221 = vpack.c.b16 %v185, %v181
  %v222 = vpack.c.b16 %v186, %v182
  %v223 = vpack.c.b16 %v187, %v183
  %v224 = vpack.c.b16 %v188, %v184
  %v225 = vpack.c.b16 %v193, %v189
  %v226 = vpack.c.b16 %v194, %v190
  %v227 = vpack.c.b16 %v195, %v191
  %v228 = vpack.c.b16 %v196, %v192
  %261 = vmatprep.subr.bf16.mxu0 %v198
  %262 = vmatpush1.bf16.msra.mxu0 %v197
  %263 = vmatprep.subr.bf16.mxu0 %v202
  %264 = vmatpush1.bf16.msra.mxu0 %v201
  %265 = vmatprep.subr.bf16.mxu0 %v206
  %266 = vmatpush1.bf16.msra.mxu0 %v205
  %267 = vmatprep.subr.bf16.mxu0 %v210
  %268 = vmatpush1.bf16.msra.mxu0 %v209
  %269 = vmatprep.subr.bf16.mxu0 %v214
  %270 = vmatpush1.bf16.msra.mxu0 %v213
  %271 = vmatprep.subr.bf16.mxu0 %v218
  %272 = vmatpush1.bf16.msra.mxu0 %v217
  %273 = vmatprep.subr.bf16.mxu0 %v222
  %274 = vmatpush1.bf16.msra.mxu0 %v221
  %275 = vmatprep.subr.bf16.mxu0 %v226
  %276 = vmatpush1.bf16.msra.mxu0 %v225
  %277 = vmatprep.subr.bf16.mxu0 0
  %278 = vmatpush1.bf16.msra.mxu0 0
  %279 = vmatprep.subr.bf16.mxu0 0
  %280 = vmatpush1.bf16.msra.mxu0 0
  %281 = vmatprep.subr.bf16.mxu0 0
  %282 = vmatpush1.bf16.msra.mxu0 0
  %283 = vmatprep.subr.bf16.mxu0 0
  %284 = vmatpush1.bf16.msra.mxu0 0
  %285 = vmatprep.subr.bf16.mxu0 0
  %286 = vmatpush1.bf16.msra.mxu0 0
  %287 = vmatprep.subr.bf16.mxu0 0
  %288 = vmatpush1.bf16.msra.mxu0 0
  %289 = vmatprep.subr.bf16.mxu0 0
  %290 = vmatpush1.bf16.msra.mxu0 0
  %291 = vmatprep.subr.bf16.mxu0 0
  %292 = vmatpush1.bf16.msra.mxu0 0
  %293 = vmatprep.mubr.bf16.mxu0 0
  %294 = vmatmul.mubr.bf16.gmra.mrb[0].mxu0 %v68
  %v295 = vpop.f32.mrb[0].mxu0
  %v296 = vadd.f32 0.0, %v295
  %v297 = vpop.f32.mrb[0].mxu0
  %v298 = vadd.f32 0.0, %v297
  %v299 = vpop.f32.mrb[0].mxu0
  %v300 = vadd.f32 0.0, %v299
  %v301 = vpop.f32.mrb[0].mxu0
  %v302 = vadd.f32 0.0, %v301
  %303 = vdwg.mxu0
  %304 = vmatprep.subr.bf16.mxu0 %v200
  %305 = vmatpush1.bf16.msra.mxu0 %v199
  %306 = vmatprep.subr.bf16.mxu0 %v204
  %307 = vmatpush1.bf16.msra.mxu0 %v203
  %308 = vmatprep.subr.bf16.mxu0 %v208
  %309 = vmatpush1.bf16.msra.mxu0 %v207
  %310 = vmatprep.subr.bf16.mxu0 %v212
  %311 = vmatpush1.bf16.msra.mxu0 %v211
  %312 = vmatprep.subr.bf16.mxu0 %v216
  %313 = vmatpush1.bf16.msra.mxu0 %v215
  %314 = vmatprep.subr.bf16.mxu0 %v220
  %315 = vmatpush1.bf16.msra.mxu0 %v219
  %316 = vmatprep.subr.bf16.mxu0 %v224
  %317 = vmatpush1.bf16.msra.mxu0 %v223
  %318 = vmatprep.subr.bf16.mxu0 %v228
  %319 = vmatpush1.bf16.msra.mxu0 %v227
  %320 = vmatprep.subr.bf16.mxu0 0
  %321 = vmatpush1.bf16.msra.mxu0 0
  %322 = vmatprep.subr.bf16.mxu0 0
  %323 = vmatpush1.bf16.msra.mxu0 0
  %324 = vmatprep.subr.bf16.mxu0 0
  %325 = vmatpush1.bf16.msra.mxu0 0
  %326 = vmatprep.subr.bf16.mxu0 0
  %327 = vmatpush1.bf16.msra.mxu0 0
  %328 = vmatprep.subr.bf16.mxu0 0
  %329 = vmatpush1.bf16.msra.mxu0 0
  %330 = vmatprep.subr.bf16.mxu0 0
  %331 = vmatpush1.bf16.msra.mxu0 0
  %332 = vmatprep.subr.bf16.mxu0 0
  %333 = vmatpush1.bf16.msra.mxu0 0
  %334 = vmatprep.subr.bf16.mxu0 0
  %335 = vmatpush1.bf16.msra.mxu0 0
  %336 = vmatprep.mubr.bf16.mxu0 0
  %337 = vmatmul.mubr.bf16.gmra.mrb[0].mxu0 %v68
  %v338 = vpop.f32.mrb[0].mxu0
  %v339 = vadd.f32 0.0, %v338
  %v340 = vpop.f32.mrb[0].mxu0
  %v341 = vadd.f32 0.0, %v340
  %v342 = vpop.f32.mrb[0].mxu0
  %v343 = vadd.f32 0.0, %v342
  %v344 = vpop.f32.mrb[0].mxu0
  %v345 = vadd.f32 0.0, %v344
  %346 = vdwg.mxu0
  %v349 = vunpack.c.l.b16 %v32
  %v350 = vunpack.c.l.b16 %v33
  %v351 = vpack.c.b16 %v350, %v349
  %v385 = vunpack.c.l.b16 %v34
  %v386 = vunpack.c.h.b16 %v34
  %v387 = vunpack.c.l.b16 %v35
  %v388 = vunpack.c.h.b16 %v35
  %v389 = vunpack.c.l.b16 %v36
  %v390 = vunpack.c.h.b16 %v36
  %v391 = vunpack.c.l.b16 %v37
  %v392 = vunpack.c.h.b16 %v37
  %v393 = vunpack.c.l.b16 %v38
  %v394 = vunpack.c.h.b16 %v38
  %v395 = vunpack.c.l.b16 %v39
  %v396 = vunpack.c.h.b16 %v39
  %v397 = vunpack.c.l.b16 %v40
  %v398 = vunpack.c.h.b16 %v40
  %v399 = vunpack.c.l.b16 %v41
  %v400 = vunpack.c.h.b16 %v41
  %v401 = vunpack.c.l.b16 %v42
  %v402 = vunpack.c.h.b16 %v42
  %v403 = vunpack.c.l.b16 %v43
  %v404 = vunpack.c.h.b16 %v43
  %v405 = vunpack.c.l.b16 %v44
  %v406 = vunpack.c.h.b16 %v44
  %v407 = vunpack.c.l.b16 %v45
  %v408 = vunpack.c.h.b16 %v45
  %v409 = vunpack.c.l.b16 %v46
  %v410 = vunpack.c.h.b16 %v46
  %v411 = vunpack.c.l.b16 %v47
  %v412 = vunpack.c.h.b16 %v47
  %v413 = vunpack.c.l.b16 %v48
  %v414 = vunpack.c.h.b16 %v48
  %v415 = vunpack.c.l.b16 %v49
  %v416 = vunpack.c.h.b16 %v49
  %v417 = vunpack.c.l.b16 %v50
  %v418 = vunpack.c.h.b16 %v50
  %v419 = vunpack.c.l.b16 %v51
  %v420 = vunpack.c.h.b16 %v51
  %v421 = vunpack.c.l.b16 %v52
  %v422 = vunpack.c.h.b16 %v52
  %v423 = vunpack.c.l.b16 %v53
  %v424 = vunpack.c.h.b16 %v53
  %v425 = vunpack.c.l.b16 %v54
  %v426 = vunpack.c.h.b16 %v54
  %v427 = vunpack.c.l.b16 %v55
  %v428 = vunpack.c.h.b16 %v55
  %v429 = vunpack.c.l.b16 %v56
  %v430 = vunpack.c.h.b16 %v56
  %v431 = vunpack.c.l.b16 %v57
  %v432 = vunpack.c.h.b16 %v57
  %v433 = vunpack.c.l.b16 %v58
  %v434 = vunpack.c.h.b16 %v58
  %v435 = vunpack.c.l.b16 %v59
  %v436 = vunpack.c.h.b16 %v59
  %v437 = vunpack.c.l.b16 %v60
  %v438 = vunpack.c.h.b16 %v60
  %v439 = vunpack.c.l.b16 %v61
  %v440 = vunpack.c.h.b16 %v61
  %v441 = vunpack.c.l.b16 %v62
  %v442 = vunpack.c.h.b16 %v62
  %v443 = vunpack.c.l.b16 %v63
  %v444 = vunpack.c.h.b16 %v63
  %v445 = vunpack.c.l.b16 %v64
  %v446 = vunpack.c.h.b16 %v64
  %v447 = vunpack.c.l.b16 %v65
  %v448 = vunpack.c.h.b16 %v65
  %v449 = vpack.c.b16 %v389, %v385
  %v450 = vpack.c.b16 %v390, %v386
  %v451 = vpack.c.b16 %v391, %v387
  %v452 = vpack.c.b16 %v392, %v388
  %v453 = vpack.c.b16 %v397, %v393
  %v454 = vpack.c.b16 %v398, %v394
  %v455 = vpack.c.b16 %v399, %v395
  %v456 = vpack.c.b16 %v400, %v396
  %v457 = vpack.c.b16 %v405, %v401
  %v458 = vpack.c.b16 %v406, %v402
  %v459 = vpack.c.b16 %v407, %v403
  %v460 = vpack.c.b16 %v408, %v404
  %v461 = vpack.c.b16 %v413, %v409
  %v462 = vpack.c.b16 %v414, %v410
  %v463 = vpack.c.b16 %v415, %v411
  %v464 = vpack.c.b16 %v416, %v412
  %v465 = vpack.c.b16 %v421, %v417
  %v466 = vpack.c.b16 %v422, %v418
  %v467 = vpack.c.b16 %v423, %v419
  %v468 = vpack.c.b16 %v424, %v420
  %v469 = vpack.c.b16 %v429, %v425
  %v470 = vpack.c.b16 %v430, %v426
  %v471 = vpack.c.b16 %v431, %v427
  %v472 = vpack.c.b16 %v432, %v428
  %v473 = vpack.c.b16 %v437, %v433
  %v474 = vpack.c.b16 %v438, %v434
  %v475 = vpack.c.b16 %v439, %v435
  %v476 = vpack.c.b16 %v440, %v436
  %v477 = vpack.c.b16 %v445, %v441
  %v478 = vpack.c.b16 %v446, %v442
  %v479 = vpack.c.b16 %v447, %v443
  %v480 = vpack.c.b16 %v448, %v444
  %513 = vmatprep.subr.bf16.mxu0 %v450
  %514 = vmatpush1.bf16.msra.mxu0 %v449
  %515 = vmatprep.subr.bf16.mxu0 %v454
  %516 = vmatpush1.bf16.msra.mxu0 %v453
  %517 = vmatprep.subr.bf16.mxu0 %v458
  %518 = vmatpush1.bf16.msra.mxu0 %v457
  %519 = vmatprep.subr.bf16.mxu0 %v462
  %520 = vmatpush1.bf16.msra.mxu0 %v461
  %521 = vmatprep.subr.bf16.mxu0 %v466
  %522 = vmatpush1.bf16.msra.mxu0 %v465
  %523 = vmatprep.subr.bf16.mxu0 %v470
  %524 = vmatpush1.bf16.msra.mxu0 %v469
  %525 = vmatprep.subr.bf16.mxu0 %v474
  %526 = vmatpush1.bf16.msra.mxu0 %v473
  %527 = vmatprep.subr.bf16.mxu0 %v478
  %528 = vmatpush1.bf16.msra.mxu0 %v477
  %529 = vmatprep.subr.bf16.mxu0 0
  %530 = vmatpush1.bf16.msra.mxu0 0
  %531 = vmatprep.subr.bf16.mxu0 0
  %532 = vmatpush1.bf16.msra.mxu0 0
  %533 = vmatprep.subr.bf16.mxu0 0
  %534 = vmatpush1.bf16.msra.mxu0 0
  %535 = vmatprep.subr.bf16.mxu0 0
  %536 = vmatpush1.bf16.msra.mxu0 0
  %537 = vmatprep.subr.bf16.mxu0 0
  %538 = vmatpush1.bf16.msra.mxu0 0
  %539 = vmatprep.subr.bf16.mxu0 0
  %540 = vmatpush1.bf16.msra.mxu0 0
  %541 = vmatprep.subr.bf16.mxu0 0
  %542 = vmatpush1.bf16.msra.mxu0 0
  %543 = vmatprep.subr.bf16.mxu0 0
  %544 = vmatpush1.bf16.msra.mxu0 0
  %545 = vmatprep.mubr.bf16.mxu0 0
  %546 = vmatmul.mubr.bf16.gmra.mrb[0].mxu0 %v351
  %v547 = vpop.f32.mrb[0].mxu0
  %v548 = vadd.f32 %v296, %v547
  %v549 = vpop.f32.mrb[0].mxu0
  %v550 = vadd.f32 %v298, %v549
  %v551 = vpop.f32.mrb[0].mxu0
  %v552 = vadd.f32 %v300, %v551
  %v553 = vpop.f32.mrb[0].mxu0
  %v554 = vadd.f32 %v302, %v553
  %555 = vdwg.mxu0
  %556 = vmatprep.subr.bf16.mxu0 %v452
  %557 = vmatpush1.bf16.msra.mxu0 %v451
  %558 = vmatprep.subr.bf16.mxu0 %v456
  %559 = vmatpush1.bf16.msra.mxu0 %v455
  %560 = vmatprep.subr.bf16.mxu0 %v460
  %561 = vmatpush1.bf16.msra.mxu0 %v459
  %562 = vmatprep.subr.bf16.mxu0 %v464
  %563 = vmatpush1.bf16.msra.mxu0 %v463
  %564 = vmatprep.subr.bf16.mxu0 %v468
  %565 = vmatpush1.bf16.msra.mxu0 %v467
  %566 = vmatprep.subr.bf16.mxu0 %v472
  %567 = vmatpush1.bf16.msra.mxu0 %v471
  %568 = vmatprep.subr.bf16.mxu0 %v476
  %569 = vmatpush1.bf16.msra.mxu0 %v475
  %570 = vmatprep.subr.bf16.mxu0 %v480
  %571 = vmatpush1.bf16.msra.mxu0 %v479
  %572 = vmatprep.subr.bf16.mxu0 0
  %573 = vmatpush1.bf16.msra.mxu0 0
  %574 = vmatprep.subr.bf16.mxu0 0
  %575 = vmatpush1.bf16.msra.mxu0 0
  %576 = vmatprep.subr.bf16.mxu0 0
  %577 = vmatpush1.bf16.msra.mxu0 0
  %578 = vmatprep.subr.bf16.mxu0 0
  %579 = vmatpush1.bf16.msra.mxu0 0
  %580 = vmatprep.subr.bf16.mxu0 0
  %581 = vmatpush1.bf16.msra.mxu0 0
  %582 = vmatprep.subr.bf16.mxu0 0
  %583 = vmatpush1.bf16.msra.mxu0 0
  %584 = vmatprep.subr.bf16.mxu0 0
  %585 = vmatpush1.bf16.msra.mxu0 0
  %586 = vmatprep.subr.bf16.mxu0 0
  %587 = vmatpush1.bf16.msra.mxu0 0
  %588 = vmatprep.mubr.bf16.mxu0 0
  %589 = vmatmul.mubr.bf16.gmra.mrb[0].mxu0 %v351
  %v590 = vpop.f32.mrb[0].mxu0
  %v591 = vadd.f32 %v339, %v590
  %v592 = vpop.f32.mrb[0].mxu0
  %v593 = vadd.f32 %v341, %v592
  %v594 = vpop.f32.mrb[0].mxu0
  %v595 = vadd.f32 %v343, %v594
  %v596 = vpop.f32.mrb[0].mxu0
  %v597 = vadd.f32 %v345, %v596
  %598 = vdwg.mxu0
  %v599 = vld [vmem:[%s3] sm:$0xf]
  %v601 = vlaneseq
  %v602 = vshrl.u32 %v601, 7
  %v603 = vsub.s32 0, %v602
  %v604 = vrot.slane %v599, %v603
  %v605 = vlaneseq
  %v606 = vshrl.u32 %v605, 7
  %v607 = vsub.s32 1, %v606
  %v608 = vrot.slane %v599, %v607
  %v609 = vlaneseq
  %v610 = vshrl.u32 %v609, 7
  %v611 = vsub.s32 2, %v610
  %v612 = vrot.slane %v599, %v611
  %v613 = vlaneseq
  %v614 = vshrl.u32 %v613, 7
  %v615 = vsub.s32 3, %v614
  %v616 = vrot.slane %v599, %v615
  %v621 = vadd.f32 %v548, %v604
  %v622 = vadd.f32 %v550, %v608
  %v623 = vadd.f32 %v591, %v612
  %v624 = vadd.f32 %v593, %v616
  %v625 = vadd.f32 %v552, %v604
  %v626 = vadd.f32 %v554, %v608
  %v627 = vadd.f32 %v595, %v612
  %v628 = vadd.f32 %v597, %v616
  %v629 = vxor.u32 %v621, 2147483648
  %v630 = vxor.u32 %v622, 2147483648
  %v631 = vxor.u32 %v623, 2147483648
  %v632 = vxor.u32 %v625, 2147483648
  %v633 = vxor.u32 %v626, 2147483648
  %v634 = vxor.u32 %v627, 2147483648
  %v635 = vmul.f32 %v629, 1.442695
  %v636 = vpow.pop %v635
  %v637 = vmul.f32 %v630, 1.442695
  %v638 = vpow.pop %v637
  %v639 = vmul.f32 %v631, 1.442695
  %v640 = vpow.pop %v639
  %v641 = vmul.f32 %v632, 1.442695
  %v642 = vpow.pop %v641
  %v643 = vmul.f32 %v633, 1.442695
  %v644 = vpow.pop %v643
  %v645 = vmul.f32 %v634, 1.442695
  %v646 = vpow.pop %v645
  %v647 = vadd.f32 %v636, 1.0
  %v648 = vadd.f32 %v638, 1.0
  %v649 = vadd.f32 %v640, 1.0
  %v650 = vadd.f32 %v642, 1.0
  %v651 = vadd.f32 %v644, 1.0
  %v652 = vadd.f32 %v646, 1.0
  %v653 = vrcp.pop %v647
  %v654 = vmul.f32 1.0, %v653
  %v655 = vrcp.pop %v648
  %v656 = vmul.f32 1.0, %v655
  %v657 = vrcp.pop %v649
  %v658 = vmul.f32 1.0, %v657
  %v659 = vrcp.pop %v650
  %v660 = vmul.f32 1.0, %v659
  %v661 = vrcp.pop %v651
  %v662 = vmul.f32 1.0, %v661
  %v663 = vrcp.pop %v652
  %v664 = vmul.f32 1.0, %v663
  %v665 = vtanh.pop %v624
  %v666 = vtanh.pop %v628
  %v667 = vld [vmem:[#allocation3] sm:$0xff]
  %v668 = vld [vmem:[#allocation3 + $0x8] sm:$0xff]
  %v669 = vmul.f32 %v656, %v667
  %v670 = vmul.f32 %v662, %v668
  %v671 = vmul.f32 %v654, %v665
  %v672 = vmul.f32 %v660, %v666
  %v673 = vadd.f32 %v669, %v671
  %v674 = vadd.f32 %v670, %v672
  %v675 = vtanh.pop %v673
  %v676 = vtanh.pop %v674
  %v677 = vmul.f32 %v658, %v675
  %v678 = vmul.f32 %v664, %v676
  %679 = vst [vmem:[#allocation3] sm:$0xff] %v673
  %680 = vst [vmem:[#allocation3 + $0x8] sm:$0xff] %v674
  %681 = vst [vmem:[#allocation2] sm:$0xff] %v677
  %682 = vst [vmem:[#allocation2 + $0x8] sm:$0xff] %v678
  %s683 = scalar_lea.vmem %s0, 8
  %v684 = vld [vmem:[%s683] sm:$0xf]
  %v685 = vld [vmem:[%s683 + $0x4] sm:$0xf]
  %v686 = vld [vmem:[%s1] sm:$0xff]
  %v687 = vld [vmem:[%s1 + $0x8] sm:$0xff]
  %v688 = vld [vmem:[%s1 + $0x10] sm:$0xff]
  %v689 = vld [vmem:[%s1 + $0x18] sm:$0xff]
  %v690 = vld [vmem:[%s1 + $0x20] sm:$0xff]
  %v691 = vld [vmem:[%s1 + $0x28] sm:$0xff]
  %v692 = vld [vmem:[%s1 + $0x30] sm:$0xff]
  %v693 = vld [vmem:[%s1 + $0x38] sm:$0xff]
  %v694 = vld [vmem:[%s1 + $0x40] sm:$0xff]
  %v695 = vld [vmem:[%s1 + $0x48] sm:$0xff]
  %v696 = vld [vmem:[%s1 + $0x50] sm:$0xff]
  %v697 = vld [vmem:[%s1 + $0x58] sm:$0xff]
  %v698 = vld [vmem:[%s1 + $0x60] sm:$0xff]
  %v699 = vld [vmem:[%s1 + $0x68] sm:$0xff]
  %v700 = vld [vmem:[%s1 + $0x70] sm:$0xff]
  %v701 = vld [vmem:[%s1 + $0x78] sm:$0xff]
  %v702 = vld [vmem:[%s1 + $0x80] sm:$0xff]
  %v703 = vld [vmem:[%s1 + $0x88] sm:$0xff]
  %v704 = vld [vmem:[%s1 + $0x90] sm:$0xff]
  %v705 = vld [vmem:[%s1 + $0x98] sm:$0xff]
  %v706 = vld [vmem:[%s1 + $0xa0] sm:$0xff]
  %v707 = vld [vmem:[%s1 + $0xa8] sm:$0xff]
  %v708 = vld [vmem:[%s1 + $0xb0] sm:$0xff]
  %v709 = vld [vmem:[%s1 + $0xb8] sm:$0xff]
  %v710 = vld [vmem:[%s1 + $0xc0] sm:$0xff]
  %v711 = vld [vmem:[%s1 + $0xc8] sm:$0xff]
  %v712 = vld [vmem:[%s1 + $0xd0] sm:$0xff]
  %v713 = vld [vmem:[%s1 + $0xd8] sm:$0xff]
  %v714 = vld [vmem:[%s1 + $0xe0] sm:$0xff]
  %v715 = vld [vmem:[%s1 + $0xe8] sm:$0xff]
  %v716 = vld [vmem:[%s1 + $0xf0] sm:$0xff]
  %v717 = vld [vmem:[%s1 + $0xf8] sm:$0xff]
  %v718 = vld [vmem:[#allocation2] sm:$0xff]
  %v719 = vld [vmem:[#allocation2 + $0x8] sm:$0xff]
  %v720 = vpack.c.bf16 %v719, %v718
  %v721 = vld [vmem:[%s2] sm:$0xff]
  %v722 = vld [vmem:[%s2 + $0x8] sm:$0xff]
  %v723 = vld [vmem:[%s2 + $0x10] sm:$0xff]
  %v724 = vld [vmem:[%s2 + $0x18] sm:$0xff]
  %v725 = vld [vmem:[%s2 + $0x20] sm:$0xff]
  %v726 = vld [vmem:[%s2 + $0x28] sm:$0xff]
  %v727 = vld [vmem:[%s2 + $0x30] sm:$0xff]
  %v728 = vld [vmem:[%s2 + $0x38] sm:$0xff]
  %v729 = vld [vmem:[%s2 + $0x40] sm:$0xff]
  %v730 = vld [vmem:[%s2 + $0x48] sm:$0xff]
  %v731 = vld [vmem:[%s2 + $0x50] sm:$0xff]
  %v732 = vld [vmem:[%s2 + $0x58] sm:$0xff]
  %v733 = vld [vmem:[%s2 + $0x60] sm:$0xff]
  %v734 = vld [vmem:[%s2 + $0x68] sm:$0xff]
  %v735 = vld [vmem:[%s2 + $0x70] sm:$0xff]
  %v736 = vld [vmem:[%s2 + $0x78] sm:$0xff]
  %v737 = vld [vmem:[%s2 + $0x80] sm:$0xff]
  %v738 = vld [vmem:[%s2 + $0x88] sm:$0xff]
  %v739 = vld [vmem:[%s2 + $0x90] sm:$0xff]
  %v740 = vld [vmem:[%s2 + $0x98] sm:$0xff]
  %v741 = vld [vmem:[%s2 + $0xa0] sm:$0xff]
  %v742 = vld [vmem:[%s2 + $0xa8] sm:$0xff]
  %v743 = vld [vmem:[%s2 + $0xb0] sm:$0xff]
  %v744 = vld [vmem:[%s2 + $0xb8] sm:$0xff]
  %v745 = vld [vmem:[%s2 + $0xc0] sm:$0xff]
  %v746 = vld [vmem:[%s2 + $0xc8] sm:$0xff]
  %v747 = vld [vmem:[%s2 + $0xd0] sm:$0xff]
  %v748 = vld [vmem:[%s2 + $0xd8] sm:$0xff]
  %v749 = vld [vmem:[%s2 + $0xe0] sm:$0xff]
  %v750 = vld [vmem:[%s2 + $0xe8] sm:$0xff]
  %v751 = vld [vmem:[%s2 + $0xf0] sm:$0xff]
  %v752 = vld [vmem:[%s2 + $0xf8] sm:$0xff]
  %v785 = vunpack.c.l.b16 %v721
  %v786 = vunpack.c.h.b16 %v721
  %v787 = vunpack.c.l.b16 %v722
  %v788 = vunpack.c.h.b16 %v722
  %v789 = vunpack.c.l.b16 %v723
  %v790 = vunpack.c.h.b16 %v723
  %v791 = vunpack.c.l.b16 %v724
  %v792 = vunpack.c.h.b16 %v724
  %v793 = vunpack.c.l.b16 %v725
  %v794 = vunpack.c.h.b16 %v725
  %v795 = vunpack.c.l.b16 %v726
  %v796 = vunpack.c.h.b16 %v726
  %v797 = vunpack.c.l.b16 %v727
  %v798 = vunpack.c.h.b16 %v727
  %v799 = vunpack.c.l.b16 %v728
  %v800 = vunpack.c.h.b16 %v728
  %v801 = vunpack.c.l.b16 %v729
  %v802 = vunpack.c.h.b16 %v729
  %v803 = vunpack.c.l.b16 %v730
  %v804 = vunpack.c.h.b16 %v730
  %v805 = vunpack.c.l.b16 %v731
  %v806 = vunpack.c.h.b16 %v731
  %v807 = vunpack.c.l.b16 %v732
  %v808 = vunpack.c.h.b16 %v732
  %v809 = vunpack.c.l.b16 %v733
  %v810 = vunpack.c.h.b16 %v733
  %v811 = vunpack.c.l.b16 %v734
  %v812 = vunpack.c.h.b16 %v734
  %v813 = vunpack.c.l.b16 %v735
  %v814 = vunpack.c.h.b16 %v735
  %v815 = vunpack.c.l.b16 %v736
  %v816 = vunpack.c.h.b16 %v736
  %v817 = vunpack.c.l.b16 %v737
  %v818 = vunpack.c.h.b16 %v737
  %v819 = vunpack.c.l.b16 %v738
  %v820 = vunpack.c.h.b16 %v738
  %v821 = vunpack.c.l.b16 %v739
  %v822 = vunpack.c.h.b16 %v739
  %v823 = vunpack.c.l.b16 %v740
  %v824 = vunpack.c.h.b16 %v740
  %v825 = vunpack.c.l.b16 %v741
  %v826 = vunpack.c.h.b16 %v741
  %v827 = vunpack.c.l.b16 %v742
  %v828 = vunpack.c.h.b16 %v742
  %v829 = vunpack.c.l.b16 %v743
  %v830 = vunpack.c.h.b16 %v743
  %v831 = vunpack.c.l.b16 %v744
  %v832 = vunpack.c.h.b16 %v744
  %v833 = vunpack.c.l.b16 %v745
  %v834 = vunpack.c.h.b16 %v745
  %v835 = vunpack.c.l.b16 %v746
  %v836 = vunpack.c.h.b16 %v746
  %v837 = vunpack.c.l.b16 %v747
  %v838 = vunpack.c.h.b16 %v747
  %v839 = vunpack.c.l.b16 %v748
  %v840 = vunpack.c.h.b16 %v748
  %v841 = vunpack.c.l.b16 %v749
  %v842 = vunpack.c.h.b16 %v749
  %v843 = vunpack.c.l.b16 %v750
  %v844 = vunpack.c.h.b16 %v750
  %v845 = vunpack.c.l.b16 %v751
  %v846 = vunpack.c.h.b16 %v751
  %v847 = vunpack.c.l.b16 %v752
  %v848 = vunpack.c.h.b16 %v752
  %v849 = vpack.c.b16 %v789, %v785
  %v850 = vpack.c.b16 %v790, %v786
  %v851 = vpack.c.b16 %v791, %v787
  %v852 = vpack.c.b16 %v792, %v788
  %v853 = vpack.c.b16 %v797, %v793
  %v854 = vpack.c.b16 %v798, %v794
  %v855 = vpack.c.b16 %v799, %v795
  %v856 = vpack.c.b16 %v800, %v796
  %v857 = vpack.c.b16 %v805, %v801
  %v858 = vpack.c.b16 %v806, %v802
  %v859 = vpack.c.b16 %v807, %v803
  %v860 = vpack.c.b16 %v808, %v804
  %v861 = vpack.c.b16 %v813, %v809
  %v862 = vpack.c.b16 %v814, %v810
  %v863 = vpack.c.b16 %v815, %v811
  %v864 = vpack.c.b16 %v816, %v812
  %v865 = vpack.c.b16 %v821, %v817
  %v866 = vpack.c.b16 %v822, %v818
  %v867 = vpack.c.b16 %v823, %v819
  %v868 = vpack.c.b16 %v824, %v820
  %v869 = vpack.c.b16 %v829, %v825
  %v870 = vpack.c.b16 %v830, %v826
  %v871 = vpack.c.b16 %v831, %v827
  %v872 = vpack.c.b16 %v832, %v828
  %v873 = vpack.c.b16 %v837, %v833
  %v874 = vpack.c.b16 %v838, %v834
  %v875 = vpack.c.b16 %v839, %v835
  %v876 = vpack.c.b16 %v840, %v836
  %v877 = vpack.c.b16 %v845, %v841
  %v878 = vpack.c.b16 %v846, %v842
  %v879 = vpack.c.b16 %v847, %v843
  %v880 = vpack.c.b16 %v848, %v844
  %913 = vmatprep.subr.bf16.mxu0 %v850
  %914 = vmatpush1.bf16.msra.mxu0 %v849
  %915 = vmatprep.subr.bf16.mxu0 %v854
  %916 = vmatpush1.bf16.msra.mxu0 %v853
  %917 = vmatprep.subr.bf16.mxu0 %v858
  %918 = vmatpush1.bf16.msra.mxu0 %v857
  %919 = vmatprep.subr.bf16.mxu0 %v862
  %920 = vmatpush1.bf16.msra.mxu0 %v861
  %921 = vmatprep.subr.bf16.mxu0 %v866
  %922 = vmatpush1.bf16.msra.mxu0 %v865
  %923 = vmatprep.subr.bf16.mxu0 %v870
  %924 = vmatpush1.bf16.msra.mxu0 %v869
  %925 = vmatprep.subr.bf16.mxu0 %v874
  %926 = vmatpush1.bf16.msra.mxu0 %v873
  %927 = vmatprep.subr.bf16.mxu0 %v878
  %928 = vmatpush1.bf16.msra.mxu0 %v877
  %929 = vmatprep.subr.bf16.mxu0 0
  %930 = vmatpush1.bf16.msra.mxu0 0
  %931 = vmatprep.subr.bf16.mxu0 0
  %932 = vmatpush1.bf16.msra.mxu0 0
  %933 = vmatprep.subr.bf16.mxu0 0
  %934 = vmatpush1.bf16.msra.mxu0 0
  %935 = vmatprep.subr.bf16.mxu0 0
  %936 = vmatpush1.bf16.msra.mxu0 0
  %937 = vmatprep.subr.bf16.mxu0 0
  %938 = vmatpush1.bf16.msra.mxu0 0
  %939 = vmatprep.subr.bf16.mxu0 0
  %940 = vmatpush1.bf16.msra.mxu0 0
  %941 = vmatprep.subr.bf16.mxu0 0
  %942 = vmatpush1.bf16.msra.mxu0 0
  %943 = vmatprep.subr.bf16.mxu0 0
  %944 = vmatpush1.bf16.msra.mxu0 0
  %945 = vmatprep.mubr.bf16.mxu0 0
  %946 = vmatmul.mubr.bf16.gmra.mrb[0].mxu0 %v720
  %v947 = vpop.f32.mrb[0].mxu0
  %v948 = vadd.f32 0.0, %v947
  %v949 = vpop.f32.mrb[0].mxu0
  %v950 = vadd.f32 0.0, %v949
  %v951 = vpop.f32.mrb[0].mxu0
  %v952 = vadd.f32 0.0, %v951
  %v953 = vpop.f32.mrb[0].mxu0
  %v954 = vadd.f32 0.0, %v953
  %955 = vdwg.mxu0
  %956 = vmatprep.subr.bf16.mxu0 %v852
  %957 = vmatpush1.bf16.msra.mxu0 %v851
  %958 = vmatprep.subr.bf16.mxu0 %v856
  %959 = vmatpush1.bf16.msra.mxu0 %v855
  %960 = vmatprep.subr.bf16.mxu0 %v860
  %961 = vmatpush1.bf16.msra.mxu0 %v859
  %962 = vmatprep.subr.bf16.mxu0 %v864
  %963 = vmatpush1.bf16.msra.mxu0 %v863
  %964 = vmatprep.subr.bf16.mxu0 %v868
  %965 = vmatpush1.bf16.msra.mxu0 %v867
  %966 = vmatprep.subr.bf16.mxu0 %v872
  %967 = vmatpush1.bf16.msra.mxu0 %v871
  %968 = vmatprep.subr.bf16.mxu0 %v876
  %969 = vmatpush1.bf16.msra.mxu0 %v875
  %970 = vmatprep.subr.bf16.mxu0 %v880
  %971 = vmatpush1.bf16.msra.mxu0 %v879
  %972 = vmatprep.subr.bf16.mxu0 0
  %973 = vmatpush1.bf16.msra.mxu0 0
  %974 = vmatprep.subr.bf16.mxu0 0
  %975 = vmatpush1.bf16.msra.mxu0 0
  %976 = vmatprep.subr.bf16.mxu0 0
  %977 = vmatpush1.bf16.msra.mxu0 0
  %978 = vmatprep.subr.bf16.mxu0 0
  %979 = vmatpush1.bf16.msra.mxu0 0
  %980 = vmatprep.subr.bf16.mxu0 0
  %981 = vmatpush1.bf16.msra.mxu0 0
  %982 = vmatprep.subr.bf16.mxu0 0
  %983 = vmatpush1.bf16.msra.mxu0 0
  %984 = vmatprep.subr.bf16.mxu0 0
  %985 = vmatpush1.bf16.msra.mxu0 0
  %986 = vmatprep.subr.bf16.mxu0 0
  %987 = vmatpush1.bf16.msra.mxu0 0
  %988 = vmatprep.mubr.bf16.mxu0 0
  %989 = vmatmul.mubr.bf16.gmra.mrb[0].mxu0 %v720
  %v990 = vpop.f32.mrb[0].mxu0
  %v991 = vadd.f32 0.0, %v990
  %v992 = vpop.f32.mrb[0].mxu0
  %v993 = vadd.f32 0.0, %v992
  %v994 = vpop.f32.mrb[0].mxu0
  %v995 = vadd.f32 0.0, %v994
  %v996 = vpop.f32.mrb[0].mxu0
  %v997 = vadd.f32 0.0, %v996
  %998 = vdwg.mxu0
  %v1001 = vunpack.c.l.b16 %v684
  %v1002 = vunpack.c.l.b16 %v685
  %v1003 = vpack.c.b16 %v1002, %v1001
  %v1037 = vunpack.c.l.b16 %v686
  %v1038 = vunpack.c.h.b16 %v686
  %v1039 = vunpack.c.l.b16 %v687
  %v1040 = vunpack.c.h.b16 %v687
  %v1041 = vunpack.c.l.b16 %v688
  %v1042 = vunpack.c.h.b16 %v688
  %v1043 = vunpack.c.l.b16 %v689
  %v1044 = vunpack.c.h.b16 %v689
  %v1045 = vunpack.c.l.b16 %v690
  %v1046 = vunpack.c.h.b16 %v690
  %v1047 = vunpack.c.l.b16 %v691
  %v1048 = vunpack.c.h.b16 %v691
  %v1049 = vunpack.c.l.b16 %v692
  %v1050 = vunpack.c.h.b16 %v692
  %v1051 = vunpack.c.l.b16 %v693
  %v1052 = vunpack.c.h.b16 %v693
  %v1053 = vunpack.c.l.b16 %v694
  %v1054 = vunpack.c.h.b16 %v694
  %v1055 = vunpack.c.l.b16 %v695
  %v1056 = vunpack.c.h.b16 %v695
  %v1057 = vunpack.c.l.b16 %v696
  %v1058 = vunpack.c.h.b16 %v696
  %v1059 = vunpack.c.l.b16 %v697
  %v1060 = vunpack.c.h.b16 %v697
  %v1061 = vunpack.c.l.b16 %v698
  %v1062 = vunpack.c.h.b16 %v698
  %v1063 = vunpack.c.l.b16 %v699
  %v1064 = vunpack.c.h.b16 %v699
  %v1065 = vunpack.c.l.b16 %v700
  %v1066 = vunpack.c.h.b16 %v700
  %v1067 = vunpack.c.l.b16 %v701
  %v1068 = vunpack.c.h.b16 %v701
  %v1069 = vunpack.c.l.b16 %v702
  %v1070 = vunpack.c.h.b16 %v702
  %v1071 = vunpack.c.l.b16 %v703
  %v1072 = vunpack.c.h.b16 %v703
  %v1073 = vunpack.c.l.b16 %v704
  %v1074 = vunpack.c.h.b16 %v704
  %v1075 = vunpack.c.l.b16 %v705
  %v1076 = vunpack.c.h.b16 %v705
  %v1077 = vunpack.c.l.b16 %v706
  %v1078 = vunpack.c.h.b16 %v706
  %v1079 = vunpack.c.l.b16 %v707
  %v1080 = vunpack.c.h.b16 %v707
  %v1081 = vunpack.c.l.b16 %v708
  %v1082 = vunpack.c.h.b16 %v708
  %v1083 = vunpack.c.l.b16 %v709
  %v1084 = vunpack.c.h.b16 %v709
  %v1085 = vunpack.c.l.b16 %v710
  %v1086 = vunpack.c.h.b16 %v710
  %v1087 = vunpack.c.l.b16 %v711
  %v1088 = vunpack.c.h.b16 %v711
  %v1089 = vunpack.c.l.b16 %v712
  %v1090 = vunpack.c.h.b16 %v712
  %v1091 = vunpack.c.l.b16 %v713
  %v1092 = vunpack.c.h.b16 %v713
  %v1093 = vunpack.c.l.b16 %v714
  %v1094 = vunpack.c.h.b16 %v714
  %v1095 = vunpack.c.l.b16 %v715
  %v1096 = vunpack.c.h.b16 %v715
  %v1097 = vunpack.c.l.b16 %v716
  %v1098 = vunpack.c.h.b16 %v716
  %v1099 = vunpack.c.l.b16 %v717
  %v1100 = vunpack.c.h.b16 %v717
  %v1101 = vpack.c.b16 %v1041, %v1037
  %v1102 = vpack.c.b16 %v1042, %v1038
  %v1103 = vpack.c.b16 %v1043, %v1039
  %v1104 = vpack.c.b16 %v1044, %v1040
  %v1105 = vpack.c.b16 %v1049, %v1045
  %v1106 = vpack.c.b16 %v1050, %v1046
  %v1107 = vpack.c.b16 %v1051, %v1047
  %v1108 = vpack.c.b16 %v1052, %v1048
  %v1109 = vpack.c.b16 %v1057, %v1053
  %v1110 = vpack.c.b16 %v1058, %v1054
  %v1111 = vpack.c.b16 %v1059, %v1055
  %v1112 = vpack.c.b16 %v1060, %v1056
  %v1113 = vpack.c.b16 %v1065, %v1061
  %v1114 = vpack.c.b16 %v1066, %v1062
  %v1115 = vpack.c.b16 %v1067, %v1063
  %v1116 = vpack.c.b16 %v1068, %v1064
  %v1117 = vpack.c.b16 %v1073, %v1069
  %v1118 = vpack.c.b16 %v1074, %v1070
  %v1119 = vpack.c.b16 %v1075, %v1071
  %v1120 = vpack.c.b16 %v1076, %v1072
  %v1121 = vpack.c.b16 %v1081, %v1077
  %v1122 = vpack.c.b16 %v1082, %v1078
  %v1123 = vpack.c.b16 %v1083, %v1079
  %v1124 = vpack.c.b16 %v1084, %v1080
  %v1125 = vpack.c.b16 %v1089, %v1085
  %v1126 = vpack.c.b16 %v1090, %v1086
  %v1127 = vpack.c.b16 %v1091, %v1087
  %v1128 = vpack.c.b16 %v1092, %v1088
  %v1129 = vpack.c.b16 %v1097, %v1093
  %v1130 = vpack.c.b16 %v1098, %v1094
  %v1131 = vpack.c.b16 %v1099, %v1095
  %v1132 = vpack.c.b16 %v1100, %v1096
  %1165 = vmatprep.subr.bf16.mxu0 %v1102
  %1166 = vmatpush1.bf16.msra.mxu0 %v1101
  %1167 = vmatprep.subr.bf16.mxu0 %v1106
  %1168 = vmatpush1.bf16.msra.mxu0 %v1105
  %1169 = vmatprep.subr.bf16.mxu0 %v1110
  %1170 = vmatpush1.bf16.msra.mxu0 %v1109
  %1171 = vmatprep.subr.bf16.mxu0 %v1114
  %1172 = vmatpush1.bf16.msra.mxu0 %v1113
  %1173 = vmatprep.subr.bf16.mxu0 %v1118
  %1174 = vmatpush1.bf16.msra.mxu0 %v1117
  %1175 = vmatprep.subr.bf16.mxu0 %v1122
  %1176 = vmatpush1.bf16.msra.mxu0 %v1121
  %1177 = vmatprep.subr.bf16.mxu0 %v1126
  %1178 = vmatpush1.bf16.msra.mxu0 %v1125
  %1179 = vmatprep.subr.bf16.mxu0 %v1130
  %1180 = vmatpush1.bf16.msra.mxu0 %v1129
  %1181 = vmatprep.subr.bf16.mxu0 0
  %1182 = vmatpush1.bf16.msra.mxu0 0
  %1183 = vmatprep.subr.bf16.mxu0 0
  %1184 = vmatpush1.bf16.msra.mxu0 0
  %1185 = vmatprep.subr.bf16.mxu0 0
  %1186 = vmatpush1.bf16.msra.mxu0 0
  %1187 = vmatprep.subr.bf16.mxu0 0
  %1188 = vmatpush1.bf16.msra.mxu0 0
  %1189 = vmatprep.subr.bf16.mxu0 0
  %1190 = vmatpush1.bf16.msra.mxu0 0
  %1191 = vmatprep.subr.bf16.mxu0 0
  %1192 = vmatpush1.bf16.msra.mxu0 0
  %1193 = vmatprep.subr.bf16.mxu0 0
  %1194 = vmatpush1.bf16.msra.mxu0 0
  %1195 = vmatprep.subr.bf16.mxu0 0
  %1196 = vmatpush1.bf16.msra.mxu0 0
  %1197 = vmatprep.mubr.bf16.mxu0 0
  %1198 = vmatmul.mubr.bf16.gmra.mrb[0].mxu0 %v1003
  %v1199 = vpop.f32.mrb[0].mxu0
  %v1200 = vadd.f32 %v948, %v1199
  %v1201 = vpop.f32.mrb[0].mxu0
  %v1202 = vadd.f32 %v950, %v1201
  %v1203 = vpop.f32.mrb[0].mxu0
  %v1204 = vadd.f32 %v952, %v1203
  %v1205 = vpop.f32.mrb[0].mxu0
  %v1206 = vadd.f32 %v954, %v1205
  %1207 = vdwg.mxu0
  %1208 = vmatprep.subr.bf16.mxu0 %v1104
  %1209 = vmatpush1.bf16.msra.mxu0 %v1103
  %1210 = vmatprep.subr.bf16.mxu0 %v1108
  %1211 = vmatpush1.bf16.msra.mxu0 %v1107
  %1212 = vmatprep.subr.bf16.mxu0 %v1112
  %1213 = vmatpush1.bf16.msra.mxu0 %v1111
  %1214 = vmatprep.subr.bf16.mxu0 %v1116
  %1215 = vmatpush1.bf16.msra.mxu0 %v1115
  %1216 = vmatprep.subr.bf16.mxu0 %v1120
  %1217 = vmatpush1.bf16.msra.mxu0 %v1119
  %1218 = vmatprep.subr.bf16.mxu0 %v1124
  %1219 = vmatpush1.bf16.msra.mxu0 %v1123
  %1220 = vmatprep.subr.bf16.mxu0 %v1128
  %1221 = vmatpush1.bf16.msra.mxu0 %v1127
  %1222 = vmatprep.subr.bf16.mxu0 %v1132
  %1223 = vmatpush1.bf16.msra.mxu0 %v1131
  %1224 = vmatprep.subr.bf16.mxu0 0
  %1225 = vmatpush1.bf16.msra.mxu0 0
  %1226 = vmatprep.subr.bf16.mxu0 0
  %1227 = vmatpush1.bf16.msra.mxu0 0
  %1228 = vmatprep.subr.bf16.mxu0 0
  %1229 = vmatpush1.bf16.msra.mxu0 0
  %1230 = vmatprep.subr.bf16.mxu0 0
  %1231 = vmatpush1.bf16.msra.mxu0 0
  %1232 = vmatprep.subr.bf16.mxu0 0
  %1233 = vmatpush1.bf16.msra.mxu0 0
  %1234 = vmatprep.subr.bf16.mxu0 0
  %1235 = vmatpush1.bf16.msra.mxu0 0
  %1236 = vmatprep.subr.bf16.mxu0 0
  %1237 = vmatpush1.bf16.msra.mxu0 0
  %1238 = vmatprep.subr.bf16.mxu0 0
  %1239 = vmatpush1.bf16.msra.mxu0 0
  %1240 = vmatprep.mubr.bf16.mxu0 0
  %1241 = vmatmul.mubr.bf16.gmra.mrb[0].mxu0 %v1003
  %v1242 = vpop.f32.mrb[0].mxu0
  %v1243 = vadd.f32 %v991, %v1242
  %v1244 = vpop.f32.mrb[0].mxu0
  %v1245 = vadd.f32 %v993, %v1244
  %v1246 = vpop.f32.mrb[0].mxu0
  %v1247 = vadd.f32 %v995, %v1246
  %v1248 = vpop.f32.mrb[0].mxu0
  %v1249 = vadd.f32 %v997, %v1248
  %1250 = vdwg.mxu0
  %v1251 = vld [vmem:[%s3] sm:$0xf]
  %v1253 = vlaneseq
  %v1254 = vshrl.u32 %v1253, 7
  %v1255 = vsub.s32 0, %v1254
  %v1256 = vrot.slane %v1251, %v1255
  %v1257 = vlaneseq
  %v1258 = vshrl.u32 %v1257, 7
  %v1259 = vsub.s32 1, %v1258
  %v1260 = vrot.slane %v1251, %v1259
  %v1261 = vlaneseq
  %v1262 = vshrl.u32 %v1261, 7
  %v1263 = vsub.s32 2, %v1262
  %v1264 = vrot.slane %v1251, %v1263
  %v1265 = vlaneseq
  %v1266 = vshrl.u32 %v1265, 7
  %v1267 = vsub.s32 3, %v1266
  %v1268 = vrot.slane %v1251, %v1267
  %v1273 = vadd.f32 %v1200, %v1256
  %v1274 = vadd.f32 %v1202, %v1260
  %v1275 = vadd.f32 %v1243, %v1264
  %v1276 = vadd.f32 %v1245, %v1268
  %v1277 = vadd.f32 %v1204, %v1256
  %v1278 = vadd.f32 %v1206, %v1260
  %v1279 = vadd.f32 %v1247, %v1264
  %v1280 = vadd.f32 %v1249, %v1268
  %v1281 = vxor.u32 %v1273, 2147483648
  %v1282 = vxor.u32 %v1274, 2147483648
  %v1283 = vxor.u32 %v1275, 2147483648
  %v1284 = vxor.u32 %v1277, 2147483648
  %v1285 = vxor.u32 %v1278, 2147483648
  %v1286 = vxor.u32 %v1279, 2147483648
  %v1287 = vmul.f32 %v1281, 1.442695
  %v1288 = vpow.pop %v1287
  %v1289 = vmul.f32 %v1282, 1.442695
  %v1290 = vpow.pop %v1289
  %v1291 = vmul.f32 %v1283, 1.442695
  %v1292 = vpow.pop %v1291
  %v1293 = vmul.f32 %v1284, 1.442695
  %v1294 = vpow.pop %v1293
  %v1295 = vmul.f32 %v1285, 1.442695
  %v1296 = vpow.pop %v1295
  %v1297 = vmul.f32 %v1286, 1.442695
  %v1298 = vpow.pop %v1297
  %v1299 = vadd.f32 %v1288, 1.0
  %v1300 = vadd.f32 %v1290, 1.0
  %v1301 = vadd.f32 %v1292, 1.0
  %v1302 = vadd.f32 %v1294, 1.0
  %v1303 = vadd.f32 %v1296, 1.0
  %v1304 = vadd.f32 %v1298, 1.0
  %v1305 = vrcp.pop %v1299
  %v1306 = vmul.f32 1.0, %v1305
  %v1307 = vrcp.pop %v1300
  %v1308 = vmul.f32 1.0, %v1307
  %v1309 = vrcp.pop %v1301
  %v1310 = vmul.f32 1.0, %v1309
  %v1311 = vrcp.pop %v1302
  %v1312 = vmul.f32 1.0, %v1311
  %v1313 = vrcp.pop %v1303
  %v1314 = vmul.f32 1.0, %v1313
  %v1315 = vrcp.pop %v1304
  %v1316 = vmul.f32 1.0, %v1315
  %v1317 = vtanh.pop %v1276
  %v1318 = vtanh.pop %v1280
  %v1319 = vld [vmem:[#allocation3] sm:$0xff]
  %v1320 = vld [vmem:[#allocation3 + $0x8] sm:$0xff]
  %v1321 = vmul.f32 %v1308, %v1319
  %v1322 = vmul.f32 %v1314, %v1320
  %v1323 = vmul.f32 %v1306, %v1317
  %v1324 = vmul.f32 %v1312, %v1318
  %v1325 = vadd.f32 %v1321, %v1323
  %v1326 = vadd.f32 %v1322, %v1324
  %v1327 = vtanh.pop %v1325
  %v1328 = vtanh.pop %v1326
  %v1329 = vmul.f32 %v1310, %v1327
  %v1330 = vmul.f32 %v1316, %v1328
  %1331 = vst [vmem:[#allocation3] sm:$0xff] %v1325
  %1332 = vst [vmem:[#allocation3 + $0x8] sm:$0xff] %v1326
  %1333 = vst [vmem:[#allocation2] sm:$0xff] %v1329
  %1334 = vst [vmem:[#allocation2 + $0x8] sm:$0xff] %v1330
  %s1335 = scalar_lea.vmem %s0, 16
  %v1336 = vld [vmem:[%s1335] sm:$0xf]
  %v1337 = vld [vmem:[%s1335 + $0x4] sm:$0xf]
  %v1338 = vld [vmem:[%s1] sm:$0xff]
  %v1339 = vld [vmem:[%s1 + $0x8] sm:$0xff]
  %v1340 = vld [vmem:[%s1 + $0x10] sm:$0xff]
  %v1341 = vld [vmem:[%s1 + $0x18] sm:$0xff]
  %v1342 = vld [vmem:[%s1 + $0x20] sm:$0xff]
  %v1343 = vld [vmem:[%s1 + $0x28] sm:$0xff]
  %v1344 = vld [vmem:[%s1 + $0x30] sm:$0xff]
  %v1345 = vld [vmem:[%s1 + $0x38] sm:$0xff]
  %v1346 = vld [vmem:[%s1 + $0x40] sm:$0xff]
  %v1347 = vld [vmem:[%s1 + $0x48] sm:$0xff]
  %v1348 = vld [vmem:[%s1 + $0x50] sm:$0xff]
  %v1349 = vld [vmem:[%s1 + $0x58] sm:$0xff]
  %v1350 = vld [vmem:[%s1 + $0x60] sm:$0xff]
  %v1351 = vld [vmem:[%s1 + $0x68] sm:$0xff]
  %v1352 = vld [vmem:[%s1 + $0x70] sm:$0xff]
  %v1353 = vld [vmem:[%s1 + $0x78] sm:$0xff]
  %v1354 = vld [vmem:[%s1 + $0x80] sm:$0xff]
  %v1355 = vld [vmem:[%s1 + $0x88] sm:$0xff]
  %v1356 = vld [vmem:[%s1 + $0x90] sm:$0xff]
  %v1357 = vld [vmem:[%s1 + $0x98] sm:$0xff]
  %v1358 = vld [vmem:[%s1 + $0xa0] sm:$0xff]
  %v1359 = vld [vmem:[%s1 + $0xa8] sm:$0xff]
  %v1360 = vld [vmem:[%s1 + $0xb0] sm:$0xff]
  %v1361 = vld [vmem:[%s1 + $0xb8] sm:$0xff]
  %v1362 = vld [vmem:[%s1 + $0xc0] sm:$0xff]
  %v1363 = vld [vmem:[%s1 + $0xc8] sm:$0xff]
  %v1364 = vld [vmem:[%s1 + $0xd0] sm:$0xff]
  %v1365 = vld [vmem:[%s1 + $0xd8] sm:$0xff]
  %v1366 = vld [vmem:[%s1 + $0xe0] sm:$0xff]
  %v1367 = vld [vmem:[%s1 + $0xe8] sm:$0xff]
  %v1368 = vld [vmem:[%s1 + $0xf0] sm:$0xff]
  %v1369 = vld [vmem:[%s1 + $0xf8] sm:$0xff]
  %v1370 = vld [vmem:[#allocation2] sm:$0xff]
  %v1371 = vld [vmem:[#allocation2 + $0x8] sm:$0xff]
  %v1372 = vpack.c.bf16 %v1371, %v1370
  %v1373 = vld [vmem:[%s2] sm:$0xff]
  %v1374 = vld [vmem:[%s2 + $0x8] sm:$0xff]
  %v1375 = vld [vmem:[%s2 + $0x10] sm:$0xff]
  %v1376 = vld [vmem:[%s2 + $0x18] sm:$0xff]
  %v1377 = vld [vmem:[%s2 + $0x20] sm:$0xff]
  %v1378 = vld [vmem:[%s2 + $0x28] sm:$0xff]
  %v1379 = vld [vmem:[%s2 + $0x30] sm:$0xff]
  %v1380 = vld [vmem:[%s2 + $0x38] sm:$0xff]
  %v1381 = vld [vmem:[%s2 + $0x40] sm:$0xff]
  %v1382 = vld [vmem:[%s2 + $0x48] sm:$0xff]
  %v1383 = vld [vmem:[%s2 + $0x50] sm:$0xff]
  %v1384 = vld [vmem:[%s2 + $0x58] sm:$0xff]
  %v1385 = vld [vmem:[%s2 + $0x60] sm:$0xff]
  %v1386 = vld [vmem:[%s2 + $0x68] sm:$0xff]
  %v1387 = vld [vmem:[%s2 + $0x70] sm:$0xff]
  %v1388 = vld [vmem:[%s2 + $0x78] sm:$0xff]
  %v1389 = vld [vmem:[%s2 + $0x80] sm:$0xff]
  %v1390 = vld [vmem:[%s2 + $0x88] sm:$0xff]
  %v1391 = vld [vmem:[%s2 + $0x90] sm:$0xff]
  %v1392 = vld [vmem:[%s2 + $0x98] sm:$0xff]
  %v1393 = vld [vmem:[%s2 + $0xa0] sm:$0xff]
  %v1394 = vld [vmem:[%s2 + $0xa8] sm:$0xff]
  %v1395 = vld [vmem:[%s2 + $0xb0] sm:$0xff]
  %v1396 = vld [vmem:[%s2 + $0xb8] sm:$0xff]
  %v1397 = vld [vmem:[%s2 + $0xc0] sm:$0xff]
  %v1398 = vld [vmem:[%s2 + $0xc8] sm:$0xff]
  %v1399 = vld [vmem:[%s2 + $0xd0] sm:$0xff]
  %v1400 = vld [vmem:[%s2 + $0xd8] sm:$0xff]
  %v1401 = vld [vmem:[%s2 + $0xe0] sm:$0xff]
  %v1402 = vld [vmem:[%s2 + $0xe8] sm:$0xff]
  %v1403 = vld [vmem:[%s2 + $0xf0] sm:$0xff]
  %v1404 = vld [vmem:[%s2 + $0xf8] sm:$0xff]
  %v1437 = vunpack.c.l.b16 %v1373
  %v1438 = vunpack.c.h.b16 %v1373
  %v1439 = vunpack.c.l.b16 %v1374
  %v1440 = vunpack.c.h.b16 %v1374
  %v1441 = vunpack.c.l.b16 %v1375
  %v1442 = vunpack.c.h.b16 %v1375
  %v1443 = vunpack.c.l.b16 %v1376
  %v1444 = vunpack.c.h.b16 %v1376
  %v1445 = vunpack.c.l.b16 %v1377
  %v1446 = vunpack.c.h.b16 %v1377
  %v1447 = vunpack.c.l.b16 %v1378
  %v1448 = vunpack.c.h.b16 %v1378
  %v1449 = vunpack.c.l.b16 %v1379
  %v1450 = vunpack.c.h.b16 %v1379
  %v1451 = vunpack.c.l.b16 %v1380
  %v1452 = vunpack.c.h.b16 %v1380
  %v1453 = vunpack.c.l.b16 %v1381
  %v1454 = vunpack.c.h.b16 %v1381
  %v1455 = vunpack.c.l.b16 %v1382
  %v1456 = vunpack.c.h.b16 %v1382
  %v1457 = vunpack.c.l.b16 %v1383
  %v1458 = vunpack.c.h.b16 %v1383
  %v1459 = vunpack.c.l.b16 %v1384
  %v1460 = vunpack.c.h.b16 %v1384
  %v1461 = vunpack.c.l.b16 %v1385
  %v1462 = vunpack.c.h.b16 %v1385
  %v1463 = vunpack.c.l.b16 %v1386
  %v1464 = vunpack.c.h.b16 %v1386
  %v1465 = vunpack.c.l.b16 %v1387
  %v1466 = vunpack.c.h.b16 %v1387
  %v1467 = vunpack.c.l.b16 %v1388
  %v1468 = vunpack.c.h.b16 %v1388
  %v1469 = vunpack.c.l.b16 %v1389
  %v1470 = vunpack.c.h.b16 %v1389
  %v1471 = vunpack.c.l.b16 %v1390
  %v1472 = vunpack.c.h.b16 %v1390
  %v1473 = vunpack.c.l.b16 %v1391
  %v1474 = vunpack.c.h.b16 %v1391
  %v1475 = vunpack.c.l.b16 %v1392
  %v1476 = vunpack.c.h.b16 %v1392
  %v1477 = vunpack.c.l.b16 %v1393
  %v1478 = vunpack.c.h.b16 %v1393
  %v1479 = vunpack.c.l.b16 %v1394
  %v1480 = vunpack.c.h.b16 %v1394
  %v1481 = vunpack.c.l.b16 %v1395
  %v1482 = vunpack.c.h.b16 %v1395
  %v1483 = vunpack.c.l.b16 %v1396
  %v1484 = vunpack.c.h.b16 %v1396
  %v1485 = vunpack.c.l.b16 %v1397
  %v1486 = vunpack.c.h.b16 %v1397
  %v1487 = vunpack.c.l.b16 %v1398
  %v1488 = vunpack.c.h.b16 %v1398
  %v1489 = vunpack.c.l.b16 %v1399
  %v1490 = vunpack.c.h.b16 %v1399
  %v1491 = vunpack.c.l.b16 %v1400
  %v1492 = vunpack.c.h.b16 %v1400
  %v1493 = vunpack.c.l.b16 %v1401
  %v1494 = vunpack.c.h.b16 %v1401
  %v1495 = vunpack.c.l.b16 %v1402
  %v1496 = vunpack.c.h.b16 %v1402
  %v1497 = vunpack.c.l.b16 %v1403
  %v1498 = vunpack.c.h.b16 %v1403
  %v1499 = vunpack.c.l.b16 %v1404
  %v1500 = vunpack.c.h.b16 %v1404
  %v1501 = vpack.c.b16 %v1441, %v1437
  %v1502 = vpack.c.b16 %v1442, %v1438
  %v1503 = vpack.c.b16 %v1443, %v1439
  %v1504 = vpack.c.b16 %v1444, %v1440
  %v1505 = vpack.c.b16 %v1449, %v1445
  %v1506 = vpack.c.b16 %v1450, %v1446
  %v1507 = vpack.c.b16 %v1451, %v1447
  %v1508 = vpack.c.b16 %v1452, %v1448
  %v1509 = vpack.c.b16 %v1457, %v1453
  %v1510 = vpack.c.b16 %v1458, %v1454
  %v1511 = vpack.c.b16 %v1459, %v1455
  %v1512 = vpack.c.b16 %v1460, %v1456
  %v1513 = vpack.c.b16 %v1465, %v1461
  %v1514 = vpack.c.b16 %v1466, %v1462
  %v1515 = vpack.c.b16 %v1467, %v1463
  %v1516 = vpack.c.b16 %v1468, %v1464
  %v1517 = vpack.c.b16 %v1473, %v1469
  %v1518 = vpack.c.b16 %v1474, %v1470
  %v1519 = vpack.c.b16 %v1475, %v1471
  %v1520 = vpack.c.b16 %v1476, %v1472
  %v1521 = vpack.c.b16 %v1481, %v1477
  %v1522 = vpack.c.b16 %v1482, %v1478
  %v1523 = vpack.c.b16 %v1483, %v1479
  %v1524 = vpack.c.b16 %v1484, %v1480
  %v1525 = vpack.c.b16 %v1489, %v1485
  %v1526 = vpack.c.b16 %v1490, %v1486
  %v1527 = vpack.c.b16 %v1491, %v1487
  %v1528 = vpack.c.b16 %v1492, %v1488
  %v1529 = vpack.c.b16 %v1497, %v1493
  %v1530 = vpack.c.b16 %v1498, %v1494
  %v1531 = vpack.c.b16 %v1499, %v1495
  %v1532 = vpack.c.b16 %v1500, %v1496
  %1565 = vmatprep.subr.bf16.mxu0 %v1502
  %1566 = vmatpush1.bf16.msra.mxu0 %v1501
  %1567 = vmatprep.subr.bf16.mxu0 %v1506
  %1568 = vmatpush1.bf16.msra.mxu0 %v1505
  %1569 = vmatprep.subr.bf16.mxu0 %v1510
  %1570 = vmatpush1.bf16.msra.mxu0 %v1509
  %1571 = vmatprep.subr.bf16.mxu0 %v1514
  %1572 = vmatpush1.bf16.msra.mxu0 %v1513
  %1573 = vmatprep.subr.bf16.mxu0 %v1518
  %1574 = vmatpush1.bf16.msra.mxu0 %v1517
  %1575 = vmatprep.subr.bf16.mxu0 %v1522
  %1576 = vmatpush1.bf16.msra.mxu0 %v1521
  %1577 = vmatprep.subr.bf16.mxu0 %v1526
  %1578 = vmatpush1.bf16.msra.mxu0 %v1525
  %1579 = vmatprep.subr.bf16.mxu0 %v1530
  %1580 = vmatpush1.bf16.msra.mxu0 %v1529
  %1581 = vmatprep.subr.bf16.mxu0 0
  %1582 = vmatpush1.bf16.msra.mxu0 0
  %1583 = vmatprep.subr.bf16.mxu0 0
  %1584 = vmatpush1.bf16.msra.mxu0 0
  %1585 = vmatprep.subr.bf16.mxu0 0
  %1586 = vmatpush1.bf16.msra.mxu0 0
  %1587 = vmatprep.subr.bf16.mxu0 0
  %1588 = vmatpush1.bf16.msra.mxu0 0
  %1589 = vmatprep.subr.bf16.mxu0 0
  %1590 = vmatpush1.bf16.msra.mxu0 0
  %1591 = vmatprep.subr.bf16.mxu0 0
  %1592 = vmatpush1.bf16.msra.mxu0 0
  %1593 = vmatprep.subr.bf16.mxu0 0
  %1594 = vmatpush1.bf16.msra.mxu0 0
  %1595 = vmatprep.subr.bf16.mxu0 0
  %1596 = vmatpush1.bf16.msra.mxu0 0
  %1597 = vmatprep.mubr.bf16.mxu0 0
  %1598 = vmatmul.mubr.bf16.gmra.mrb[0].mxu0 %v1372
  %v1599 = vpop.f32.mrb[0].mxu0
  %v1600 = vadd.f32 0.0, %v1599
  %v1601 = vpop.f32.mrb[0].mxu0
  %v1602 = vadd.f32 0.0, %v1601
  %v1603 = vpop.f32.mrb[0].mxu0
  %v1604 = vadd.f32 0.0, %v1603
  %v1605 = vpop.f32.mrb[0].mxu0
  %v1606 = vadd.f32 0.0, %v1605
  %1607 = vdwg.mxu0
  %1608 = vmatprep.subr.bf16.mxu0 %v1504
  %1609 = vmatpush1.bf16.msra.mxu0 %v1503
  %1610 = vmatprep.subr.bf16.mxu0 %v1508
  %1611 = vmatpush1.bf16.msra.mxu0 %v1507
  %1612 = vmatprep.subr.bf16.mxu0 %v1512
  %1613 = vmatpush1.bf16.msra.mxu0 %v1511
  %1614 = vmatprep.subr.bf16.mxu0 %v1516
  %1615 = vmatpush1.bf16.msra.mxu0 %v1515
  %1616 = vmatprep.subr.bf16.mxu0 %v1520
  %1617 = vmatpush1.bf16.msra.mxu0 %v1519
  %1618 = vmatprep.subr.bf16.mxu0 %v1524
  %1619 = vmatpush1.bf16.msra.mxu0 %v1523
  %1620 = vmatprep.subr.bf16.mxu0 %v1528
  %1621 = vmatpush1.bf16.msra.mxu0 %v1527
  %1622 = vmatprep.subr.bf16.mxu0 %v1532
  %1623 = vmatpush1.bf16.msra.mxu0 %v1531
  %1624 = vmatprep.subr.bf16.mxu0 0
  %1625 = vmatpush1.bf16.msra.mxu0 0
  %1626 = vmatprep.subr.bf16.mxu0 0
  %1627 = vmatpush1.bf16.msra.mxu0 0
  %1628 = vmatprep.subr.bf16.mxu0 0
  %1629 = vmatpush1.bf16.msra.mxu0 0
  %1630 = vmatprep.subr.bf16.mxu0 0
  %1631 = vmatpush1.bf16.msra.mxu0 0
  %1632 = vmatprep.subr.bf16.mxu0 0
  %1633 = vmatpush1.bf16.msra.mxu0 0
  %1634 = vmatprep.subr.bf16.mxu0 0
  %1635 = vmatpush1.bf16.msra.mxu0 0
  %1636 = vmatprep.subr.bf16.mxu0 0
  %1637 = vmatpush1.bf16.msra.mxu0 0
  %1638 = vmatprep.subr.bf16.mxu0 0
  %1639 = vmatpush1.bf16.msra.mxu0 0
  %1640 = vmatprep.mubr.bf16.mxu0 0
  %1641 = vmatmul.mubr.bf16.gmra.mrb[0].mxu0 %v1372
  %v1642 = vpop.f32.mrb[0].mxu0
  %v1643 = vadd.f32 0.0, %v1642
  %v1644 = vpop.f32.mrb[0].mxu0
  %v1645 = vadd.f32 0.0, %v1644
  %v1646 = vpop.f32.mrb[0].mxu0
  %v1647 = vadd.f32 0.0, %v1646
  %v1648 = vpop.f32.mrb[0].mxu0
  %v1649 = vadd.f32 0.0, %v1648
  %1650 = vdwg.mxu0
  %v1653 = vunpack.c.l.b16 %v1336
  %v1654 = vunpack.c.l.b16 %v1337
  %v1655 = vpack.c.b16 %v1654, %v1653
  %v1689 = vunpack.c.l.b16 %v1338
  %v1690 = vunpack.c.h.b16 %v1338
  %v1691 = vunpack.c.l.b16 %v1339
  %v1692 = vunpack.c.h.b16 %v1339
  %v1693 = vunpack.c.l.b16 %v1340
  %v1694 = vunpack.c.h.b16 %v1340
  %v1695 = vunpack.c.l.b16 %v1341
  %v1696 = vunpack.c.h.b16 %v1341
  %v1697 = vunpack.c.l.b16 %v1342
  %v1698 = vunpack.c.h.b16 %v1342
  %v1699 = vunpack.c.l.b16 %v1343
  %v1700 = vunpack.c.h.b16 %v1343
  %v1701 = vunpack.c.l.b16 %v1344
  %v1702 = vunpack.c.h.b16 %v1344
  %v1703 = vunpack.c.l.b16 %v1345
  %v1704 = vunpack.c.h.b16 %v1345
  %v1705 = vunpack.c.l.b16 %v1346
  %v1706 = vunpack.c.h.b16 %v1346
  %v1707 = vunpack.c.l.b16 %v1347
  %v1708 = vunpack.c.h.b16 %v1347
  %v1709 = vunpack.c.l.b16 %v1348
  %v1710 = vunpack.c.h.b16 %v1348
  %v1711 = vunpack.c.l.b16 %v1349
  %v1712 = vunpack.c.h.b16 %v1349
  %v1713 = vunpack.c.l.b16 %v1350
  %v1714 = vunpack.c.h.b16 %v1350
  %v1715 = vunpack.c.l.b16 %v1351
  %v1716 = vunpack.c.h.b16 %v1351
  %v1717 = vunpack.c.l.b16 %v1352
  %v1718 = vunpack.c.h.b16 %v1352
  %v1719 = vunpack.c.l.b16 %v1353
  %v1720 = vunpack.c.h.b16 %v1353
  %v1721 = vunpack.c.l.b16 %v1354
  %v1722 = vunpack.c.h.b16 %v1354
  %v1723 = vunpack.c.l.b16 %v1355
  %v1724 = vunpack.c.h.b16 %v1355
  %v1725 = vunpack.c.l.b16 %v1356
  %v1726 = vunpack.c.h.b16 %v1356
  %v1727 = vunpack.c.l.b16 %v1357
  %v1728 = vunpack.c.h.b16 %v1357
  %v1729 = vunpack.c.l.b16 %v1358
  %v1730 = vunpack.c.h.b16 %v1358
  %v1731 = vunpack.c.l.b16 %v1359
  %v1732 = vunpack.c.h.b16 %v1359
  %v1733 = vunpack.c.l.b16 %v1360
  %v1734 = vunpack.c.h.b16 %v1360
  %v1735 = vunpack.c.l.b16 %v1361
  %v1736 = vunpack.c.h.b16 %v1361
  %v1737 = vunpack.c.l.b16 %v1362
  %v1738 = vunpack.c.h.b16 %v1362
  %v1739 = vunpack.c.l.b16 %v1363
  %v1740 = vunpack.c.h.b16 %v1363
  %v1741 = vunpack.c.l.b16 %v1364
  %v1742 = vunpack.c.h.b16 %v1364
  %v1743 = vunpack.c.l.b16 %v1365
  %v1744 = vunpack.c.h.b16 %v1365
  %v1745 = vunpack.c.l.b16 %v1366
  %v1746 = vunpack.c.h.b16 %v1366
  %v1747 = vunpack.c.l.b16 %v1367
  %v1748 = vunpack.c.h.b16 %v1367
  %v1749 = vunpack.c.l.b16 %v1368
  %v1750 = vunpack.c.h.b16 %v1368
  %v1751 = vunpack.c.l.b16 %v1369
  %v1752 = vunpack.c.h.b16 %v1369
  %v1753 = vpack.c.b16 %v1693, %v1689
  %v1754 = vpack.c.b16 %v1694, %v1690
  %v1755 = vpack.c.b16 %v1695, %v1691
  %v1756 = vpack.c.b16 %v1696, %v1692
  %v1757 = vpack.c.b16 %v1701, %v1697
  %v1758 = vpack.c.b16 %v1702, %v1698
  %v1759 = vpack.c.b16 %v1703, %v1699
  %v1760 = vpack.c.b16 %v1704, %v1700
  %v1761 = vpack.c.b16 %v1709, %v1705
  %v1762 = vpack.c.b16 %v1710, %v1706
  %v1763 = vpack.c.b16 %v1711, %v1707
  %v1764 = vpack.c.b16 %v1712, %v1708
  %v1765 = vpack.c.b16 %v1717, %v1713
  %v1766 = vpack.c.b16 %v1718, %v1714
  %v1767 = vpack.c.b16 %v1719, %v1715
  %v1768 = vpack.c.b16 %v1720, %v1716
  %v1769 = vpack.c.b16 %v1725, %v1721
  %v1770 = vpack.c.b16 %v1726, %v1722
  %v1771 = vpack.c.b16 %v1727, %v1723
  %v1772 = vpack.c.b16 %v1728, %v1724
  %v1773 = vpack.c.b16 %v1733, %v1729
  %v1774 = vpack.c.b16 %v1734, %v1730
  %v1775 = vpack.c.b16 %v1735, %v1731
  %v1776 = vpack.c.b16 %v1736, %v1732
  %v1777 = vpack.c.b16 %v1741, %v1737
  %v1778 = vpack.c.b16 %v1742, %v1738
  %v1779 = vpack.c.b16 %v1743, %v1739
  %v1780 = vpack.c.b16 %v1744, %v1740
  %v1781 = vpack.c.b16 %v1749, %v1745
  %v1782 = vpack.c.b16 %v1750, %v1746
  %v1783 = vpack.c.b16 %v1751, %v1747
  %v1784 = vpack.c.b16 %v1752, %v1748
  %1817 = vmatprep.subr.bf16.mxu0 %v1754
  %1818 = vmatpush1.bf16.msra.mxu0 %v1753
  %1819 = vmatprep.subr.bf16.mxu0 %v1758
  %1820 = vmatpush1.bf16.msra.mxu0 %v1757
  %1821 = vmatprep.subr.bf16.mxu0 %v1762
  %1822 = vmatpush1.bf16.msra.mxu0 %v1761
  %1823 = vmatprep.subr.bf16.mxu0 %v1766
  %1824 = vmatpush1.bf16.msra.mxu0 %v1765
  %1825 = vmatprep.subr.bf16.mxu0 %v1770
  %1826 = vmatpush1.bf16.msra.mxu0 %v1769
  %1827 = vmatprep.subr.bf16.mxu0 %v1774
  %1828 = vmatpush1.bf16.msra.mxu0 %v1773
  %1829 = vmatprep.subr.bf16.mxu0 %v1778
  %1830 = vmatpush1.bf16.msra.mxu0 %v1777
  %1831 = vmatprep.subr.bf16.mxu0 %v1782
  %1832 = vmatpush1.bf16.msra.mxu0 %v1781
  %1833 = vmatprep.subr.bf16.mxu0 0
  %1834 = vmatpush1.bf16.msra.mxu0 0
  %1835 = vmatprep.subr.bf16.mxu0 0
  %1836 = vmatpush1.bf16.msra.mxu0 0
  %1837 = vmatprep.subr.bf16.mxu0 0
  %1838 = vmatpush1.bf16.msra.mxu0 0
  %1839 = vmatprep.subr.bf16.mxu0 0
  %1840 = vmatpush1.bf16.msra.mxu0 0
  %1841 = vmatprep.subr.bf16.mxu0 0
  %1842 = vmatpush1.bf16.msra.mxu0 0
  %1843 = vmatprep.subr.bf16.mxu0 0
  %1844 = vmatpush1.bf16.msra.mxu0 0
  %1845 = vmatprep.subr.bf16.mxu0 0
  %1846 = vmatpush1.bf16.msra.mxu0 0
  %1847 = vmatprep.subr.bf16.mxu0 0
  %1848 = vmatpush1.bf16.msra.mxu0 0
  %1849 = vmatprep.mubr.bf16.mxu0 0
  %1850 = vmatmul.mubr.bf16.gmra.mrb[0].mxu0 %v1655
  %v1851 = vpop.f32.mrb[0].mxu0
  %v1852 = vadd.f32 %v1600, %v1851
  %v1853 = vpop.f32.mrb[0].mxu0
  %v1854 = vadd.f32 %v1602, %v1853
  %v1855 = vpop.f32.mrb[0].mxu0
  %v1856 = vadd.f32 %v1604, %v1855
  %v1857 = vpop.f32.mrb[0].mxu0
  %v1858 = vadd.f32 %v1606, %v1857
  %1859 = vdwg.mxu0
  %1860 = vmatprep.subr.bf16.mxu0 %v1756
  %1861 = vmatpush1.bf16.msra.mxu0 %v1755
  %1862 = vmatprep.subr.bf16.mxu0 %v1760
  %1863 = vmatpush1.bf16.msra.mxu0 %v1759
  %1864 = vmatprep.subr.bf16.mxu0 %v1764
  %1865 = vmatpush1.bf16.msra.mxu0 %v1763
  %1866 = vmatprep.subr.bf16.mxu0 %v1768
  %1867 = vmatpush1.bf16.msra.mxu0 %v1767
  %1868 = vmatprep.subr.bf16.mxu0 %v1772
  %1869 = vmatpush1.bf16.msra.mxu0 %v1771
  %1870 = vmatprep.subr.bf16.mxu0 %v1776
  %1871 = vmatpush1.bf16.msra.mxu0 %v1775
  %1872 = vmatprep.subr.bf16.mxu0 %v1780
  %1873 = vmatpush1.bf16.msra.mxu0 %v1779
  %1874 = vmatprep.subr.bf16.mxu0 %v1784
  %1875 = vmatpush1.bf16.msra.mxu0 %v1783
  %1876 = vmatprep.subr.bf16.mxu0 0
  %1877 = vmatpush1.bf16.msra.mxu0 0
  %1878 = vmatprep.subr.bf16.mxu0 0
  %1879 = vmatpush1.bf16.msra.mxu0 0
  %1880 = vmatprep.subr.bf16.mxu0 0
  %1881 = vmatpush1.bf16.msra.mxu0 0
  %1882 = vmatprep.subr.bf16.mxu0 0
  %1883 = vmatpush1.bf16.msra.mxu0 0
  %1884 = vmatprep.subr.bf16.mxu0 0
  %1885 = vmatpush1.bf16.msra.mxu0 0
  %1886 = vmatprep.subr.bf16.mxu0 0
  %1887 = vmatpush1.bf16.msra.mxu0 0
  %1888 = vmatprep.subr.bf16.mxu0 0
  %1889 = vmatpush1.bf16.msra.mxu0 0
  %1890 = vmatprep.subr.bf16.mxu0 0
  %1891 = vmatpush1.bf16.msra.mxu0 0
  %1892 = vmatprep.mubr.bf16.mxu0 0
  %1893 = vmatmul.mubr.bf16.gmra.mrb[0].mxu0 %v1655
  %v1894 = vpop.f32.mrb[0].mxu0
  %v1895 = vadd.f32 %v1643, %v1894
  %v1896 = vpop.f32.mrb[0].mxu0
  %v1897 = vadd.f32 %v1645, %v1896
  %v1898 = vpop.f32.mrb[0].mxu0
  %v1899 = vadd.f32 %v1647, %v1898
  %v1900 = vpop.f32.mrb[0].mxu0
  %v1901 = vadd.f32 %v1649, %v1900
  %1902 = vdwg.mxu0
  %v1903 = vld [vmem:[%s3] sm:$0xf]
  %v1905 = vlaneseq
  %v1906 = vshrl.u32 %v1905, 7
  %v1907 = vsub.s32 0, %v1906
  %v1908 = vrot.slane %v1903, %v1907
  %v1909 = vlaneseq
  %v1910 = vshrl.u32 %v1909, 7
  %v1911 = vsub.s32 1, %v1910
  %v1912 = vrot.slane %v1903, %v1911
  %v1913 = vlaneseq
  %v1914 = vshrl.u32 %v1913, 7
  %v1915 = vsub.s32 2, %v1914
  %v1916 = vrot.slane %v1903, %v1915
  %v1917 = vlaneseq
  %v1918 = vshrl.u32 %v1917, 7
  %v1919 = vsub.s32 3, %v1918
  %v1920 = vrot.slane %v1903, %v1919
  %v1925 = vadd.f32 %v1852, %v1908
  %v1926 = vadd.f32 %v1854, %v1912
  %v1927 = vadd.f32 %v1895, %v1916
  %v1928 = vadd.f32 %v1897, %v1920
  %v1929 = vadd.f32 %v1856, %v1908
  %v1930 = vadd.f32 %v1858, %v1912
  %v1931 = vadd.f32 %v1899, %v1916
  %v1932 = vadd.f32 %v1901, %v1920
  %v1933 = vxor.u32 %v1925, 2147483648
  %v1934 = vxor.u32 %v1926, 2147483648
  %v1935 = vxor.u32 %v1927, 2147483648
  %v1936 = vxor.u32 %v1929, 2147483648
  %v1937 = vxor.u32 %v1930, 2147483648
  %v1938 = vxor.u32 %v1931, 2147483648
  %v1939 = vmul.f32 %v1933, 1.442695
  %v1940 = vpow.pop %v1939
  %v1941 = vmul.f32 %v1934, 1.442695
  %v1942 = vpow.pop %v1941
  %v1943 = vmul.f32 %v1935, 1.442695
  %v1944 = vpow.pop %v1943
  %v1945 = vmul.f32 %v1936, 1.442695
  %v1946 = vpow.pop %v1945
  %v1947 = vmul.f32 %v1937, 1.442695
  %v1948 = vpow.pop %v1947
  %v1949 = vmul.f32 %v1938, 1.442695
  %v1950 = vpow.pop %v1949
  %v1951 = vadd.f32 %v1940, 1.0
  %v1952 = vadd.f32 %v1942, 1.0
  %v1953 = vadd.f32 %v1944, 1.0
  %v1954 = vadd.f32 %v1946, 1.0
  %v1955 = vadd.f32 %v1948, 1.0
  %v1956 = vadd.f32 %v1950, 1.0
  %v1957 = vrcp.pop %v1951
  %v1958 = vmul.f32 1.0, %v1957
  %v1959 = vrcp.pop %v1952
  %v1960 = vmul.f32 1.0, %v1959
  %v1961 = vrcp.pop %v1953
  %v1962 = vmul.f32 1.0, %v1961
  %v1963 = vrcp.pop %v1954
  %v1964 = vmul.f32 1.0, %v1963
  %v1965 = vrcp.pop %v1955
  %v1966 = vmul.f32 1.0, %v1965
  %v1967 = vrcp.pop %v1956
  %v1968 = vmul.f32 1.0, %v1967
  %v1969 = vtanh.pop %v1928
  %v1970 = vtanh.pop %v1932
  %v1971 = vld [vmem:[#allocation3] sm:$0xff]
  %v1972 = vld [vmem:[#allocation3 + $0x8] sm:$0xff]
  %v1973 = vmul.f32 %v1960, %v1971
  %v1974 = vmul.f32 %v1966, %v1972
  %v1975 = vmul.f32 %v1958, %v1969
  %v1976 = vmul.f32 %v1964, %v1970
  %v1977 = vadd.f32 %v1973, %v1975
  %v1978 = vadd.f32 %v1974, %v1976
  %v1979 = vtanh.pop %v1977
  %v1980 = vtanh.pop %v1978
  %v1981 = vmul.f32 %v1962, %v1979
  %v1982 = vmul.f32 %v1968, %v1980
  %1983 = vst [vmem:[#allocation3] sm:$0xff] %v1977
  %1984 = vst [vmem:[#allocation3 + $0x8] sm:$0xff] %v1978
  %1985 = vst [vmem:[#allocation2] sm:$0xff] %v1981
  %1986 = vst [vmem:[#allocation2 + $0x8] sm:$0xff] %v1982
  %s1987 = scalar_lea.vmem %s0, 24
  %v1988 = vld [vmem:[%s1987] sm:$0xf]
  %v1989 = vld [vmem:[%s1987 + $0x4] sm:$0xf]
  %v1990 = vld [vmem:[%s1] sm:$0xff]
  %v1991 = vld [vmem:[%s1 + $0x8] sm:$0xff]
  %v1992 = vld [vmem:[%s1 + $0x10] sm:$0xff]
  %v1993 = vld [vmem:[%s1 + $0x18] sm:$0xff]
  %v1994 = vld [vmem:[%s1 + $0x20] sm:$0xff]
  %v1995 = vld [vmem:[%s1 + $0x28] sm:$0xff]
  %v1996 = vld [vmem:[%s1 + $0x30] sm:$0xff]
  %v1997 = vld [vmem:[%s1 + $0x38] sm:$0xff]
  %v1998 = vld [vmem:[%s1 + $0x40] sm:$0xff]
  %v1999 = vld [vmem:[%s1 + $0x48] sm:$0xff]
  %v2000 = vld [vmem:[%s1 + $0x50] sm:$0xff]
  %v2001 = vld [vmem:[%s1 + $0x58] sm:$0xff]
  %v2002 = vld [vmem:[%s1 + $0x60] sm:$0xff]
  %v2003 = vld [vmem:[%s1 + $0x68] sm:$0xff]
  %v2004 = vld [vmem:[%s1 + $0x70] sm:$0xff]
  %v2005 = vld [vmem:[%s1 + $0x78] sm:$0xff]
  %v2006 = vld [vmem:[%s1 + $0x80] sm:$0xff]
  %v2007 = vld [vmem:[%s1 + $0x88] sm:$0xff]
  %v2008 = vld [vmem:[%s1 + $0x90] sm:$0xff]
  %v2009 = vld [vmem:[%s1 + $0x98] sm:$0xff]
  %v2010 = vld [vmem:[%s1 + $0xa0] sm:$0xff]
  %v2011 = vld [vmem:[%s1 + $0xa8] sm:$0xff]
  %v2012 = vld [vmem:[%s1 + $0xb0] sm:$0xff]
  %v2013 = vld [vmem:[%s1 + $0xb8] sm:$0xff]
  %v2014 = vld [vmem:[%s1 + $0xc0] sm:$0xff]
  %v2015 = vld [vmem:[%s1 + $0xc8] sm:$0xff]
  %v2016 = vld [vmem:[%s1 + $0xd0] sm:$0xff]
  %v2017 = vld [vmem:[%s1 + $0xd8] sm:$0xff]
  %v2018 = vld [vmem:[%s1 + $0xe0] sm:$0xff]
  %v2019 = vld [vmem:[%s1 + $0xe8] sm:$0xff]
  %v2020 = vld [vmem:[%s1 + $0xf0] sm:$0xff]
  %v2021 = vld [vmem:[%s1 + $0xf8] sm:$0xff]
  %v2022 = vld [vmem:[#allocation2] sm:$0xff]
  %v2023 = vld [vmem:[#allocation2 + $0x8] sm:$0xff]
  %v2024 = vpack.c.bf16 %v2023, %v2022
  %v2025 = vld [vmem:[%s2] sm:$0xff]
  %v2026 = vld [vmem:[%s2 + $0x8] sm:$0xff]
  %v2027 = vld [vmem:[%s2 + $0x10] sm:$0xff]
  %v2028 = vld [vmem:[%s2 + $0x18] sm:$0xff]
  %v2029 = vld [vmem:[%s2 + $0x20] sm:$0xff]
  %v2030 = vld [vmem:[%s2 + $0x28] sm:$0xff]
  %v2031 = vld [vmem:[%s2 + $0x30] sm:$0xff]
  %v2032 = vld [vmem:[%s2 + $0x38] sm:$0xff]
  %v2033 = vld [vmem:[%s2 + $0x40] sm:$0xff]
  %v2034 = vld [vmem:[%s2 + $0x48] sm:$0xff]
  %v2035 = vld [vmem:[%s2 + $0x50] sm:$0xff]
  %v2036 = vld [vmem:[%s2 + $0x58] sm:$0xff]
  %v2037 = vld [vmem:[%s2 + $0x60] sm:$0xff]
  %v2038 = vld [vmem:[%s2 + $0x68] sm:$0xff]
  %v2039 = vld [vmem:[%s2 + $0x70] sm:$0xff]
  %v2040 = vld [vmem:[%s2 + $0x78] sm:$0xff]
  %v2041 = vld [vmem:[%s2 + $0x80] sm:$0xff]
  %v2042 = vld [vmem:[%s2 + $0x88] sm:$0xff]
  %v2043 = vld [vmem:[%s2 + $0x90] sm:$0xff]
  %v2044 = vld [vmem:[%s2 + $0x98] sm:$0xff]
  %v2045 = vld [vmem:[%s2 + $0xa0] sm:$0xff]
  %v2046 = vld [vmem:[%s2 + $0xa8] sm:$0xff]
  %v2047 = vld [vmem:[%s2 + $0xb0] sm:$0xff]
  %v2048 = vld [vmem:[%s2 + $0xb8] sm:$0xff]
  %v2049 = vld [vmem:[%s2 + $0xc0] sm:$0xff]
  %v2050 = vld [vmem:[%s2 + $0xc8] sm:$0xff]
  %v2051 = vld [vmem:[%s2 + $0xd0] sm:$0xff]
  %v2052 = vld [vmem:[%s2 + $0xd8] sm:$0xff]
  %v2053 = vld [vmem:[%s2 + $0xe0] sm:$0xff]
  %v2054 = vld [vmem:[%s2 + $0xe8] sm:$0xff]
  %v2055 = vld [vmem:[%s2 + $0xf0] sm:$0xff]
  %v2056 = vld [vmem:[%s2 + $0xf8] sm:$0xff]
  %v2089 = vunpack.c.l.b16 %v2025
  %v2090 = vunpack.c.h.b16 %v2025
  %v2091 = vunpack.c.l.b16 %v2026
  %v2092 = vunpack.c.h.b16 %v2026
  %v2093 = vunpack.c.l.b16 %v2027
  %v2094 = vunpack.c.h.b16 %v2027
  %v2095 = vunpack.c.l.b16 %v2028
  %v2096 = vunpack.c.h.b16 %v2028
  %v2097 = vunpack.c.l.b16 %v2029
  %v2098 = vunpack.c.h.b16 %v2029
  %v2099 = vunpack.c.l.b16 %v2030
  %v2100 = vunpack.c.h.b16 %v2030
  %v2101 = vunpack.c.l.b16 %v2031
  %v2102 = vunpack.c.h.b16 %v2031
  %v2103 = vunpack.c.l.b16 %v2032
  %v2104 = vunpack.c.h.b16 %v2032
  %v2105 = vunpack.c.l.b16 %v2033
  %v2106 = vunpack.c.h.b16 %v2033
  %v2107 = vunpack.c.l.b16 %v2034
  %v2108 = vunpack.c.h.b16 %v2034
  %v2109 = vunpack.c.l.b16 %v2035
  %v2110 = vunpack.c.h.b16 %v2035
  %v2111 = vunpack.c.l.b16 %v2036
  %v2112 = vunpack.c.h.b16 %v2036
  %v2113 = vunpack.c.l.b16 %v2037
  %v2114 = vunpack.c.h.b16 %v2037
  %v2115 = vunpack.c.l.b16 %v2038
  %v2116 = vunpack.c.h.b16 %v2038
  %v2117 = vunpack.c.l.b16 %v2039
  %v2118 = vunpack.c.h.b16 %v2039
  %v2119 = vunpack.c.l.b16 %v2040
  %v2120 = vunpack.c.h.b16 %v2040
  %v2121 = vunpack.c.l.b16 %v2041
  %v2122 = vunpack.c.h.b16 %v2041
  %v2123 = vunpack.c.l.b16 %v2042
  %v2124 = vunpack.c.h.b16 %v2042
  %v2125 = vunpack.c.l.b16 %v2043
  %v2126 = vunpack.c.h.b16 %v2043
  %v2127 = vunpack.c.l.b16 %v2044
  %v2128 = vunpack.c.h.b16 %v2044
  %v2129 = vunpack.c.l.b16 %v2045
  %v2130 = vunpack.c.h.b16 %v2045
  %v2131 = vunpack.c.l.b16 %v2046
  %v2132 = vunpack.c.h.b16 %v2046
  %v2133 = vunpack.c.l.b16 %v2047
  %v2134 = vunpack.c.h.b16 %v2047
  %v2135 = vunpack.c.l.b16 %v2048
  %v2136 = vunpack.c.h.b16 %v2048
  %v2137 = vunpack.c.l.b16 %v2049
  %v2138 = vunpack.c.h.b16 %v2049
  %v2139 = vunpack.c.l.b16 %v2050
  %v2140 = vunpack.c.h.b16 %v2050
  %v2141 = vunpack.c.l.b16 %v2051
  %v2142 = vunpack.c.h.b16 %v2051
  %v2143 = vunpack.c.l.b16 %v2052
  %v2144 = vunpack.c.h.b16 %v2052
  %v2145 = vunpack.c.l.b16 %v2053
  %v2146 = vunpack.c.h.b16 %v2053
  %v2147 = vunpack.c.l.b16 %v2054
  %v2148 = vunpack.c.h.b16 %v2054
  %v2149 = vunpack.c.l.b16 %v2055
  %v2150 = vunpack.c.h.b16 %v2055
  %v2151 = vunpack.c.l.b16 %v2056
  %v2152 = vunpack.c.h.b16 %v2056
  %v2153 = vpack.c.b16 %v2093, %v2089
  %v2154 = vpack.c.b16 %v2094, %v2090
  %v2155 = vpack.c.b16 %v2095, %v2091
  %v2156 = vpack.c.b16 %v2096, %v2092
  %v2157 = vpack.c.b16 %v2101, %v2097
  %v2158 = vpack.c.b16 %v2102, %v2098
  %v2159 = vpack.c.b16 %v2103, %v2099
  %v2160 = vpack.c.b16 %v2104, %v2100
  %v2161 = vpack.c.b16 %v2109, %v2105
  %v2162 = vpack.c.b16 %v2110, %v2106
  %v2163 = vpack.c.b16 %v2111, %v2107
  %v2164 = vpack.c.b16 %v2112, %v2108
  %v2165 = vpack.c.b16 %v2117, %v2113
  %v2166 = vpack.c.b16 %v2118, %v2114
  %v2167 = vpack.c.b16 %v2119, %v2115
  %v2168 = vpack.c.b16 %v2120, %v2116
  %v2169 = vpack.c.b16 %v2125, %v2121
  %v2170 = vpack.c.b16 %v2126, %v2122
  %v2171 = vpack.c.b16 %v2127, %v2123
  %v2172 = vpack.c.b16 %v2128, %v2124
  %v2173 = vpack.c.b16 %v2133, %v2129
  %v2174 = vpack.c.b16 %v2134, %v2130
  %v2175 = vpack.c.b16 %v2135, %v2131
  %v2176 = vpack.c.b16 %v2136, %v2132
  %v2177 = vpack.c.b16 %v2141, %v2137
  %v2178 = vpack.c.b16 %v2142, %v2138
  %v2179 = vpack.c.b16 %v2143, %v2139
  %v2180 = vpack.c.b16 %v2144, %v2140
  %v2181 = vpack.c.b16 %v2149, %v2145
  %v2182 = vpack.c.b16 %v2150, %v2146
  %v2183 = vpack.c.b16 %v2151, %v2147
  %v2184 = vpack.c.b16 %v2152, %v2148
  %2217 = vmatprep.subr.bf16.mxu0 %v2154
  %2218 = vmatpush1.bf16.msra.mxu0 %v2153
  %2219 = vmatprep.subr.bf16.mxu0 %v2158
  %2220 = vmatpush1.bf16.msra.mxu0 %v2157
  %2221 = vmatprep.subr.bf16.mxu0 %v2162
  %2222 = vmatpush1.bf16.msra.mxu0 %v2161
  %2223 = vmatprep.subr.bf16.mxu0 %v2166
  %2224 = vmatpush1.bf16.msra.mxu0 %v2165
  %2225 = vmatprep.subr.bf16.mxu0 %v2170
  %2226 = vmatpush1.bf16.msra.mxu0 %v2169
  %2227 = vmatprep.subr.bf16.mxu0 %v2174
  %2228 = vmatpush1.bf16.msra.mxu0 %v2173
  %2229 = vmatprep.subr.bf16.mxu0 %v2178
  %2230 = vmatpush1.bf16.msra.mxu0 %v2177
  %2231 = vmatprep.subr.bf16.mxu0 %v2182
  %2232 = vmatpush1.bf16.msra.mxu0 %v2181
  %2233 = vmatprep.subr.bf16.mxu0 0
  %2234 = vmatpush1.bf16.msra.mxu0 0
  %2235 = vmatprep.subr.bf16.mxu0 0
  %2236 = vmatpush1.bf16.msra.mxu0 0
  %2237 = vmatprep.subr.bf16.mxu0 0
  %2238 = vmatpush1.bf16.msra.mxu0 0
  %2239 = vmatprep.subr.bf16.mxu0 0
  %2240 = vmatpush1.bf16.msra.mxu0 0
  %2241 = vmatprep.subr.bf16.mxu0 0
  %2242 = vmatpush1.bf16.msra.mxu0 0
  %2243 = vmatprep.subr.bf16.mxu0 0
  %2244 = vmatpush1.bf16.msra.mxu0 0
  %2245 = vmatprep.subr.bf16.mxu0 0
  %2246 = vmatpush1.bf16.msra.mxu0 0
  %2247 = vmatprep.subr.bf16.mxu0 0
  %2248 = vmatpush1.bf16.msra.mxu0 0
  %2249 = vmatprep.mubr.bf16.mxu0 0
  %2250 = vmatmul.mubr.bf16.gmra.mrb[0].mxu0 %v2024
  %v2251 = vpop.f32.mrb[0].mxu0
  %v2252 = vadd.f32 0.0, %v2251
  %v2253 = vpop.f32.mrb[0].mxu0
  %v2254 = vadd.f32 0.0, %v2253
  %v2255 = vpop.f32.mrb[0].mxu0
  %v2256 = vadd.f32 0.0, %v2255
  %v2257 = vpop.f32.mrb[0].mxu0
  %v2258 = vadd.f32 0.0, %v2257
  %2259 = vdwg.mxu0
  %2260 = vmatprep.subr.bf16.mxu0 %v2156
  %2261 = vmatpush1.bf16.msra.mxu0 %v2155
  %2262 = vmatprep.subr.bf16.mxu0 %v2160
  %2263 = vmatpush1.bf16.msra.mxu0 %v2159
  %2264 = vmatprep.subr.bf16.mxu0 %v2164
  %2265 = vmatpush1.bf16.msra.mxu0 %v2163
  %2266 = vmatprep.subr.bf16.mxu0 %v2168
  %2267 = vmatpush1.bf16.msra.mxu0 %v2167
  %2268 = vmatprep.subr.bf16.mxu0 %v2172
  %2269 = vmatpush1.bf16.msra.mxu0 %v2171
  %2270 = vmatprep.subr.bf16.mxu0 %v2176
  %2271 = vmatpush1.bf16.msra.mxu0 %v2175
  %2272 = vmatprep.subr.bf16.mxu0 %v2180
  %2273 = vmatpush1.bf16.msra.mxu0 %v2179
  %2274 = vmatprep.subr.bf16.mxu0 %v2184
  %2275 = vmatpush1.bf16.msra.mxu0 %v2183
  %2276 = vmatprep.subr.bf16.mxu0 0
  %2277 = vmatpush1.bf16.msra.mxu0 0
  %2278 = vmatprep.subr.bf16.mxu0 0
  %2279 = vmatpush1.bf16.msra.mxu0 0
  %2280 = vmatprep.subr.bf16.mxu0 0
  %2281 = vmatpush1.bf16.msra.mxu0 0
  %2282 = vmatprep.subr.bf16.mxu0 0
  %2283 = vmatpush1.bf16.msra.mxu0 0
  %2284 = vmatprep.subr.bf16.mxu0 0
  %2285 = vmatpush1.bf16.msra.mxu0 0
  %2286 = vmatprep.subr.bf16.mxu0 0
  %2287 = vmatpush1.bf16.msra.mxu0 0
  %2288 = vmatprep.subr.bf16.mxu0 0
  %2289 = vmatpush1.bf16.msra.mxu0 0
  %2290 = vmatprep.subr.bf16.mxu0 0
  %2291 = vmatpush1.bf16.msra.mxu0 0
  %2292 = vmatprep.mubr.bf16.mxu0 0
  %2293 = vmatmul.mubr.bf16.gmra.mrb[0].mxu0 %v2024
  %v2294 = vpop.f32.mrb[0].mxu0
  %v2295 = vadd.f32 0.0, %v2294
  %v2296 = vpop.f32.mrb[0].mxu0
  %v2297 = vadd.f32 0.0, %v2296
  %v2298 = vpop.f32.mrb[0].mxu0
  %v2299 = vadd.f32 0.0, %v2298
  %v2300 = vpop.f32.mrb[0].mxu0
  %v2301 = vadd.f32 0.0, %v2300
  %2302 = vdwg.mxu0
  %v2305 = vunpack.c.l.b16 %v1988
  %v2306 = vunpack.c.l.b16 %v1989
  %v2307 = vpack.c.b16 %v2306, %v2305
  %v2341 = vunpack.c.l.b16 %v1990
  %v2342 = vunpack.c.h.b16 %v1990
  %v2343 = vunpack.c.l.b16 %v1991
  %v2344 = vunpack.c.h.b16 %v1991
  %v2345 = vunpack.c.l.b16 %v1992
  %v2346 = vunpack.c.h.b16 %v1992
  %v2347 = vunpack.c.l.b16 %v1993
  %v2348 = vunpack.c.h.b16 %v1993
  %v2349 = vunpack.c.l.b16 %v1994
  %v2350 = vunpack.c.h.b16 %v1994
  %v2351 = vunpack.c.l.b16 %v1995
  %v2352 = vunpack.c.h.b16 %v1995
  %v2353 = vunpack.c.l.b16 %v1996
  %v2354 = vunpack.c.h.b16 %v1996
  %v2355 = vunpack.c.l.b16 %v1997
  %v2356 = vunpack.c.h.b16 %v1997
  %v2357 = vunpack.c.l.b16 %v1998
  %v2358 = vunpack.c.h.b16 %v1998
  %v2359 = vunpack.c.l.b16 %v1999
  %v2360 = vunpack.c.h.b16 %v1999
  %v2361 = vunpack.c.l.b16 %v2000
  %v2362 = vunpack.c.h.b16 %v2000
  %v2363 = vunpack.c.l.b16 %v2001
  %v2364 = vunpack.c.h.b16 %v2001
  %v2365 = vunpack.c.l.b16 %v2002
  %v2366 = vunpack.c.h.b16 %v2002
  %v2367 = vunpack.c.l.b16 %v2003
  %v2368 = vunpack.c.h.b16 %v2003
  %v2369 = vunpack.c.l.b16 %v2004
  %v2370 = vunpack.c.h.b16 %v2004
  %v2371 = vunpack.c.l.b16 %v2005
  %v2372 = vunpack.c.h.b16 %v2005
  %v2373 = vunpack.c.l.b16 %v2006
  %v2374 = vunpack.c.h.b16 %v2006
  %v2375 = vunpack.c.l.b16 %v2007
  %v2376 = vunpack.c.h.b16 %v2007
  %v2377 = vunpack.c.l.b16 %v2008
  %v2378 = vunpack.c.h.b16 %v2008
  %v2379 = vunpack.c.l.b16 %v2009
  %v2380 = vunpack.c.h.b16 %v2009
  %v2381 = vunpack.c.l.b16 %v2010
  %v2382 = vunpack.c.h.b16 %v2010
  %v2383 = vunpack.c.l.b16 %v2011
  %v2384 = vunpack.c.h.b16 %v2011
  %v2385 = vunpack.c.l.b16 %v2012
  %v2386 = vunpack.c.h.b16 %v2012
  %v2387 = vunpack.c.l.b16 %v2013
  %v2388 = vunpack.c.h.b16 %v2013
  %v2389 = vunpack.c.l.b16 %v2014
  %v2390 = vunpack.c.h.b16 %v2014
  %v2391 = vunpack.c.l.b16 %v2015
  %v2392 = vunpack.c.h.b16 %v2015
  %v2393 = vunpack.c.l.b16 %v2016
  %v2394 = vunpack.c.h.b16 %v2016
  %v2395 = vunpack.c.l.b16 %v2017
  %v2396 = vunpack.c.h.b16 %v2017
  %v2397 = vunpack.c.l.b16 %v2018
  %v2398 = vunpack.c.h.b16 %v2018
  %v2399 = vunpack.c.l.b16 %v2019
  %v2400 = vunpack.c.h.b16 %v2019
  %v2401 = vunpack.c.l.b16 %v2020
  %v2402 = vunpack.c.h.b16 %v2020
  %v2403 = vunpack.c.l.b16 %v2021
  %v2404 = vunpack.c.h.b16 %v2021
  %v2405 = vpack.c.b16 %v2345, %v2341
  %v2406 = vpack.c.b16 %v2346, %v2342
  %v2407 = vpack.c.b16 %v2347, %v2343
  %v2408 = vpack.c.b16 %v2348, %v2344
  %v2409 = vpack.c.b16 %v2353, %v2349
  %v2410 = vpack.c.b16 %v2354, %v2350
  %v2411 = vpack.c.b16 %v2355, %v2351
  %v2412 = vpack.c.b16 %v2356, %v2352
  %v2413 = vpack.c.b16 %v2361, %v2357
  %v2414 = vpack.c.b16 %v2362, %v2358
  %v2415 = vpack.c.b16 %v2363, %v2359
  %v2416 = vpack.c.b16 %v2364, %v2360
  %v2417 = vpack.c.b16 %v2369, %v2365
  %v2418 = vpack.c.b16 %v2370, %v2366
  %v2419 = vpack.c.b16 %v2371, %v2367
  %v2420 = vpack.c.b16 %v2372, %v2368
  %v2421 = vpack.c.b16 %v2377, %v2373
  %v2422 = vpack.c.b16 %v2378, %v2374
  %v2423 = vpack.c.b16 %v2379, %v2375
  %v2424 = vpack.c.b16 %v2380, %v2376
  %v2425 = vpack.c.b16 %v2385, %v2381
  %v2426 = vpack.c.b16 %v2386, %v2382
  %v2427 = vpack.c.b16 %v2387, %v2383
  %v2428 = vpack.c.b16 %v2388, %v2384
  %v2429 = vpack.c.b16 %v2393, %v2389
  %v2430 = vpack.c.b16 %v2394, %v2390
  %v2431 = vpack.c.b16 %v2395, %v2391
  %v2432 = vpack.c.b16 %v2396, %v2392
  %v2433 = vpack.c.b16 %v2401, %v2397
  %v2434 = vpack.c.b16 %v2402, %v2398
  %v2435 = vpack.c.b16 %v2403, %v2399
  %v2436 = vpack.c.b16 %v2404, %v2400
  %2469 = vmatprep.subr.bf16.mxu0 %v2406
  %2470 = vmatpush1.bf16.msra.mxu0 %v2405
  %2471 = vmatprep.subr.bf16.mxu0 %v2410
  %2472 = vmatpush1.bf16.msra.mxu0 %v2409
  %2473 = vmatprep.subr.bf16.mxu0 %v2414
  %2474 = vmatpush1.bf16.msra.mxu0 %v2413
  %2475 = vmatprep.subr.bf16.mxu0 %v2418
  %2476 = vmatpush1.bf16.msra.mxu0 %v2417
  %2477 = vmatprep.subr.bf16.mxu0 %v2422
  %2478 = vmatpush1.bf16.msra.mxu0 %v2421
  %2479 = vmatprep.subr.bf16.mxu0 %v2426
  %2480 = vmatpush1.bf16.msra.mxu0 %v2425
  %2481 = vmatprep.subr.bf16.mxu0 %v2430
  %2482 = vmatpush1.bf16.msra.mxu0 %v2429
  %2483 = vmatprep.subr.bf16.mxu0 %v2434
  %2484 = vmatpush1.bf16.msra.mxu0 %v2433
  %2485 = vmatprep.subr.bf16.mxu0 0
  %2486 = vmatpush1.bf16.msra.mxu0 0
  %2487 = vmatprep.subr.bf16.mxu0 0
  %2488 = vmatpush1.bf16.msra.mxu0 0
  %2489 = vmatprep.subr.bf16.mxu0 0
  %2490 = vmatpush1.bf16.msra.mxu0 0
  %2491 = vmatprep.subr.bf16.mxu0 0
  %2492 = vmatpush1.bf16.msra.mxu0 0
  %2493 = vmatprep.subr.bf16.mxu0 0
  %2494 = vmatpush1.bf16.msra.mxu0 0
  %2495 = vmatprep.subr.bf16.mxu0 0
  %2496 = vmatpush1.bf16.msra.mxu0 0
  %2497 = vmatprep.subr.bf16.mxu0 0
  %2498 = vmatpush1.bf16.msra.mxu0 0
  %2499 = vmatprep.subr.bf16.mxu0 0
  %2500 = vmatpush1.bf16.msra.mxu0 0
  %2501 = vmatprep.mubr.bf16.mxu0 0
  %2502 = vmatmul.mubr.bf16.gmra.mrb[0].mxu0 %v2307
  %v2503 = vpop.f32.mrb[0].mxu0
  %v2504 = vadd.f32 %v2252, %v2503
  %v2505 = vpop.f32.mrb[0].mxu0
  %v2506 = vadd.f32 %v2254, %v2505
  %v2507 = vpop.f32.mrb[0].mxu0
  %v2508 = vadd.f32 %v2256, %v2507
  %v2509 = vpop.f32.mrb[0].mxu0
  %v2510 = vadd.f32 %v2258, %v2509
  %2511 = vdwg.mxu0
  %2512 = vmatprep.subr.bf16.mxu0 %v2408
  %2513 = vmatpush1.bf16.msra.mxu0 %v2407
  %2514 = vmatprep.subr.bf16.mxu0 %v2412
  %2515 = vmatpush1.bf16.msra.mxu0 %v2411
  %2516 = vmatprep.subr.bf16.mxu0 %v2416
  %2517 = vmatpush1.bf16.msra.mxu0 %v2415
  %2518 = vmatprep.subr.bf16.mxu0 %v2420
  %2519 = vmatpush1.bf16.msra.mxu0 %v2419
  %2520 = vmatprep.subr.bf16.mxu0 %v2424
  %2521 = vmatpush1.bf16.msra.mxu0 %v2423
  %2522 = vmatprep.subr.bf16.mxu0 %v2428
  %2523 = vmatpush1.bf16.msra.mxu0 %v2427
  %2524 = vmatprep.subr.bf16.mxu0 %v2432
  %2525 = vmatpush1.bf16.msra.mxu0 %v2431
  %2526 = vmatprep.subr.bf16.mxu0 %v2436
  %2527 = vmatpush1.bf16.msra.mxu0 %v2435
  %2528 = vmatprep.subr.bf16.mxu0 0
  %2529 = vmatpush1.bf16.msra.mxu0 0
  %2530 = vmatprep.subr.bf16.mxu0 0
  %2531 = vmatpush1.bf16.msra.mxu0 0
  %2532 = vmatprep.subr.bf16.mxu0 0
  %2533 = vmatpush1.bf16.msra.mxu0 0
  %2534 = vmatprep.subr.bf16.mxu0 0
  %2535 = vmatpush1.bf16.msra.mxu0 0
  %2536 = vmatprep.subr.bf16.mxu0 0
  %2537 = vmatpush1.bf16.msra.mxu0 0
  %2538 = vmatprep.subr.bf16.mxu0 0
  %2539 = vmatpush1.bf16.msra.mxu0 0
  %2540 = vmatprep.subr.bf16.mxu0 0
  %2541 = vmatpush1.bf16.msra.mxu0 0
  %2542 = vmatprep.subr.bf16.mxu0 0
  %2543 = vmatpush1.bf16.msra.mxu0 0
  %2544 = vmatprep.mubr.bf16.mxu0 0
  %2545 = vmatmul.mubr.bf16.gmra.mrb[0].mxu0 %v2307
  %v2546 = vpop.f32.mrb[0].mxu0
  %v2547 = vadd.f32 %v2295, %v2546
  %v2548 = vpop.f32.mrb[0].mxu0
  %v2549 = vadd.f32 %v2297, %v2548
  %v2550 = vpop.f32.mrb[0].mxu0
  %v2551 = vadd.f32 %v2299, %v2550
  %v2552 = vpop.f32.mrb[0].mxu0
  %v2553 = vadd.f32 %v2301, %v2552
  %2554 = vdwg.mxu0
  %v2555 = vld [vmem:[%s3] sm:$0xf]
  %v2557 = vlaneseq
  %v2558 = vshrl.u32 %v2557, 7
  %v2559 = vsub.s32 0, %v2558
  %v2560 = vrot.slane %v2555, %v2559
  %v2561 = vlaneseq
  %v2562 = vshrl.u32 %v2561, 7
  %v2563 = vsub.s32 1, %v2562
  %v2564 = vrot.slane %v2555, %v2563
  %v2565 = vlaneseq
  %v2566 = vshrl.u32 %v2565, 7
  %v2567 = vsub.s32 2, %v2566
  %v2568 = vrot.slane %v2555, %v2567
  %v2569 = vlaneseq
  %v2570 = vshrl.u32 %v2569, 7
  %v2571 = vsub.s32 3, %v2570
  %v2572 = vrot.slane %v2555, %v2571
  %v2577 = vadd.f32 %v2504, %v2560
  %v2578 = vadd.f32 %v2506, %v2564
  %v2579 = vadd.f32 %v2547, %v2568
  %v2580 = vadd.f32 %v2549, %v2572
  %v2581 = vadd.f32 %v2508, %v2560
  %v2582 = vadd.f32 %v2510, %v2564
  %v2583 = vadd.f32 %v2551, %v2568
  %v2584 = vadd.f32 %v2553, %v2572
  %v2585 = vxor.u32 %v2577, 2147483648
  %v2586 = vxor.u32 %v2578, 2147483648
  %v2587 = vxor.u32 %v2579, 2147483648
  %v2588 = vxor.u32 %v2581, 2147483648
  %v2589 = vxor.u32 %v2582, 2147483648
  %v2590 = vxor.u32 %v2583, 2147483648
  %v2591 = vmul.f32 %v2585, 1.442695
  %v2592 = vpow.pop %v2591
  %v2593 = vmul.f32 %v2586, 1.442695
  %v2594 = vpow.pop %v2593
  %v2595 = vmul.f32 %v2587, 1.442695
  %v2596 = vpow.pop %v2595
  %v2597 = vmul.f32 %v2588, 1.442695
  %v2598 = vpow.pop %v2597
  %v2599 = vmul.f32 %v2589, 1.442695
  %v2600 = vpow.pop %v2599
  %v2601 = vmul.f32 %v2590, 1.442695
  %v2602 = vpow.pop %v2601
  %v2603 = vadd.f32 %v2592, 1.0
  %v2604 = vadd.f32 %v2594, 1.0
  %v2605 = vadd.f32 %v2596, 1.0
  %v2606 = vadd.f32 %v2598, 1.0
  %v2607 = vadd.f32 %v2600, 1.0
  %v2608 = vadd.f32 %v2602, 1.0
  %v2609 = vrcp.pop %v2603
  %v2610 = vmul.f32 1.0, %v2609
  %v2611 = vrcp.pop %v2604
  %v2612 = vmul.f32 1.0, %v2611
  %v2613 = vrcp.pop %v2605
  %v2614 = vmul.f32 1.0, %v2613
  %v2615 = vrcp.pop %v2606
  %v2616 = vmul.f32 1.0, %v2615
  %v2617 = vrcp.pop %v2607
  %v2618 = vmul.f32 1.0, %v2617
  %v2619 = vrcp.pop %v2608
  %v2620 = vmul.f32 1.0, %v2619
  %v2621 = vtanh.pop %v2580
  %v2622 = vtanh.pop %v2584
  %v2623 = vld [vmem:[#allocation3] sm:$0xff]
  %v2624 = vld [vmem:[#allocation3 + $0x8] sm:$0xff]
  %v2625 = vmul.f32 %v2612, %v2623
  %v2626 = vmul.f32 %v2618, %v2624
  %v2627 = vmul.f32 %v2610, %v2621
  %v2628 = vmul.f32 %v2616, %v2622
  %v2629 = vadd.f32 %v2625, %v2627
  %v2630 = vadd.f32 %v2626, %v2628
  %v2631 = vtanh.pop %v2629
  %v2632 = vtanh.pop %v2630
  %v2633 = vmul.f32 %v2614, %v2631
  %v2634 = vmul.f32 %v2620, %v2632
  %2635 = vst [vmem:[#allocation3] sm:$0xff] %v2629
  %2636 = vst [vmem:[#allocation3 + $0x8] sm:$0xff] %v2630
  %2637 = vst [vmem:[#allocation2] sm:$0xff] %v2633
  %2638 = vst [vmem:[#allocation2 + $0x8] sm:$0xff] %v2634
  %s2639 = scalar_lea.vmem %s0, 32
  %v2640 = vld [vmem:[%s2639] sm:$0xf]
  %v2641 = vld [vmem:[%s2639 + $0x4] sm:$0xf]
  %v2642 = vld [vmem:[%s1] sm:$0xff]
  %v2643 = vld [vmem:[%s1 + $0x8] sm:$0xff]
  %v2644 = vld [vmem:[%s1 + $0x10] sm:$0xff]
  %v2645 = vld [vmem:[%s1 + $0x18] sm:$0xff]
  %v2646 = vld [vmem:[%s1 + $0x20] sm:$0xff]
  %v2647 = vld [vmem:[%s1 + $0x28] sm:$0xff]
  %v2648 = vld [vmem:[%s1 + $0x30] sm:$0xff]
  %v2649 = vld [vmem:[%s1 + $0x38] sm:$0xff]
  %v2650 = vld [vmem:[%s1 + $0x40] sm:$0xff]
  %v2651 = vld [vmem:[%s1 + $0x48] sm:$0xff]
  %v2652 = vld [vmem:[%s1 + $0x50] sm:$0xff]
  %v2653 = vld [vmem:[%s1 + $0x58] sm:$0xff]
  %v2654 = vld [vmem:[%s1 + $0x60] sm:$0xff]
  %v2655 = vld [vmem:[%s1 + $0x68] sm:$0xff]
  %v2656 = vld [vmem:[%s1 + $0x70] sm:$0xff]
  %v2657 = vld [vmem:[%s1 + $0x78] sm:$0xff]
  %v2658 = vld [vmem:[%s1 + $0x80] sm:$0xff]
  %v2659 = vld [vmem:[%s1 + $0x88] sm:$0xff]
  %v2660 = vld [vmem:[%s1 + $0x90] sm:$0xff]
  %v2661 = vld [vmem:[%s1 + $0x98] sm:$0xff]
  %v2662 = vld [vmem:[%s1 + $0xa0] sm:$0xff]
  %v2663 = vld [vmem:[%s1 + $0xa8] sm:$0xff]
  %v2664 = vld [vmem:[%s1 + $0xb0] sm:$0xff]
  %v2665 = vld [vmem:[%s1 + $0xb8] sm:$0xff]
  %v2666 = vld [vmem:[%s1 + $0xc0] sm:$0xff]
  %v2667 = vld [vmem:[%s1 + $0xc8] sm:$0xff]
  %v2668 = vld [vmem:[%s1 + $0xd0] sm:$0xff]
  %v2669 = vld [vmem:[%s1 + $0xd8] sm:$0xff]
  %v2670 = vld [vmem:[%s1 + $0xe0] sm:$0xff]
  %v2671 = vld [vmem:[%s1 + $0xe8] sm:$0xff]
  %v2672 = vld [vmem:[%s1 + $0xf0] sm:$0xff]
  %v2673 = vld [vmem:[%s1 + $0xf8] sm:$0xff]
  %v2674 = vld [vmem:[#allocation2] sm:$0xff]
  %v2675 = vld [vmem:[#allocation2 + $0x8] sm:$0xff]
  %v2676 = vpack.c.bf16 %v2675, %v2674
  %v2677 = vld [vmem:[%s2] sm:$0xff]
  %v2678 = vld [vmem:[%s2 + $0x8] sm:$0xff]
  %v2679 = vld [vmem:[%s2 + $0x10] sm:$0xff]
  %v2680 = vld [vmem:[%s2 + $0x18] sm:$0xff]
  %v2681 = vld [vmem:[%s2 + $0x20] sm:$0xff]
  %v2682 = vld [vmem:[%s2 + $0x28] sm:$0xff]
  %v2683 = vld [vmem:[%s2 + $0x30] sm:$0xff]
  %v2684 = vld [vmem:[%s2 + $0x38] sm:$0xff]
  %v2685 = vld [vmem:[%s2 + $0x40] sm:$0xff]
  %v2686 = vld [vmem:[%s2 + $0x48] sm:$0xff]
  %v2687 = vld [vmem:[%s2 + $0x50] sm:$0xff]
  %v2688 = vld [vmem:[%s2 + $0x58] sm:$0xff]
  %v2689 = vld [vmem:[%s2 + $0x60] sm:$0xff]
  %v2690 = vld [vmem:[%s2 + $0x68] sm:$0xff]
  %v2691 = vld [vmem:[%s2 + $0x70] sm:$0xff]
  %v2692 = vld [vmem:[%s2 + $0x78] sm:$0xff]
  %v2693 = vld [vmem:[%s2 + $0x80] sm:$0xff]
  %v2694 = vld [vmem:[%s2 + $0x88] sm:$0xff]
  %v2695 = vld [vmem:[%s2 + $0x90] sm:$0xff]
  %v2696 = vld [vmem:[%s2 + $0x98] sm:$0xff]
  %v2697 = vld [vmem:[%s2 + $0xa0] sm:$0xff]
  %v2698 = vld [vmem:[%s2 + $0xa8] sm:$0xff]
  %v2699 = vld [vmem:[%s2 + $0xb0] sm:$0xff]
  %v2700 = vld [vmem:[%s2 + $0xb8] sm:$0xff]
  %v2701 = vld [vmem:[%s2 + $0xc0] sm:$0xff]
  %v2702 = vld [vmem:[%s2 + $0xc8] sm:$0xff]
  %v2703 = vld [vmem:[%s2 + $0xd0] sm:$0xff]
  %v2704 = vld [vmem:[%s2 + $0xd8] sm:$0xff]
  %v2705 = vld [vmem:[%s2 + $0xe0] sm:$0xff]
  %v2706 = vld [vmem:[%s2 + $0xe8] sm:$0xff]
  %v2707 = vld [vmem:[%s2 + $0xf0] sm:$0xff]
  %v2708 = vld [vmem:[%s2 + $0xf8] sm:$0xff]
  %v2741 = vunpack.c.l.b16 %v2677
  %v2742 = vunpack.c.h.b16 %v2677
  %v2743 = vunpack.c.l.b16 %v2678
  %v2744 = vunpack.c.h.b16 %v2678
  %v2745 = vunpack.c.l.b16 %v2679
  %v2746 = vunpack.c.h.b16 %v2679
  %v2747 = vunpack.c.l.b16 %v2680
  %v2748 = vunpack.c.h.b16 %v2680
  %v2749 = vunpack.c.l.b16 %v2681
  %v2750 = vunpack.c.h.b16 %v2681
  %v2751 = vunpack.c.l.b16 %v2682
  %v2752 = vunpack.c.h.b16 %v2682
  %v2753 = vunpack.c.l.b16 %v2683
  %v2754 = vunpack.c.h.b16 %v2683
  %v2755 = vunpack.c.l.b16 %v2684
  %v2756 = vunpack.c.h.b16 %v2684
  %v2757 = vunpack.c.l.b16 %v2685
  %v2758 = vunpack.c.h.b16 %v2685
  %v2759 = vunpack.c.l.b16 %v2686
  %v2760 = vunpack.c.h.b16 %v2686
  %v2761 = vunpack.c.l.b16 %v2687
  %v2762 = vunpack.c.h.b16 %v2687
  %v2763 = vunpack.c.l.b16 %v2688
  %v2764 = vunpack.c.h.b16 %v2688
  %v2765 = vunpack.c.l.b16 %v2689
  %v2766 = vunpack.c.h.b16 %v2689
  %v2767 = vunpack.c.l.b16 %v2690
  %v2768 = vunpack.c.h.b16 %v2690
  %v2769 = vunpack.c.l.b16 %v2691
  %v2770 = vunpack.c.h.b16 %v2691
  %v2771 = vunpack.c.l.b16 %v2692
  %v2772 = vunpack.c.h.b16 %v2692
  %v2773 = vunpack.c.l.b16 %v2693
  %v2774 = vunpack.c.h.b16 %v2693
  %v2775 = vunpack.c.l.b16 %v2694
  %v2776 = vunpack.c.h.b16 %v2694
  %v2777 = vunpack.c.l.b16 %v2695
  %v2778 = vunpack.c.h.b16 %v2695
  %v2779 = vunpack.c.l.b16 %v2696
  %v2780 = vunpack.c.h.b16 %v2696
  %v2781 = vunpack.c.l.b16 %v2697
  %v2782 = vunpack.c.h.b16 %v2697
  %v2783 = vunpack.c.l.b16 %v2698
  %v2784 = vunpack.c.h.b16 %v2698
  %v2785 = vunpack.c.l.b16 %v2699
  %v2786 = vunpack.c.h.b16 %v2699
  %v2787 = vunpack.c.l.b16 %v2700
  %v2788 = vunpack.c.h.b16 %v2700
  %v2789 = vunpack.c.l.b16 %v2701
  %v2790 = vunpack.c.h.b16 %v2701
  %v2791 = vunpack.c.l.b16 %v2702
  %v2792 = vunpack.c.h.b16 %v2702
  %v2793 = vunpack.c.l.b16 %v2703
  %v2794 = vunpack.c.h.b16 %v2703
  %v2795 = vunpack.c.l.b16 %v2704
  %v2796 = vunpack.c.h.b16 %v2704
  %v2797 = vunpack.c.l.b16 %v2705
  %v2798 = vunpack.c.h.b16 %v2705
  %v2799 = vunpack.c.l.b16 %v2706
  %v2800 = vunpack.c.h.b16 %v2706
  %v2801 = vunpack.c.l.b16 %v2707
  %v2802 = vunpack.c.h.b16 %v2707
  %v2803 = vunpack.c.l.b16 %v2708
  %v2804 = vunpack.c.h.b16 %v2708
  %v2805 = vpack.c.b16 %v2745, %v2741
  %v2806 = vpack.c.b16 %v2746, %v2742
  %v2807 = vpack.c.b16 %v2747, %v2743
  %v2808 = vpack.c.b16 %v2748, %v2744
  %v2809 = vpack.c.b16 %v2753, %v2749
  %v2810 = vpack.c.b16 %v2754, %v2750
  %v2811 = vpack.c.b16 %v2755, %v2751
  %v2812 = vpack.c.b16 %v2756, %v2752
  %v2813 = vpack.c.b16 %v2761, %v2757
  %v2814 = vpack.c.b16 %v2762, %v2758
  %v2815 = vpack.c.b16 %v2763, %v2759
  %v2816 = vpack.c.b16 %v2764, %v2760
  %v2817 = vpack.c.b16 %v2769, %v2765
  %v2818 = vpack.c.b16 %v2770, %v2766
  %v2819 = vpack.c.b16 %v2771, %v2767
  %v2820 = vpack.c.b16 %v2772, %v2768
  %v2821 = vpack.c.b16 %v2777, %v2773
  %v2822 = vpack.c.b16 %v2778, %v2774
  %v2823 = vpack.c.b16 %v2779, %v2775
  %v2824 = vpack.c.b16 %v2780, %v2776
  %v2825 = vpack.c.b16 %v2785, %v2781
  %v2826 = vpack.c.b16 %v2786, %v2782
  %v2827 = vpack.c.b16 %v2787, %v2783
  %v2828 = vpack.c.b16 %v2788, %v2784
  %v2829 = vpack.c.b16 %v2793, %v2789
  %v2830 = vpack.c.b16 %v2794, %v2790
  %v2831 = vpack.c.b16 %v2795, %v2791
  %v2832 = vpack.c.b16 %v2796, %v2792
  %v2833 = vpack.c.b16 %v2801, %v2797
  %v2834 = vpack.c.b16 %v2802, %v2798
  %v2835 = vpack.c.b16 %v2803, %v2799
  %v2836 = vpack.c.b16 %v2804, %v2800
  %2869 = vmatprep.subr.bf16.mxu0 %v2806
  %2870 = vmatpush1.bf16.msra.mxu0 %v2805
  %2871 = vmatprep.subr.bf16.mxu0 %v2810
  %2872 = vmatpush1.bf16.msra.mxu0 %v2809
  %2873 = vmatprep.subr.bf16.mxu0 %v2814
  %2874 = vmatpush1.bf16.msra.mxu0 %v2813
  %2875 = vmatprep.subr.bf16.mxu0 %v2818
  %2876 = vmatpush1.bf16.msra.mxu0 %v2817
  %2877 = vmatprep.subr.bf16.mxu0 %v2822
  %2878 = vmatpush1.bf16.msra.mxu0 %v2821
  %2879 = vmatprep.subr.bf16.mxu0 %v2826
  %2880 = vmatpush1.bf16.msra.mxu0 %v2825
  %2881 = vmatprep.subr.bf16.mxu0 %v2830
  %2882 = vmatpush1.bf16.msra.mxu0 %v2829
  %2883 = vmatprep.subr.bf16.mxu0 %v2834
  %2884 = vmatpush1.bf16.msra.mxu0 %v2833
  %2885 = vmatprep.subr.bf16.mxu0 0
  %2886 = vmatpush1.bf16.msra.mxu0 0
  %2887 = vmatprep.subr.bf16.mxu0 0
  %2888 = vmatpush1.bf16.msra.mxu0 0
  %2889 = vmatprep.subr.bf16.mxu0 0
  %2890 = vmatpush1.bf16.msra.mxu0 0
  %2891 = vmatprep.subr.bf16.mxu0 0
  %2892 = vmatpush1.bf16.msra.mxu0 0
  %2893 = vmatprep.subr.bf16.mxu0 0
  %2894 = vmatpush1.bf16.msra.mxu0 0
  %2895 = vmatprep.subr.bf16.mxu0 0
  %2896 = vmatpush1.bf16.msra.mxu0 0
  %2897 = vmatprep.subr.bf16.mxu0 0
  %2898 = vmatpush1.bf16.msra.mxu0 0
  %2899 = vmatprep.subr.bf16.mxu0 0
  %2900 = vmatpush1.bf16.msra.mxu0 0
  %2901 = vmatprep.mubr.bf16.mxu0 0
  %2902 = vmatmul.mubr.bf16.gmra.mrb[0].mxu0 %v2676
  %v2903 = vpop.f32.mrb[0].mxu0
  %v2904 = vadd.f32 0.0, %v2903
  %v2905 = vpop.f32.mrb[0].mxu0
  %v2906 = vadd.f32 0.0, %v2905
  %v2907 = vpop.f32.mrb[0].mxu0
  %v2908 = vadd.f32 0.0, %v2907
  %v2909 = vpop.f32.mrb[0].mxu0
  %v2910 = vadd.f32 0.0, %v2909
  %2911 = vdwg.mxu0
  %2912 = vmatprep.subr.bf16.mxu0 %v2808
  %2913 = vmatpush1.bf16.msra.mxu0 %v2807
  %2914 = vmatprep.subr.bf16.mxu0 %v2812
  %2915 = vmatpush1.bf16.msra.mxu0 %v2811
  %2916 = vmatprep.subr.bf16.mxu0 %v2816
  %2917 = vmatpush1.bf16.msra.mxu0 %v2815
  %2918 = vmatprep.subr.bf16.mxu0 %v2820
  %2919 = vmatpush1.bf16.msra.mxu0 %v2819
  %2920 = vmatprep.subr.bf16.mxu0 %v2824
  %2921 = vmatpush1.bf16.msra.mxu0 %v2823
  %2922 = vmatprep.subr.bf16.mxu0 %v2828
  %2923 = vmatpush1.bf16.msra.mxu0 %v2827
  %2924 = vmatprep.subr.bf16.mxu0 %v2832
  %2925 = vmatpush1.bf16.msra.mxu0 %v2831
  %2926 = vmatprep.subr.bf16.mxu0 %v2836
  %2927 = vmatpush1.bf16.msra.mxu0 %v2835
  %2928 = vmatprep.subr.bf16.mxu0 0
  %2929 = vmatpush1.bf16.msra.mxu0 0
  %2930 = vmatprep.subr.bf16.mxu0 0
  %2931 = vmatpush1.bf16.msra.mxu0 0
  %2932 = vmatprep.subr.bf16.mxu0 0
  %2933 = vmatpush1.bf16.msra.mxu0 0
  %2934 = vmatprep.subr.bf16.mxu0 0
  %2935 = vmatpush1.bf16.msra.mxu0 0
  %2936 = vmatprep.subr.bf16.mxu0 0
  %2937 = vmatpush1.bf16.msra.mxu0 0
  %2938 = vmatprep.subr.bf16.mxu0 0
  %2939 = vmatpush1.bf16.msra.mxu0 0
  %2940 = vmatprep.subr.bf16.mxu0 0
  %2941 = vmatpush1.bf16.msra.mxu0 0
  %2942 = vmatprep.subr.bf16.mxu0 0
  %2943 = vmatpush1.bf16.msra.mxu0 0
  %2944 = vmatprep.mubr.bf16.mxu0 0
  %2945 = vmatmul.mubr.bf16.gmra.mrb[0].mxu0 %v2676
  %v2946 = vpop.f32.mrb[0].mxu0
  %v2947 = vadd.f32 0.0, %v2946
  %v2948 = vpop.f32.mrb[0].mxu0
  %v2949 = vadd.f32 0.0, %v2948
  %v2950 = vpop.f32.mrb[0].mxu0
  %v2951 = vadd.f32 0.0, %v2950
  %v2952 = vpop.f32.mrb[0].mxu0
  %v2953 = vadd.f32 0.0, %v2952
  %2954 = vdwg.mxu0
  %v2957 = vunpack.c.l.b16 %v2640
  %v2958 = vunpack.c.l.b16 %v2641
  %v2959 = vpack.c.b16 %v2958, %v2957
  %v2993 = vunpack.c.l.b16 %v2642
  %v2994 = vunpack.c.h.b16 %v2642
  %v2995 = vunpack.c.l.b16 %v2643
  %v2996 = vunpack.c.h.b16 %v2643
  %v2997 = vunpack.c.l.b16 %v2644
  %v2998 = vunpack.c.h.b16 %v2644
  %v2999 = vunpack.c.l.b16 %v2645
  %v3000 = vunpack.c.h.b16 %v2645
  %v3001 = vunpack.c.l.b16 %v2646
  %v3002 = vunpack.c.h.b16 %v2646
  %v3003 = vunpack.c.l.b16 %v2647
  %v3004 = vunpack.c.h.b16 %v2647
  %v3005 = vunpack.c.l.b16 %v2648
  %v3006 = vunpack.c.h.b16 %v2648
  %v3007 = vunpack.c.l.b16 %v2649
  %v3008 = vunpack.c.h.b16 %v2649
  %v3009 = vunpack.c.l.b16 %v2650
  %v3010 = vunpack.c.h.b16 %v2650
  %v3011 = vunpack.c.l.b16 %v2651
  %v3012 = vunpack.c.h.b16 %v2651
  %v3013 = vunpack.c.l.b16 %v2652
  %v3014 = vunpack.c.h.b16 %v2652
  %v3015 = vunpack.c.l.b16 %v2653
  %v3016 = vunpack.c.h.b16 %v2653
  %v3017 = vunpack.c.l.b16 %v2654
  %v3018 = vunpack.c.h.b16 %v2654
  %v3019 = vunpack.c.l.b16 %v2655
  %v3020 = vunpack.c.h.b16 %v2655
  %v3021 = vunpack.c.l.b16 %v2656
  %v3022 = vunpack.c.h.b16 %v2656
  %v3023 = vunpack.c.l.b16 %v2657
  %v3024 = vunpack.c.h.b16 %v2657
  %v3025 = vunpack.c.l.b16 %v2658
  %v3026 = vunpack.c.h.b16 %v2658
  %v3027 = vunpack.c.l.b16 %v2659
  %v3028 = vunpack.c.h.b16 %v2659
  %v3029 = vunpack.c.l.b16 %v2660
  %v3030 = vunpack.c.h.b16 %v2660
  %v3031 = vunpack.c.l.b16 %v2661
  %v3032 = vunpack.c.h.b16 %v2661
  %v3033 = vunpack.c.l.b16 %v2662
  %v3034 = vunpack.c.h.b16 %v2662
  %v3035 = vunpack.c.l.b16 %v2663
  %v3036 = vunpack.c.h.b16 %v2663
  %v3037 = vunpack.c.l.b16 %v2664
  %v3038 = vunpack.c.h.b16 %v2664
  %v3039 = vunpack.c.l.b16 %v2665
  %v3040 = vunpack.c.h.b16 %v2665
  %v3041 = vunpack.c.l.b16 %v2666
  %v3042 = vunpack.c.h.b16 %v2666
  %v3043 = vunpack.c.l.b16 %v2667
  %v3044 = vunpack.c.h.b16 %v2667
  %v3045 = vunpack.c.l.b16 %v2668
  %v3046 = vunpack.c.h.b16 %v2668
  %v3047 = vunpack.c.l.b16 %v2669
  %v3048 = vunpack.c.h.b16 %v2669
  %v3049 = vunpack.c.l.b16 %v2670
  %v3050 = vunpack.c.h.b16 %v2670
  %v3051 = vunpack.c.l.b16 %v2671
  %v3052 = vunpack.c.h.b16 %v2671
  %v3053 = vunpack.c.l.b16 %v2672
  %v3054 = vunpack.c.h.b16 %v2672
  %v3055 = vunpack.c.l.b16 %v2673
  %v3056 = vunpack.c.h.b16 %v2673
  %v3057 = vpack.c.b16 %v2997, %v2993
  %v3058 = vpack.c.b16 %v2998, %v2994
  %v3059 = vpack.c.b16 %v2999, %v2995
  %v3060 = vpack.c.b16 %v3000, %v2996
  %v3061 = vpack.c.b16 %v3005, %v3001
  %v3062 = vpack.c.b16 %v3006, %v3002
  %v3063 = vpack.c.b16 %v3007, %v3003
  %v3064 = vpack.c.b16 %v3008, %v3004
  %v3065 = vpack.c.b16 %v3013, %v3009
  %v3066 = vpack.c.b16 %v3014, %v3010
  %v3067 = vpack.c.b16 %v3015, %v3011
  %v3068 = vpack.c.b16 %v3016, %v3012
  %v3069 = vpack.c.b16 %v3021, %v3017
  %v3070 = vpack.c.b16 %v3022, %v3018
  %v3071 = vpack.c.b16 %v3023, %v3019
  %v3072 = vpack.c.b16 %v3024, %v3020
  %v3073 = vpack.c.b16 %v3029, %v3025
  %v3074 = vpack.c.b16 %v3030, %v3026
  %v3075 = vpack.c.b16 %v3031, %v3027
  %v3076 = vpack.c.b16 %v3032, %v3028
  %v3077 = vpack.c.b16 %v3037, %v3033
  %v3078 = vpack.c.b16 %v3038, %v3034
  %v3079 = vpack.c.b16 %v3039, %v3035
  %v3080 = vpack.c.b16 %v3040, %v3036
  %v3081 = vpack.c.b16 %v3045, %v3041
  %v3082 = vpack.c.b16 %v3046, %v3042
  %v3083 = vpack.c.b16 %v3047, %v3043
  %v3084 = vpack.c.b16 %v3048, %v3044
  %v3085 = vpack.c.b16 %v3053, %v3049
  %v3086 = vpack.c.b16 %v3054, %v3050
  %v3087 = vpack.c.b16 %v3055, %v3051
  %v3088 = vpack.c.b16 %v3056, %v3052
  %3121 = vmatprep.subr.bf16.mxu0 %v3058
  %3122 = vmatpush1.bf16.msra.mxu0 %v3057
  %3123 = vmatprep.subr.bf16.mxu0 %v3062
  %3124 = vmatpush1.bf16.msra.mxu0 %v3061
  %3125 = vmatprep.subr.bf16.mxu0 %v3066
  %3126 = vmatpush1.bf16.msra.mxu0 %v3065
  %3127 = vmatprep.subr.bf16.mxu0 %v3070
  %3128 = vmatpush1.bf16.msra.mxu0 %v3069
  %3129 = vmatprep.subr.bf16.mxu0 %v3074
  %3130 = vmatpush1.bf16.msra.mxu0 %v3073
  %3131 = vmatprep.subr.bf16.mxu0 %v3078
  %3132 = vmatpush1.bf16.msra.mxu0 %v3077
  %3133 = vmatprep.subr.bf16.mxu0 %v3082
  %3134 = vmatpush1.bf16.msra.mxu0 %v3081
  %3135 = vmatprep.subr.bf16.mxu0 %v3086
  %3136 = vmatpush1.bf16.msra.mxu0 %v3085
  %3137 = vmatprep.subr.bf16.mxu0 0
  %3138 = vmatpush1.bf16.msra.mxu0 0
  %3139 = vmatprep.subr.bf16.mxu0 0
  %3140 = vmatpush1.bf16.msra.mxu0 0
  %3141 = vmatprep.subr.bf16.mxu0 0
  %3142 = vmatpush1.bf16.msra.mxu0 0
  %3143 = vmatprep.subr.bf16.mxu0 0
  %3144 = vmatpush1.bf16.msra.mxu0 0
  %3145 = vmatprep.subr.bf16.mxu0 0
  %3146 = vmatpush1.bf16.msra.mxu0 0
  %3147 = vmatprep.subr.bf16.mxu0 0
  %3148 = vmatpush1.bf16.msra.mxu0 0
  %3149 = vmatprep.subr.bf16.mxu0 0
  %3150 = vmatpush1.bf16.msra.mxu0 0
  %3151 = vmatprep.subr.bf16.mxu0 0
  %3152 = vmatpush1.bf16.msra.mxu0 0
  %3153 = vmatprep.mubr.bf16.mxu0 0
  %3154 = vmatmul.mubr.bf16.gmra.mrb[0].mxu0 %v2959
  %v3155 = vpop.f32.mrb[0].mxu0
  %v3156 = vadd.f32 %v2904, %v3155
  %v3157 = vpop.f32.mrb[0].mxu0
  %v3158 = vadd.f32 %v2906, %v3157
  %v3159 = vpop.f32.mrb[0].mxu0
  %v3160 = vadd.f32 %v2908, %v3159
  %v3161 = vpop.f32.mrb[0].mxu0
  %v3162 = vadd.f32 %v2910, %v3161
  %3163 = vdwg.mxu0
  %3164 = vmatprep.subr.bf16.mxu0 %v3060
  %3165 = vmatpush1.bf16.msra.mxu0 %v3059
  %3166 = vmatprep.subr.bf16.mxu0 %v3064
  %3167 = vmatpush1.bf16.msra.mxu0 %v3063
  %3168 = vmatprep.subr.bf16.mxu0 %v3068
  %3169 = vmatpush1.bf16.msra.mxu0 %v3067
  %3170 = vmatprep.subr.bf16.mxu0 %v3072
  %3171 = vmatpush1.bf16.msra.mxu0 %v3071
  %3172 = vmatprep.subr.bf16.mxu0 %v3076
  %3173 = vmatpush1.bf16.msra.mxu0 %v3075
  %3174 = vmatprep.subr.bf16.mxu0 %v3080
  %3175 = vmatpush1.bf16.msra.mxu0 %v3079
  %3176 = vmatprep.subr.bf16.mxu0 %v3084
  %3177 = vmatpush1.bf16.msra.mxu0 %v3083
  %3178 = vmatprep.subr.bf16.mxu0 %v3088
  %3179 = vmatpush1.bf16.msra.mxu0 %v3087
  %3180 = vmatprep.subr.bf16.mxu0 0
  %3181 = vmatpush1.bf16.msra.mxu0 0
  %3182 = vmatprep.subr.bf16.mxu0 0
  %3183 = vmatpush1.bf16.msra.mxu0 0
  %3184 = vmatprep.subr.bf16.mxu0 0
  %3185 = vmatpush1.bf16.msra.mxu0 0
  %3186 = vmatprep.subr.bf16.mxu0 0
  %3187 = vmatpush1.bf16.msra.mxu0 0
  %3188 = vmatprep.subr.bf16.mxu0 0
  %3189 = vmatpush1.bf16.msra.mxu0 0
  %3190 = vmatprep.subr.bf16.mxu0 0
  %3191 = vmatpush1.bf16.msra.mxu0 0
  %3192 = vmatprep.subr.bf16.mxu0 0
  %3193 = vmatpush1.bf16.msra.mxu0 0
  %3194 = vmatprep.subr.bf16.mxu0 0
  %3195 = vmatpush1.bf16.msra.mxu0 0
  %3196 = vmatprep.mubr.bf16.mxu0 0
  %3197 = vmatmul.mubr.bf16.gmra.mrb[0].mxu0 %v2959
  %v3198 = vpop.f32.mrb[0].mxu0
  %v3199 = vadd.f32 %v2947, %v3198
  %v3200 = vpop.f32.mrb[0].mxu0
  %v3201 = vadd.f32 %v2949, %v3200
  %v3202 = vpop.f32.mrb[0].mxu0
  %v3203 = vadd.f32 %v2951, %v3202
  %v3204 = vpop.f32.mrb[0].mxu0
  %v3205 = vadd.f32 %v2953, %v3204
  %3206 = vdwg.mxu0
  %v3207 = vld [vmem:[%s3] sm:$0xf]
  %v3209 = vlaneseq
  %v3210 = vshrl.u32 %v3209, 7
  %v3211 = vsub.s32 0, %v3210
  %v3212 = vrot.slane %v3207, %v3211
  %v3213 = vlaneseq
  %v3214 = vshrl.u32 %v3213, 7
  %v3215 = vsub.s32 1, %v3214
  %v3216 = vrot.slane %v3207, %v3215
  %v3217 = vlaneseq
  %v3218 = vshrl.u32 %v3217, 7
  %v3219 = vsub.s32 2, %v3218
  %v3220 = vrot.slane %v3207, %v3219
  %v3221 = vlaneseq
  %v3222 = vshrl.u32 %v3221, 7
  %v3223 = vsub.s32 3, %v3222
  %v3224 = vrot.slane %v3207, %v3223
  %v3229 = vadd.f32 %v3156, %v3212
  %v3230 = vadd.f32 %v3158, %v3216
  %v3231 = vadd.f32 %v3199, %v3220
  %v3232 = vadd.f32 %v3201, %v3224
  %v3233 = vadd.f32 %v3160, %v3212
  %v3234 = vadd.f32 %v3162, %v3216
  %v3235 = vadd.f32 %v3203, %v3220
  %v3236 = vadd.f32 %v3205, %v3224
  %v3237 = vxor.u32 %v3229, 2147483648
  %v3238 = vxor.u32 %v3230, 2147483648
  %v3239 = vxor.u32 %v3231, 2147483648
  %v3240 = vxor.u32 %v3233, 2147483648
  %v3241 = vxor.u32 %v3234, 2147483648
  %v3242 = vxor.u32 %v3235, 2147483648
  %v3243 = vmul.f32 %v3237, 1.442695
  %v3244 = vpow.pop %v3243
  %v3245 = vmul.f32 %v3238, 1.442695
  %v3246 = vpow.pop %v3245
  %v3247 = vmul.f32 %v3239, 1.442695
  %v3248 = vpow.pop %v3247
  %v3249 = vmul.f32 %v3240, 1.442695
  %v3250 = vpow.pop %v3249
  %v3251 = vmul.f32 %v3241, 1.442695
  %v3252 = vpow.pop %v3251
  %v3253 = vmul.f32 %v3242, 1.442695
  %v3254 = vpow.pop %v3253
  %v3255 = vadd.f32 %v3244, 1.0
  %v3256 = vadd.f32 %v3246, 1.0
  %v3257 = vadd.f32 %v3248, 1.0
  %v3258 = vadd.f32 %v3250, 1.0
  %v3259 = vadd.f32 %v3252, 1.0
  %v3260 = vadd.f32 %v3254, 1.0
  %v3261 = vrcp.pop %v3255
  %v3262 = vmul.f32 1.0, %v3261
  %v3263 = vrcp.pop %v3256
  %v3264 = vmul.f32 1.0, %v3263
  %v3265 = vrcp.pop %v3257
  %v3266 = vmul.f32 1.0, %v3265
  %v3267 = vrcp.pop %v3258
  %v3268 = vmul.f32 1.0, %v3267
  %v3269 = vrcp.pop %v3259
  %v3270 = vmul.f32 1.0, %v3269
  %v3271 = vrcp.pop %v3260
  %v3272 = vmul.f32 1.0, %v3271
  %v3273 = vtanh.pop %v3232
  %v3274 = vtanh.pop %v3236
  %v3275 = vld [vmem:[#allocation3] sm:$0xff]
  %v3276 = vld [vmem:[#allocation3 + $0x8] sm:$0xff]
  %v3277 = vmul.f32 %v3264, %v3275
  %v3278 = vmul.f32 %v3270, %v3276
  %v3279 = vmul.f32 %v3262, %v3273
  %v3280 = vmul.f32 %v3268, %v3274
  %v3281 = vadd.f32 %v3277, %v3279
  %v3282 = vadd.f32 %v3278, %v3280
  %v3283 = vtanh.pop %v3281
  %v3284 = vtanh.pop %v3282
  %v3285 = vmul.f32 %v3266, %v3283
  %v3286 = vmul.f32 %v3272, %v3284
  %3287 = vst [vmem:[#allocation3] sm:$0xff] %v3281
  %3288 = vst [vmem:[#allocation3 + $0x8] sm:$0xff] %v3282
  %3289 = vst [vmem:[#allocation2] sm:$0xff] %v3285
  %3290 = vst [vmem:[#allocation2 + $0x8] sm:$0xff] %v3286
  %s3291 = scalar_lea.vmem %s0, 40
  %v3292 = vld [vmem:[%s3291] sm:$0xf]
  %v3293 = vld [vmem:[%s3291 + $0x4] sm:$0xf]
  %v3294 = vld [vmem:[%s1] sm:$0xff]
  %v3295 = vld [vmem:[%s1 + $0x8] sm:$0xff]
  %v3296 = vld [vmem:[%s1 + $0x10] sm:$0xff]
  %v3297 = vld [vmem:[%s1 + $0x18] sm:$0xff]
  %v3298 = vld [vmem:[%s1 + $0x20] sm:$0xff]
  %v3299 = vld [vmem:[%s1 + $0x28] sm:$0xff]
  %v3300 = vld [vmem:[%s1 + $0x30] sm:$0xff]
  %v3301 = vld [vmem:[%s1 + $0x38] sm:$0xff]
  %v3302 = vld [vmem:[%s1 + $0x40] sm:$0xff]
  %v3303 = vld [vmem:[%s1 + $0x48] sm:$0xff]
  %v3304 = vld [vmem:[%s1 + $0x50] sm:$0xff]
  %v3305 = vld [vmem:[%s1 + $0x58] sm:$0xff]
  %v3306 = vld [vmem:[%s1 + $0x60] sm:$0xff]
  %v3307 = vld [vmem:[%s1 + $0x68] sm:$0xff]
  %v3308 = vld [vmem:[%s1 + $0x70] sm:$0xff]
  %v3309 = vld [vmem:[%s1 + $0x78] sm:$0xff]
  %v3310 = vld [vmem:[%s1 + $0x80] sm:$0xff]
  %v3311 = vld [vmem:[%s1 + $0x88] sm:$0xff]
  %v3312 = vld [vmem:[%s1 + $0x90] sm:$0xff]
  %v3313 = vld [vmem:[%s1 + $0x98] sm:$0xff]
  %v3314 = vld [vmem:[%s1 + $0xa0] sm:$0xff]
  %v3315 = vld [vmem:[%s1 + $0xa8] sm:$0xff]
  %v3316 = vld [vmem:[%s1 + $0xb0] sm:$0xff]
  %v3317 = vld [vmem:[%s1 + $0xb8] sm:$0xff]
  %v3318 = vld [vmem:[%s1 + $0xc0] sm:$0xff]
  %v3319 = vld [vmem:[%s1 + $0xc8] sm:$0xff]
  %v3320 = vld [vmem:[%s1 + $0xd0] sm:$0xff]
  %v3321 = vld [vmem:[%s1 + $0xd8] sm:$0xff]
  %v3322 = vld [vmem:[%s1 + $0xe0] sm:$0xff]
  %v3323 = vld [vmem:[%s1 + $0xe8] sm:$0xff]
  %v3324 = vld [vmem:[%s1 + $0xf0] sm:$0xff]
  %v3325 = vld [vmem:[%s1 + $0xf8] sm:$0xff]
  %v3326 = vld [vmem:[#allocation2] sm:$0xff]
  %v3327 = vld [vmem:[#allocation2 + $0x8] sm:$0xff]
  %v3328 = vpack.c.bf16 %v3327, %v3326
  %v3329 = vld [vmem:[%s2] sm:$0xff]
  %v3330 = vld [vmem:[%s2 + $0x8] sm:$0xff]
  %v3331 = vld [vmem:[%s2 + $0x10] sm:$0xff]
  %v3332 = vld [vmem:[%s2 + $0x18] sm:$0xff]
  %v3333 = vld [vmem:[%s2 + $0x20] sm:$0xff]
  %v3334 = vld [vmem:[%s2 + $0x28] sm:$0xff]
  %v3335 = vld [vmem:[%s2 + $0x30] sm:$0xff]
  %v3336 = vld [vmem:[%s2 + $0x38] sm:$0xff]
  %v3337 = vld [vmem:[%s2 + $0x40] sm:$0xff]
  %v3338 = vld [vmem:[%s2 + $0x48] sm:$0xff]
  %v3339 = vld [vmem:[%s2 + $0x50] sm:$0xff]
  %v3340 = vld [vmem:[%s2 + $0x58] sm:$0xff]
  %v3341 = vld [vmem:[%s2 + $0x60] sm:$0xff]
  %v3342 = vld [vmem:[%s2 + $0x68] sm:$0xff]
  %v3343 = vld [vmem:[%s2 + $0x70] sm:$0xff]
  %v3344 = vld [vmem:[%s2 + $0x78] sm:$0xff]
  %v3345 = vld [vmem:[%s2 + $0x80] sm:$0xff]
  %v3346 = vld [vmem:[%s2 + $0x88] sm:$0xff]
  %v3347 = vld [vmem:[%s2 + $0x90] sm:$0xff]
  %v3348 = vld [vmem:[%s2 + $0x98] sm:$0xff]
  %v3349 = vld [vmem:[%s2 + $0xa0] sm:$0xff]
  %v3350 = vld [vmem:[%s2 + $0xa8] sm:$0xff]
  %v3351 = vld [vmem:[%s2 + $0xb0] sm:$0xff]
  %v3352 = vld [vmem:[%s2 + $0xb8] sm:$0xff]
  %v3353 = vld [vmem:[%s2 + $0xc0] sm:$0xff]
  %v3354 = vld [vmem:[%s2 + $0xc8] sm:$0xff]
  %v3355 = vld [vmem:[%s2 + $0xd0] sm:$0xff]
  %v3356 = vld [vmem:[%s2 + $0xd8] sm:$0xff]
  %v3357 = vld [vmem:[%s2 + $0xe0] sm:$0xff]
  %v3358 = vld [vmem:[%s2 + $0xe8] sm:$0xff]
  %v3359 = vld [vmem:[%s2 + $0xf0] sm:$0xff]
  %v3360 = vld [vmem:[%s2 + $0xf8] sm:$0xff]
  %v3393 = vunpack.c.l.b16 %v3329
  %v3394 = vunpack.c.h.b16 %v3329
  %v3395 = vunpack.c.l.b16 %v3330
  %v3396 = vunpack.c.h.b16 %v3330
  %v3397 = vunpack.c.l.b16 %v3331
  %v3398 = vunpack.c.h.b16 %v3331
  %v3399 = vunpack.c.l.b16 %v3332
  %v3400 = vunpack.c.h.b16 %v3332
  %v3401 = vunpack.c.l.b16 %v3333
  %v3402 = vunpack.c.h.b16 %v3333
  %v3403 = vunpack.c.l.b16 %v3334
  %v3404 = vunpack.c.h.b16 %v3334
  %v3405 = vunpack.c.l.b16 %v3335
  %v3406 = vunpack.c.h.b16 %v3335
  %v3407 = vunpack.c.l.b16 %v3336
  %v3408 = vunpack.c.h.b16 %v3336
  %v3409 = vunpack.c.l.b16 %v3337
  %v3410 = vunpack.c.h.b16 %v3337
  %v3411 = vunpack.c.l.b16 %v3338
  %v3412 = vunpack.c.h.b16 %v3338
  %v3413 = vunpack.c.l.b16 %v3339
  %v3414 = vunpack.c.h.b16 %v3339
  %v3415 = vunpack.c.l.b16 %v3340
  %v3416 = vunpack.c.h.b16 %v3340
  %v3417 = vunpack.c.l.b16 %v3341
  %v3418 = vunpack.c.h.b16 %v3341
  %v3419 = vunpack.c.l.b16 %v3342
  %v3420 = vunpack.c.h.b16 %v3342
  %v3421 = vunpack.c.l.b16 %v3343
  %v3422 = vunpack.c.h.b16 %v3343
  %v3423 = vunpack.c.l.b16 %v3344
  %v3424 = vunpack.c.h.b16 %v3344
  %v3425 = vunpack.c.l.b16 %v3345
  %v3426 = vunpack.c.h.b16 %v3345
  %v3427 = vunpack.c.l.b16 %v3346
  %v3428 = vunpack.c.h.b16 %v3346
  %v3429 = vunpack.c.l.b16 %v3347
  %v3430 = vunpack.c.h.b16 %v3347
  %v3431 = vunpack.c.l.b16 %v3348
  %v3432 = vunpack.c.h.b16 %v3348
  %v3433 = vunpack.c.l.b16 %v3349
  %v3434 = vunpack.c.h.b16 %v3349
  %v3435 = vunpack.c.l.b16 %v3350
  %v3436 = vunpack.c.h.b16 %v3350
  %v3437 = vunpack.c.l.b16 %v3351
  %v3438 = vunpack.c.h.b16 %v3351
  %v3439 = vunpack.c.l.b16 %v3352
  %v3440 = vunpack.c.h.b16 %v3352
  %v3441 = vunpack.c.l.b16 %v3353
  %v3442 = vunpack.c.h.b16 %v3353
  %v3443 = vunpack.c.l.b16 %v3354
  %v3444 = vunpack.c.h.b16 %v3354
  %v3445 = vunpack.c.l.b16 %v3355
  %v3446 = vunpack.c.h.b16 %v3355
  %v3447 = vunpack.c.l.b16 %v3356
  %v3448 = vunpack.c.h.b16 %v3356
  %v3449 = vunpack.c.l.b16 %v3357
  %v3450 = vunpack.c.h.b16 %v3357
  %v3451 = vunpack.c.l.b16 %v3358
  %v3452 = vunpack.c.h.b16 %v3358
  %v3453 = vunpack.c.l.b16 %v3359
  %v3454 = vunpack.c.h.b16 %v3359
  %v3455 = vunpack.c.l.b16 %v3360
  %v3456 = vunpack.c.h.b16 %v3360
  %v3457 = vpack.c.b16 %v3397, %v3393
  %v3458 = vpack.c.b16 %v3398, %v3394
  %v3459 = vpack.c.b16 %v3399, %v3395
  %v3460 = vpack.c.b16 %v3400, %v3396
  %v3461 = vpack.c.b16 %v3405, %v3401
  %v3462 = vpack.c.b16 %v3406, %v3402
  %v3463 = vpack.c.b16 %v3407, %v3403
  %v3464 = vpack.c.b16 %v3408, %v3404
  %v3465 = vpack.c.b16 %v3413, %v3409
  %v3466 = vpack.c.b16 %v3414, %v3410
  %v3467 = vpack.c.b16 %v3415, %v3411
  %v3468 = vpack.c.b16 %v3416, %v3412
  %v3469 = vpack.c.b16 %v3421, %v3417
  %v3470 = vpack.c.b16 %v3422, %v3418
  %v3471 = vpack.c.b16 %v3423, %v3419
  %v3472 = vpack.c.b16 %v3424, %v3420
  %v3473 = vpack.c.b16 %v3429, %v3425
  %v3474 = vpack.c.b16 %v3430, %v3426
  %v3475 = vpack.c.b16 %v3431, %v3427
  %v3476 = vpack.c.b16 %v3432, %v3428
  %v3477 = vpack.c.b16 %v3437, %v3433
  %v3478 = vpack.c.b16 %v3438, %v3434
  %v3479 = vpack.c.b16 %v3439, %v3435
  %v3480 = vpack.c.b16 %v3440, %v3436
  %v3481 = vpack.c.b16 %v3445, %v3441
  %v3482 = vpack.c.b16 %v3446, %v3442
  %v3483 = vpack.c.b16 %v3447, %v3443
  %v3484 = vpack.c.b16 %v3448, %v3444
  %v3485 = vpack.c.b16 %v3453, %v3449
  %v3486 = vpack.c.b16 %v3454, %v3450
  %v3487 = vpack.c.b16 %v3455, %v3451
  %v3488 = vpack.c.b16 %v3456, %v3452
  %3521 = vmatprep.subr.bf16.mxu0 %v3458
  %3522 = vmatpush1.bf16.msra.mxu0 %v3457
  %3523 = vmatprep.subr.bf16.mxu0 %v3462
  %3524 = vmatpush1.bf16.msra.mxu0 %v3461
  %3525 = vmatprep.subr.bf16.mxu0 %v3466
  %3526 = vmatpush1.bf16.msra.mxu0 %v3465
  %3527 = vmatprep.subr.bf16.mxu0 %v3470
  %3528 = vmatpush1.bf16.msra.mxu0 %v3469
  %3529 = vmatprep.subr.bf16.mxu0 %v3474
  %3530 = vmatpush1.bf16.msra.mxu0 %v3473
  %3531 = vmatprep.subr.bf16.mxu0 %v3478
  %3532 = vmatpush1.bf16.msra.mxu0 %v3477
  %3533 = vmatprep.subr.bf16.mxu0 %v3482
  %3534 = vmatpush1.bf16.msra.mxu0 %v3481
  %3535 = vmatprep.subr.bf16.mxu0 %v3486
  %3536 = vmatpush1.bf16.msra.mxu0 %v3485
  %3537 = vmatprep.subr.bf16.mxu0 0
  %3538 = vmatpush1.bf16.msra.mxu0 0
  %3539 = vmatprep.subr.bf16.mxu0 0
  %3540 = vmatpush1.bf16.msra.mxu0 0
  %3541 = vmatprep.subr.bf16.mxu0 0
  %3542 = vmatpush1.bf16.msra.mxu0 0
  %3543 = vmatprep.subr.bf16.mxu0 0
  %3544 = vmatpush1.bf16.msra.mxu0 0
  %3545 = vmatprep.subr.bf16.mxu0 0
  %3546 = vmatpush1.bf16.msra.mxu0 0
  %3547 = vmatprep.subr.bf16.mxu0 0
  %3548 = vmatpush1.bf16.msra.mxu0 0
  %3549 = vmatprep.subr.bf16.mxu0 0
  %3550 = vmatpush1.bf16.msra.mxu0 0
  %3551 = vmatprep.subr.bf16.mxu0 0
  %3552 = vmatpush1.bf16.msra.mxu0 0
  %3553 = vmatprep.mubr.bf16.mxu0 0
  %3554 = vmatmul.mubr.bf16.gmra.mrb[0].mxu0 %v3328
  %v3555 = vpop.f32.mrb[0].mxu0
  %v3556 = vadd.f32 0.0, %v3555
  %v3557 = vpop.f32.mrb[0].mxu0
  %v3558 = vadd.f32 0.0, %v3557
  %v3559 = vpop.f32.mrb[0].mxu0
  %v3560 = vadd.f32 0.0, %v3559
  %v3561 = vpop.f32.mrb[0].mxu0
  %v3562 = vadd.f32 0.0, %v3561
  %3563 = vdwg.mxu0
  %3564 = vmatprep.subr.bf16.mxu0 %v3460
  %3565 = vmatpush1.bf16.msra.mxu0 %v3459
  %3566 = vmatprep.subr.bf16.mxu0 %v3464
  %3567 = vmatpush1.bf16.msra.mxu0 %v3463
  %3568 = vmatprep.subr.bf16.mxu0 %v3468
  %3569 = vmatpush1.bf16.msra.mxu0 %v3467
  %3570 = vmatprep.subr.bf16.mxu0 %v3472
  %3571 = vmatpush1.bf16.msra.mxu0 %v3471
  %3572 = vmatprep.subr.bf16.mxu0 %v3476
  %3573 = vmatpush1.bf16.msra.mxu0 %v3475
  %3574 = vmatprep.subr.bf16.mxu0 %v3480
  %3575 = vmatpush1.bf16.msra.mxu0 %v3479
  %3576 = vmatprep.subr.bf16.mxu0 %v3484
  %3577 = vmatpush1.bf16.msra.mxu0 %v3483
  %3578 = vmatprep.subr.bf16.mxu0 %v3488
  %3579 = vmatpush1.bf16.msra.mxu0 %v3487
  %3580 = vmatprep.subr.bf16.mxu0 0
  %3581 = vmatpush1.bf16.msra.mxu0 0
  %3582 = vmatprep.subr.bf16.mxu0 0
  %3583 = vmatpush1.bf16.msra.mxu0 0
  %3584 = vmatprep.subr.bf16.mxu0 0
  %3585 = vmatpush1.bf16.msra.mxu0 0
  %3586 = vmatprep.subr.bf16.mxu0 0
  %3587 = vmatpush1.bf16.msra.mxu0 0
  %3588 = vmatprep.subr.bf16.mxu0 0
  %3589 = vmatpush1.bf16.msra.mxu0 0
  %3590 = vmatprep.subr.bf16.mxu0 0
  %3591 = vmatpush1.bf16.msra.mxu0 0
  %3592 = vmatprep.subr.bf16.mxu0 0
  %3593 = vmatpush1.bf16.msra.mxu0 0
  %3594 = vmatprep.subr.bf16.mxu0 0
  %3595 = vmatpush1.bf16.msra.mxu0 0
  %3596 = vmatprep.mubr.bf16.mxu0 0
  %3597 = vmatmul.mubr.bf16.gmra.mrb[0].mxu0 %v3328
  %v3598 = vpop.f32.mrb[0].mxu0
  %v3599 = vadd.f32 0.0, %v3598
  %v3600 = vpop.f32.mrb[0].mxu0
  %v3601 = vadd.f32 0.0, %v3600
  %v3602 = vpop.f32.mrb[0].mxu0
  %v3603 = vadd.f32 0.0, %v3602
  %v3604 = vpop.f32.mrb[0].mxu0
  %v3605 = vadd.f32 0.0, %v3604
  %3606 = vdwg.mxu0
  %v3609 = vunpack.c.l.b16 %v3292
  %v3610 = vunpack.c.l.b16 %v3293
  %v3611 = vpack.c.b16 %v3610, %v3609
  %v3645 = vunpack.c.l.b16 %v3294
  %v3646 = vunpack.c.h.b16 %v3294
  %v3647 = vunpack.c.l.b16 %v3295
  %v3648 = vunpack.c.h.b16 %v3295
  %v3649 = vunpack.c.l.b16 %v3296
  %v3650 = vunpack.c.h.b16 %v3296
  %v3651 = vunpack.c.l.b16 %v3297
  %v3652 = vunpack.c.h.b16 %v3297
  %v3653 = vunpack.c.l.b16 %v3298
  %v3654 = vunpack.c.h.b16 %v3298
  %v3655 = vunpack.c.l.b16 %v3299
  %v3656 = vunpack.c.h.b16 %v3299
  %v3657 = vunpack.c.l.b16 %v3300
  %v3658 = vunpack.c.h.b16 %v3300
  %v3659 = vunpack.c.l.b16 %v3301
  %v3660 = vunpack.c.h.b16 %v3301
  %v3661 = vunpack.c.l.b16 %v3302
  %v3662 = vunpack.c.h.b16 %v3302
  %v3663 = vunpack.c.l.b16 %v3303
  %v3664 = vunpack.c.h.b16 %v3303
  %v3665 = vunpack.c.l.b16 %v3304
  %v3666 = vunpack.c.h.b16 %v3304
  %v3667 = vunpack.c.l.b16 %v3305
  %v3668 = vunpack.c.h.b16 %v3305
  %v3669 = vunpack.c.l.b16 %v3306
  %v3670 = vunpack.c.h.b16 %v3306
  %v3671 = vunpack.c.l.b16 %v3307
  %v3672 = vunpack.c.h.b16 %v3307
  %v3673 = vunpack.c.l.b16 %v3308
  %v3674 = vunpack.c.h.b16 %v3308
  %v3675 = vunpack.c.l.b16 %v3309
  %v3676 = vunpack.c.h.b16 %v3309
  %v3677 = vunpack.c.l.b16 %v3310
  %v3678 = vunpack.c.h.b16 %v3310
  %v3679 = vunpack.c.l.b16 %v3311
  %v3680 = vunpack.c.h.b16 %v3311
  %v3681 = vunpack.c.l.b16 %v3312
  %v3682 = vunpack.c.h.b16 %v3312
  %v3683 = vunpack.c.l.b16 %v3313
  %v3684 = vunpack.c.h.b16 %v3313
  %v3685 = vunpack.c.l.b16 %v3314
  %v3686 = vunpack.c.h.b16 %v3314
  %v3687 = vunpack.c.l.b16 %v3315
  %v3688 = vunpack.c.h.b16 %v3315
  %v3689 = vunpack.c.l.b16 %v3316
  %v3690 = vunpack.c.h.b16 %v3316
  %v3691 = vunpack.c.l.b16 %v3317
  %v3692 = vunpack.c.h.b16 %v3317
  %v3693 = vunpack.c.l.b16 %v3318
  %v3694 = vunpack.c.h.b16 %v3318
  %v3695 = vunpack.c.l.b16 %v3319
  %v3696 = vunpack.c.h.b16 %v3319
  %v3697 = vunpack.c.l.b16 %v3320
  %v3698 = vunpack.c.h.b16 %v3320
  %v3699 = vunpack.c.l.b16 %v3321
  %v3700 = vunpack.c.h.b16 %v3321
  %v3701 = vunpack.c.l.b16 %v3322
  %v3702 = vunpack.c.h.b16 %v3322
  %v3703 = vunpack.c.l.b16 %v3323
  %v3704 = vunpack.c.h.b16 %v3323
  %v3705 = vunpack.c.l.b16 %v3324
  %v3706 = vunpack.c.h.b16 %v3324
  %v3707 = vunpack.c.l.b16 %v3325
  %v3708 = vunpack.c.h.b16 %v3325
  %v3709 = vpack.c.b16 %v3649, %v3645
  %v3710 = vpack.c.b16 %v3650, %v3646
  %v3711 = vpack.c.b16 %v3651, %v3647
  %v3712 = vpack.c.b16 %v3652, %v3648
  %v3713 = vpack.c.b16 %v3657, %v3653
  %v3714 = vpack.c.b16 %v3658, %v3654
  %v3715 = vpack.c.b16 %v3659, %v3655
  %v3716 = vpack.c.b16 %v3660, %v3656
  %v3717 = vpack.c.b16 %v3665, %v3661
  %v3718 = vpack.c.b16 %v3666, %v3662
  %v3719 = vpack.c.b16 %v3667, %v3663
  %v3720 = vpack.c.b16 %v3668, %v3664
  %v3721 = vpack.c.b16 %v3673, %v3669
  %v3722 = vpack.c.b16 %v3674, %v3670
  %v3723 = vpack.c.b16 %v3675, %v3671
  %v3724 = vpack.c.b16 %v3676, %v3672
  %v3725 = vpack.c.b16 %v3681, %v3677
  %v3726 = vpack.c.b16 %v3682, %v3678
  %v3727 = vpack.c.b16 %v3683, %v3679
  %v3728 = vpack.c.b16 %v3684, %v3680
  %v3729 = vpack.c.b16 %v3689, %v3685
  %v3730 = vpack.c.b16 %v3690, %v3686
  %v3731 = vpack.c.b16 %v3691, %v3687
  %v3732 = vpack.c.b16 %v3692, %v3688
  %v3733 = vpack.c.b16 %v3697, %v3693
  %v3734 = vpack.c.b16 %v3698, %v3694
  %v3735 = vpack.c.b16 %v3699, %v3695
  %v3736 = vpack.c.b16 %v3700, %v3696
  %v3737 = vpack.c.b16 %v3705, %v3701
  %v3738 = vpack.c.b16 %v3706, %v3702
  %v3739 = vpack.c.b16 %v3707, %v3703
  %v3740 = vpack.c.b16 %v3708, %v3704
  %3773 = vmatprep.subr.bf16.mxu0 %v3710
  %3774 = vmatpush1.bf16.msra.mxu0 %v3709
  %3775 = vmatprep.subr.bf16.mxu0 %v3714
  %3776 = vmatpush1.bf16.msra.mxu0 %v3713
  %3777 = vmatprep.subr.bf16.mxu0 %v3718
  %3778 = vmatpush1.bf16.msra.mxu0 %v3717
  %3779 = vmatprep.subr.bf16.mxu0 %v3722
  %3780 = vmatpush1.bf16.msra.mxu0 %v3721
  %3781 = vmatprep.subr.bf16.mxu0 %v3726
  %3782 = vmatpush1.bf16.msra.mxu0 %v3725
  %3783 = vmatprep.subr.bf16.mxu0 %v3730
  %3784 = vmatpush1.bf16.msra.mxu0 %v3729
  %3785 = vmatprep.subr.bf16.mxu0 %v3734
  %3786 = vmatpush1.bf16.msra.mxu0 %v3733
  %3787 = vmatprep.subr.bf16.mxu0 %v3738
  %3788 = vmatpush1.bf16.msra.mxu0 %v3737
  %3789 = vmatprep.subr.bf16.mxu0 0
  %3790 = vmatpush1.bf16.msra.mxu0 0
  %3791 = vmatprep.subr.bf16.mxu0 0
  %3792 = vmatpush1.bf16.msra.mxu0 0
  %3793 = vmatprep.subr.bf16.mxu0 0
  %3794 = vmatpush1.bf16.msra.mxu0 0
  %3795 = vmatprep.subr.bf16.mxu0 0
  %3796 = vmatpush1.bf16.msra.mxu0 0
  %3797 = vmatprep.subr.bf16.mxu0 0
  %3798 = vmatpush1.bf16.msra.mxu0 0
  %3799 = vmatprep.subr.bf16.mxu0 0
  %3800 = vmatpush1.bf16.msra.mxu0 0
  %3801 = vmatprep.subr.bf16.mxu0 0
  %3802 = vmatpush1.bf16.msra.mxu0 0
  %3803 = vmatprep.subr.bf16.mxu0 0
  %3804 = vmatpush1.bf16.msra.mxu0 0
  %3805 = vmatprep.mubr.bf16.mxu0 0
  %3806 = vmatmul.mubr.bf16.gmra.mrb[0].mxu0 %v3611
  %v3807 = vpop.f32.mrb[0].mxu0
  %v3808 = vadd.f32 %v3556, %v3807
  %v3809 = vpop.f32.mrb[0].mxu0
  %v3810 = vadd.f32 %v3558, %v3809
  %v3811 = vpop.f32.mrb[0].mxu0
  %v3812 = vadd.f32 %v3560, %v3811
  %v3813 = vpop.f32.mrb[0].mxu0
  %v3814 = vadd.f32 %v3562, %v3813
  %3815 = vdwg.mxu0
  %3816 = vmatprep.subr.bf16.mxu0 %v3712
  %3817 = vmatpush1.bf16.msra.mxu0 %v3711
  %3818 = vmatprep.subr.bf16.mxu0 %v3716
  %3819 = vmatpush1.bf16.msra.mxu0 %v3715
  %3820 = vmatprep.subr.bf16.mxu0 %v3720
  %3821 = vmatpush1.bf16.msra.mxu0 %v3719
  %3822 = vmatprep.subr.bf16.mxu0 %v3724
  %3823 = vmatpush1.bf16.msra.mxu0 %v3723
  %3824 = vmatprep.subr.bf16.mxu0 %v3728
  %3825 = vmatpush1.bf16.msra.mxu0 %v3727
  %3826 = vmatprep.subr.bf16.mxu0 %v3732
  %3827 = vmatpush1.bf16.msra.mxu0 %v3731
  %3828 = vmatprep.subr.bf16.mxu0 %v3736
  %3829 = vmatpush1.bf16.msra.mxu0 %v3735
  %3830 = vmatprep.subr.bf16.mxu0 %v3740
  %3831 = vmatpush1.bf16.msra.mxu0 %v3739
  %3832 = vmatprep.subr.bf16.mxu0 0
  %3833 = vmatpush1.bf16.msra.mxu0 0
  %3834 = vmatprep.subr.bf16.mxu0 0
  %3835 = vmatpush1.bf16.msra.mxu0 0
  %3836 = vmatprep.subr.bf16.mxu0 0
  %3837 = vmatpush1.bf16.msra.mxu0 0
  %3838 = vmatprep.subr.bf16.mxu0 0
  %3839 = vmatpush1.bf16.msra.mxu0 0
  %3840 = vmatprep.subr.bf16.mxu0 0
  %3841 = vmatpush1.bf16.msra.mxu0 0
  %3842 = vmatprep.subr.bf16.mxu0 0
  %3843 = vmatpush1.bf16.msra.mxu0 0
  %3844 = vmatprep.subr.bf16.mxu0 0
  %3845 = vmatpush1.bf16.msra.mxu0 0
  %3846 = vmatprep.subr.bf16.mxu0 0
  %3847 = vmatpush1.bf16.msra.mxu0 0
  %3848 = vmatprep.mubr.bf16.mxu0 0
  %3849 = vmatmul.mubr.bf16.gmra.mrb[0].mxu0 %v3611
  %v3850 = vpop.f32.mrb[0].mxu0
  %v3851 = vadd.f32 %v3599, %v3850
  %v3852 = vpop.f32.mrb[0].mxu0
  %v3853 = vadd.f32 %v3601, %v3852
  %v3854 = vpop.f32.mrb[0].mxu0
  %v3855 = vadd.f32 %v3603, %v3854
  %v3856 = vpop.f32.mrb[0].mxu0
  %v3857 = vadd.f32 %v3605, %v3856
  %3858 = vdwg.mxu0
  %v3859 = vld [vmem:[%s3] sm:$0xf]
  %v3861 = vlaneseq
  %v3862 = vshrl.u32 %v3861, 7
  %v3863 = vsub.s32 0, %v3862
  %v3864 = vrot.slane %v3859, %v3863
  %v3865 = vlaneseq
  %v3866 = vshrl.u32 %v3865, 7
  %v3867 = vsub.s32 1, %v3866
  %v3868 = vrot.slane %v3859, %v3867
  %v3869 = vlaneseq
  %v3870 = vshrl.u32 %v3869, 7
  %v3871 = vsub.s32 2, %v3870
  %v3872 = vrot.slane %v3859, %v3871
  %v3873 = vlaneseq
  %v3874 = vshrl.u32 %v3873, 7
  %v3875 = vsub.s32 3, %v3874
  %v3876 = vrot.slane %v3859, %v3875
  %v3881 = vadd.f32 %v3808, %v3864
  %v3882 = vadd.f32 %v3810, %v3868
  %v3883 = vadd.f32 %v3851, %v3872
  %v3884 = vadd.f32 %v3853, %v3876
  %v3885 = vadd.f32 %v3812, %v3864
  %v3886 = vadd.f32 %v3814, %v3868
  %v3887 = vadd.f32 %v3855, %v3872
  %v3888 = vadd.f32 %v3857, %v3876
  %v3889 = vxor.u32 %v3881, 2147483648
  %v3890 = vxor.u32 %v3882, 2147483648
  %v3891 = vxor.u32 %v3883, 2147483648
  %v3892 = vxor.u32 %v3885, 2147483648
  %v3893 = vxor.u32 %v3886, 2147483648
  %v3894 = vxor.u32 %v3887, 2147483648
  %v3895 = vmul.f32 %v3889, 1.442695
  %v3896 = vpow.pop %v3895
  %v3897 = vmul.f32 %v3890, 1.442695
  %v3898 = vpow.pop %v3897
  %v3899 = vmul.f32 %v3891, 1.442695
  %v3900 = vpow.pop %v3899
  %v3901 = vmul.f32 %v3892, 1.442695
  %v3902 = vpow.pop %v3901
  %v3903 = vmul.f32 %v3893, 1.442695
  %v3904 = vpow.pop %v3903
  %v3905 = vmul.f32 %v3894, 1.442695
  %v3906 = vpow.pop %v3905
  %v3907 = vadd.f32 %v3896, 1.0
  %v3908 = vadd.f32 %v3898, 1.0
  %v3909 = vadd.f32 %v3900, 1.0
  %v3910 = vadd.f32 %v3902, 1.0
  %v3911 = vadd.f32 %v3904, 1.0
  %v3912 = vadd.f32 %v3906, 1.0
  %v3913 = vrcp.pop %v3907
  %v3914 = vmul.f32 1.0, %v3913
  %v3915 = vrcp.pop %v3908
  %v3916 = vmul.f32 1.0, %v3915
  %v3917 = vrcp.pop %v3909
  %v3918 = vmul.f32 1.0, %v3917
  %v3919 = vrcp.pop %v3910
  %v3920 = vmul.f32 1.0, %v3919
  %v3921 = vrcp.pop %v3911
  %v3922 = vmul.f32 1.0, %v3921
  %v3923 = vrcp.pop %v3912
  %v3924 = vmul.f32 1.0, %v3923
  %v3925 = vtanh.pop %v3884
  %v3926 = vtanh.pop %v3888
  %v3927 = vld [vmem:[#allocation3] sm:$0xff]
  %v3928 = vld [vmem:[#allocation3 + $0x8] sm:$0xff]
  %v3929 = vmul.f32 %v3916, %v3927
  %v3930 = vmul.f32 %v3922, %v3928
  %v3931 = vmul.f32 %v3914, %v3925
  %v3932 = vmul.f32 %v3920, %v3926
  %v3933 = vadd.f32 %v3929, %v3931
  %v3934 = vadd.f32 %v3930, %v3932
  %v3935 = vtanh.pop %v3933
  %v3936 = vtanh.pop %v3934
  %v3937 = vmul.f32 %v3918, %v3935
  %v3938 = vmul.f32 %v3924, %v3936
  %3939 = vst [vmem:[#allocation3] sm:$0xff] %v3933
  %3940 = vst [vmem:[#allocation3 + $0x8] sm:$0xff] %v3934
  %3941 = vst [vmem:[#allocation2] sm:$0xff] %v3937
  %3942 = vst [vmem:[#allocation2 + $0x8] sm:$0xff] %v3938
  %s3943 = scalar_lea.vmem %s0, 48
  %v3944 = vld [vmem:[%s3943] sm:$0xf]
  %v3945 = vld [vmem:[%s3943 + $0x4] sm:$0xf]
  %v3946 = vld [vmem:[%s1] sm:$0xff]
  %v3947 = vld [vmem:[%s1 + $0x8] sm:$0xff]
  %v3948 = vld [vmem:[%s1 + $0x10] sm:$0xff]
  %v3949 = vld [vmem:[%s1 + $0x18] sm:$0xff]
  %v3950 = vld [vmem:[%s1 + $0x20] sm:$0xff]
  %v3951 = vld [vmem:[%s1 + $0x28] sm:$0xff]
  %v3952 = vld [vmem:[%s1 + $0x30] sm:$0xff]
  %v3953 = vld [vmem:[%s1 + $0x38] sm:$0xff]
  %v3954 = vld [vmem:[%s1 + $0x40] sm:$0xff]
  %v3955 = vld [vmem:[%s1 + $0x48] sm:$0xff]
  %v3956 = vld [vmem:[%s1 + $0x50] sm:$0xff]
  %v3957 = vld [vmem:[%s1 + $0x58] sm:$0xff]
  %v3958 = vld [vmem:[%s1 + $0x60] sm:$0xff]
  %v3959 = vld [vmem:[%s1 + $0x68] sm:$0xff]
  %v3960 = vld [vmem:[%s1 + $0x70] sm:$0xff]
  %v3961 = vld [vmem:[%s1 + $0x78] sm:$0xff]
  %v3962 = vld [vmem:[%s1 + $0x80] sm:$0xff]
  %v3963 = vld [vmem:[%s1 + $0x88] sm:$0xff]
  %v3964 = vld [vmem:[%s1 + $0x90] sm:$0xff]
  %v3965 = vld [vmem:[%s1 + $0x98] sm:$0xff]
  %v3966 = vld [vmem:[%s1 + $0xa0] sm:$0xff]
  %v3967 = vld [vmem:[%s1 + $0xa8] sm:$0xff]
  %v3968 = vld [vmem:[%s1 + $0xb0] sm:$0xff]
  %v3969 = vld [vmem:[%s1 + $0xb8] sm:$0xff]
  %v3970 = vld [vmem:[%s1 + $0xc0] sm:$0xff]
  %v3971 = vld [vmem:[%s1 + $0xc8] sm:$0xff]
  %v3972 = vld [vmem:[%s1 + $0xd0] sm:$0xff]
  %v3973 = vld [vmem:[%s1 + $0xd8] sm:$0xff]
  %v3974 = vld [vmem:[%s1 + $0xe0] sm:$0xff]
  %v3975 = vld [vmem:[%s1 + $0xe8] sm:$0xff]
  %v3976 = vld [vmem:[%s1 + $0xf0] sm:$0xff]
  %v3977 = vld [vmem:[%s1 + $0xf8] sm:$0xff]
  %v3978 = vld [vmem:[#allocation2] sm:$0xff]
  %v3979 = vld [vmem:[#allocation2 + $0x8] sm:$0xff]
  %v3980 = vpack.c.bf16 %v3979, %v3978
  %v3981 = vld [vmem:[%s2] sm:$0xff]
  %v3982 = vld [vmem:[%s2 + $0x8] sm:$0xff]
  %v3983 = vld [vmem:[%s2 + $0x10] sm:$0xff]
  %v3984 = vld [vmem:[%s2 + $0x18] sm:$0xff]
  %v3985 = vld [vmem:[%s2 + $0x20] sm:$0xff]
  %v3986 = vld [vmem:[%s2 + $0x28] sm:$0xff]
  %v3987 = vld [vmem:[%s2 + $0x30] sm:$0xff]
  %v3988 = vld [vmem:[%s2 + $0x38] sm:$0xff]
  %v3989 = vld [vmem:[%s2 + $0x40] sm:$0xff]
  %v3990 = vld [vmem:[%s2 + $0x48] sm:$0xff]
  %v3991 = vld [vmem:[%s2 + $0x50] sm:$0xff]
  %v3992 = vld [vmem:[%s2 + $0x58] sm:$0xff]
  %v3993 = vld [vmem:[%s2 + $0x60] sm:$0xff]
  %v3994 = vld [vmem:[%s2 + $0x68] sm:$0xff]
  %v3995 = vld [vmem:[%s2 + $0x70] sm:$0xff]
  %v3996 = vld [vmem:[%s2 + $0x78] sm:$0xff]
  %v3997 = vld [vmem:[%s2 + $0x80] sm:$0xff]
  %v3998 = vld [vmem:[%s2 + $0x88] sm:$0xff]
  %v3999 = vld [vmem:[%s2 + $0x90] sm:$0xff]
  %v4000 = vld [vmem:[%s2 + $0x98] sm:$0xff]
  %v4001 = vld [vmem:[%s2 + $0xa0] sm:$0xff]
  %v4002 = vld [vmem:[%s2 + $0xa8] sm:$0xff]
  %v4003 = vld [vmem:[%s2 + $0xb0] sm:$0xff]
  %v4004 = vld [vmem:[%s2 + $0xb8] sm:$0xff]
  %v4005 = vld [vmem:[%s2 + $0xc0] sm:$0xff]
  %v4006 = vld [vmem:[%s2 + $0xc8] sm:$0xff]
  %v4007 = vld [vmem:[%s2 + $0xd0] sm:$0xff]
  %v4008 = vld [vmem:[%s2 + $0xd8] sm:$0xff]
  %v4009 = vld [vmem:[%s2 + $0xe0] sm:$0xff]
  %v4010 = vld [vmem:[%s2 + $0xe8] sm:$0xff]
  %v4011 = vld [vmem:[%s2 + $0xf0] sm:$0xff]
  %v4012 = vld [vmem:[%s2 + $0xf8] sm:$0xff]
  %v4045 = vunpack.c.l.b16 %v3981
  %v4046 = vunpack.c.h.b16 %v3981
  %v4047 = vunpack.c.l.b16 %v3982
  %v4048 = vunpack.c.h.b16 %v3982
  %v4049 = vunpack.c.l.b16 %v3983
  %v4050 = vunpack.c.h.b16 %v3983
  %v4051 = vunpack.c.l.b16 %v3984
  %v4052 = vunpack.c.h.b16 %v3984
  %v4053 = vunpack.c.l.b16 %v3985
  %v4054 = vunpack.c.h.b16 %v3985
  %v4055 = vunpack.c.l.b16 %v3986
  %v4056 = vunpack.c.h.b16 %v3986
  %v4057 = vunpack.c.l.b16 %v3987
  %v4058 = vunpack.c.h.b16 %v3987
  %v4059 = vunpack.c.l.b16 %v3988
  %v4060 = vunpack.c.h.b16 %v3988
  %v4061 = vunpack.c.l.b16 %v3989
  %v4062 = vunpack.c.h.b16 %v3989
  %v4063 = vunpack.c.l.b16 %v3990
  %v4064 = vunpack.c.h.b16 %v3990
  %v4065 = vunpack.c.l.b16 %v3991
  %v4066 = vunpack.c.h.b16 %v3991
  %v4067 = vunpack.c.l.b16 %v3992
  %v4068 = vunpack.c.h.b16 %v3992
  %v4069 = vunpack.c.l.b16 %v3993
  %v4070 = vunpack.c.h.b16 %v3993
  %v4071 = vunpack.c.l.b16 %v3994
  %v4072 = vunpack.c.h.b16 %v3994
  %v4073 = vunpack.c.l.b16 %v3995
  %v4074 = vunpack.c.h.b16 %v3995
  %v4075 = vunpack.c.l.b16 %v3996
  %v4076 = vunpack.c.h.b16 %v3996
  %v4077 = vunpack.c.l.b16 %v3997
  %v4078 = vunpack.c.h.b16 %v3997
  %v4079 = vunpack.c.l.b16 %v3998
  %v4080 = vunpack.c.h.b16 %v3998
  %v4081 = vunpack.c.l.b16 %v3999
  %v4082 = vunpack.c.h.b16 %v3999
  %v4083 = vunpack.c.l.b16 %v4000
  %v4084 = vunpack.c.h.b16 %v4000
  %v4085 = vunpack.c.l.b16 %v4001
  %v4086 = vunpack.c.h.b16 %v4001
  %v4087 = vunpack.c.l.b16 %v4002
  %v4088 = vunpack.c.h.b16 %v4002
  %v4089 = vunpack.c.l.b16 %v4003
  %v4090 = vunpack.c.h.b16 %v4003
  %v4091 = vunpack.c.l.b16 %v4004
  %v4092 = vunpack.c.h.b16 %v4004
  %v4093 = vunpack.c.l.b16 %v4005
  %v4094 = vunpack.c.h.b16 %v4005
  %v4095 = vunpack.c.l.b16 %v4006
  %v4096 = vunpack.c.h.b16 %v4006
  %v4097 = vunpack.c.l.b16 %v4007
  %v4098 = vunpack.c.h.b16 %v4007
  %v4099 = vunpack.c.l.b16 %v4008
  %v4100 = vunpack.c.h.b16 %v4008
  %v4101 = vunpack.c.l.b16 %v4009
  %v4102 = vunpack.c.h.b16 %v4009
  %v4103 = vunpack.c.l.b16 %v4010
  %v4104 = vunpack.c.h.b16 %v4010
  %v4105 = vunpack.c.l.b16 %v4011
  %v4106 = vunpack.c.h.b16 %v4011
  %v4107 = vunpack.c.l.b16 %v4012
  %v4108 = vunpack.c.h.b16 %v4012
  %v4109 = vpack.c.b16 %v4049, %v4045
  %v4110 = vpack.c.b16 %v4050, %v4046
  %v4111 = vpack.c.b16 %v4051, %v4047
  %v4112 = vpack.c.b16 %v4052, %v4048
  %v4113 = vpack.c.b16 %v4057, %v4053
  %v4114 = vpack.c.b16 %v4058, %v4054
  %v4115 = vpack.c.b16 %v4059, %v4055
  %v4116 = vpack.c.b16 %v4060, %v4056
  %v4117 = vpack.c.b16 %v4065, %v4061
  %v4118 = vpack.c.b16 %v4066, %v4062
  %v4119 = vpack.c.b16 %v4067, %v4063
  %v4120 = vpack.c.b16 %v4068, %v4064
  %v4121 = vpack.c.b16 %v4073, %v4069
  %v4122 = vpack.c.b16 %v4074, %v4070
  %v4123 = vpack.c.b16 %v4075, %v4071
  %v4124 = vpack.c.b16 %v4076, %v4072
  %v4125 = vpack.c.b16 %v4081, %v4077
  %v4126 = vpack.c.b16 %v4082, %v4078
  %v4127 = vpack.c.b16 %v4083, %v4079
  %v4128 = vpack.c.b16 %v4084, %v4080
  %v4129 = vpack.c.b16 %v4089, %v4085
  %v4130 = vpack.c.b16 %v4090, %v4086
  %v4131 = vpack.c.b16 %v4091, %v4087
  %v4132 = vpack.c.b16 %v4092, %v4088
  %v4133 = vpack.c.b16 %v4097, %v4093
  %v4134 = vpack.c.b16 %v4098, %v4094
  %v4135 = vpack.c.b16 %v4099, %v4095
  %v4136 = vpack.c.b16 %v4100, %v4096
  %v4137 = vpack.c.b16 %v4105, %v4101
  %v4138 = vpack.c.b16 %v4106, %v4102
  %v4139 = vpack.c.b16 %v4107, %v4103
  %v4140 = vpack.c.b16 %v4108, %v4104
  %4173 = vmatprep.subr.bf16.mxu0 %v4110
  %4174 = vmatpush1.bf16.msra.mxu0 %v4109
  %4175 = vmatprep.subr.bf16.mxu0 %v4114
  %4176 = vmatpush1.bf16.msra.mxu0 %v4113
  %4177 = vmatprep.subr.bf16.mxu0 %v4118
  %4178 = vmatpush1.bf16.msra.mxu0 %v4117
  %4179 = vmatprep.subr.bf16.mxu0 %v4122
  %4180 = vmatpush1.bf16.msra.mxu0 %v4121
  %4181 = vmatprep.subr.bf16.mxu0 %v4126
  %4182 = vmatpush1.bf16.msra.mxu0 %v4125
  %4183 = vmatprep.subr.bf16.mxu0 %v4130
  %4184 = vmatpush1.bf16.msra.mxu0 %v4129
  %4185 = vmatprep.subr.bf16.mxu0 %v4134
  %4186 = vmatpush1.bf16.msra.mxu0 %v4133
  %4187 = vmatprep.subr.bf16.mxu0 %v4138
  %4188 = vmatpush1.bf16.msra.mxu0 %v4137
  %4189 = vmatprep.subr.bf16.mxu0 0
  %4190 = vmatpush1.bf16.msra.mxu0 0
  %4191 = vmatprep.subr.bf16.mxu0 0
  %4192 = vmatpush1.bf16.msra.mxu0 0
  %4193 = vmatprep.subr.bf16.mxu0 0
  %4194 = vmatpush1.bf16.msra.mxu0 0
  %4195 = vmatprep.subr.bf16.mxu0 0
  %4196 = vmatpush1.bf16.msra.mxu0 0
  %4197 = vmatprep.subr.bf16.mxu0 0
  %4198 = vmatpush1.bf16.msra.mxu0 0
  %4199 = vmatprep.subr.bf16.mxu0 0
  %4200 = vmatpush1.bf16.msra.mxu0 0
  %4201 = vmatprep.subr.bf16.mxu0 0
  %4202 = vmatpush1.bf16.msra.mxu0 0
  %4203 = vmatprep.subr.bf16.mxu0 0
  %4204 = vmatpush1.bf16.msra.mxu0 0
  %4205 = vmatprep.mubr.bf16.mxu0 0
  %4206 = vmatmul.mubr.bf16.gmra.mrb[0].mxu0 %v3980
  %v4207 = vpop.f32.mrb[0].mxu0
  %v4208 = vadd.f32 0.0, %v4207
  %v4209 = vpop.f32.mrb[0].mxu0
  %v4210 = vadd.f32 0.0, %v4209
  %v4211 = vpop.f32.mrb[0].mxu0
  %v4212 = vadd.f32 0.0, %v4211
  %v4213 = vpop.f32.mrb[0].mxu0
  %v4214 = vadd.f32 0.0, %v4213
  %4215 = vdwg.mxu0
  %4216 = vmatprep.subr.bf16.mxu0 %v4112
  %4217 = vmatpush1.bf16.msra.mxu0 %v4111
  %4218 = vmatprep.subr.bf16.mxu0 %v4116
  %4219 = vmatpush1.bf16.msra.mxu0 %v4115
  %4220 = vmatprep.subr.bf16.mxu0 %v4120
  %4221 = vmatpush1.bf16.msra.mxu0 %v4119
  %4222 = vmatprep.subr.bf16.mxu0 %v4124
  %4223 = vmatpush1.bf16.msra.mxu0 %v4123
  %4224 = vmatprep.subr.bf16.mxu0 %v4128
  %4225 = vmatpush1.bf16.msra.mxu0 %v4127
  %4226 = vmatprep.subr.bf16.mxu0 %v4132
  %4227 = vmatpush1.bf16.msra.mxu0 %v4131
  %4228 = vmatprep.subr.bf16.mxu0 %v4136
  %4229 = vmatpush1.bf16.msra.mxu0 %v4135
  %4230 = vmatprep.subr.bf16.mxu0 %v4140
  %4231 = vmatpush1.bf16.msra.mxu0 %v4139
  %4232 = vmatprep.subr.bf16.mxu0 0
  %4233 = vmatpush1.bf16.msra.mxu0 0
  %4234 = vmatprep.subr.bf16.mxu0 0
  %4235 = vmatpush1.bf16.msra.mxu0 0
  %4236 = vmatprep.subr.bf16.mxu0 0
  %4237 = vmatpush1.bf16.msra.mxu0 0
  %4238 = vmatprep.subr.bf16.mxu0 0
  %4239 = vmatpush1.bf16.msra.mxu0 0
  %4240 = vmatprep.subr.bf16.mxu0 0
  %4241 = vmatpush1.bf16.msra.mxu0 0
  %4242 = vmatprep.subr.bf16.mxu0 0
  %4243 = vmatpush1.bf16.msra.mxu0 0
  %4244 = vmatprep.subr.bf16.mxu0 0
  %4245 = vmatpush1.bf16.msra.mxu0 0
  %4246 = vmatprep.subr.bf16.mxu0 0
  %4247 = vmatpush1.bf16.msra.mxu0 0
  %4248 = vmatprep.mubr.bf16.mxu0 0
  %4249 = vmatmul.mubr.bf16.gmra.mrb[0].mxu0 %v3980
  %v4250 = vpop.f32.mrb[0].mxu0
  %v4251 = vadd.f32 0.0, %v4250
  %v4252 = vpop.f32.mrb[0].mxu0
  %v4253 = vadd.f32 0.0, %v4252
  %v4254 = vpop.f32.mrb[0].mxu0
  %v4255 = vadd.f32 0.0, %v4254
  %v4256 = vpop.f32.mrb[0].mxu0
  %v4257 = vadd.f32 0.0, %v4256
  %4258 = vdwg.mxu0
  %v4261 = vunpack.c.l.b16 %v3944
  %v4262 = vunpack.c.l.b16 %v3945
  %v4263 = vpack.c.b16 %v4262, %v4261
  %v4297 = vunpack.c.l.b16 %v3946
  %v4298 = vunpack.c.h.b16 %v3946
  %v4299 = vunpack.c.l.b16 %v3947
  %v4300 = vunpack.c.h.b16 %v3947
  %v4301 = vunpack.c.l.b16 %v3948
  %v4302 = vunpack.c.h.b16 %v3948
  %v4303 = vunpack.c.l.b16 %v3949
  %v4304 = vunpack.c.h.b16 %v3949
  %v4305 = vunpack.c.l.b16 %v3950
  %v4306 = vunpack.c.h.b16 %v3950
  %v4307 = vunpack.c.l.b16 %v3951
  %v4308 = vunpack.c.h.b16 %v3951
  %v4309 = vunpack.c.l.b16 %v3952
  %v4310 = vunpack.c.h.b16 %v3952
  %v4311 = vunpack.c.l.b16 %v3953
  %v4312 = vunpack.c.h.b16 %v3953
  %v4313 = vunpack.c.l.b16 %v3954
  %v4314 = vunpack.c.h.b16 %v3954
  %v4315 = vunpack.c.l.b16 %v3955
  %v4316 = vunpack.c.h.b16 %v3955
  %v4317 = vunpack.c.l.b16 %v3956
  %v4318 = vunpack.c.h.b16 %v3956
  %v4319 = vunpack.c.l.b16 %v3957
  %v4320 = vunpack.c.h.b16 %v3957
  %v4321 = vunpack.c.l.b16 %v3958
  %v4322 = vunpack.c.h.b16 %v3958
  %v4323 = vunpack.c.l.b16 %v3959
  %v4324 = vunpack.c.h.b16 %v3959
  %v4325 = vunpack.c.l.b16 %v3960
  %v4326 = vunpack.c.h.b16 %v3960
  %v4327 = vunpack.c.l.b16 %v3961
  %v4328 = vunpack.c.h.b16 %v3961
  %v4329 = vunpack.c.l.b16 %v3962
  %v4330 = vunpack.c.h.b16 %v3962
  %v4331 = vunpack.c.l.b16 %v3963
  %v4332 = vunpack.c.h.b16 %v3963
  %v4333 = vunpack.c.l.b16 %v3964
  %v4334 = vunpack.c.h.b16 %v3964
  %v4335 = vunpack.c.l.b16 %v3965
  %v4336 = vunpack.c.h.b16 %v3965
  %v4337 = vunpack.c.l.b16 %v3966
  %v4338 = vunpack.c.h.b16 %v3966
  %v4339 = vunpack.c.l.b16 %v3967
  %v4340 = vunpack.c.h.b16 %v3967
  %v4341 = vunpack.c.l.b16 %v3968
  %v4342 = vunpack.c.h.b16 %v3968
  %v4343 = vunpack.c.l.b16 %v3969
  %v4344 = vunpack.c.h.b16 %v3969
  %v4345 = vunpack.c.l.b16 %v3970
  %v4346 = vunpack.c.h.b16 %v3970
  %v4347 = vunpack.c.l.b16 %v3971
  %v4348 = vunpack.c.h.b16 %v3971
  %v4349 = vunpack.c.l.b16 %v3972
  %v4350 = vunpack.c.h.b16 %v3972
  %v4351 = vunpack.c.l.b16 %v3973
  %v4352 = vunpack.c.h.b16 %v3973
  %v4353 = vunpack.c.l.b16 %v3974
  %v4354 = vunpack.c.h.b16 %v3974
  %v4355 = vunpack.c.l.b16 %v3975
  %v4356 = vunpack.c.h.b16 %v3975
  %v4357 = vunpack.c.l.b16 %v3976
  %v4358 = vunpack.c.h.b16 %v3976
  %v4359 = vunpack.c.l.b16 %v3977
  %v4360 = vunpack.c.h.b16 %v3977
  %v4361 = vpack.c.b16 %v4301, %v4297
  %v4362 = vpack.c.b16 %v4302, %v4298
  %v4363 = vpack.c.b16 %v4303, %v4299
  %v4364 = vpack.c.b16 %v4304, %v4300
  %v4365 = vpack.c.b16 %v4309, %v4305
  %v4366 = vpack.c.b16 %v4310, %v4306
  %v4367 = vpack.c.b16 %v4311, %v4307
  %v4368 = vpack.c.b16 %v4312, %v4308
  %v4369 = vpack.c.b16 %v4317, %v4313
  %v4370 = vpack.c.b16 %v4318, %v4314
  %v4371 = vpack.c.b16 %v4319, %v4315
  %v4372 = vpack.c.b16 %v4320, %v4316
  %v4373 = vpack.c.b16 %v4325, %v4321
  %v4374 = vpack.c.b16 %v4326, %v4322
  %v4375 = vpack.c.b16 %v4327, %v4323
  %v4376 = vpack.c.b16 %v4328, %v4324
  %v4377 = vpack.c.b16 %v4333, %v4329
  %v4378 = vpack.c.b16 %v4334, %v4330
  %v4379 = vpack.c.b16 %v4335, %v4331
  %v4380 = vpack.c.b16 %v4336, %v4332
  %v4381 = vpack.c.b16 %v4341, %v4337
  %v4382 = vpack.c.b16 %v4342, %v4338
  %v4383 = vpack.c.b16 %v4343, %v4339
  %v4384 = vpack.c.b16 %v4344, %v4340
  %v4385 = vpack.c.b16 %v4349, %v4345
  %v4386 = vpack.c.b16 %v4350, %v4346
  %v4387 = vpack.c.b16 %v4351, %v4347
  %v4388 = vpack.c.b16 %v4352, %v4348
  %v4389 = vpack.c.b16 %v4357, %v4353
  %v4390 = vpack.c.b16 %v4358, %v4354
  %v4391 = vpack.c.b16 %v4359, %v4355
  %v4392 = vpack.c.b16 %v4360, %v4356
  %4425 = vmatprep.subr.bf16.mxu0 %v4362
  %4426 = vmatpush1.bf16.msra.mxu0 %v4361
  %4427 = vmatprep.subr.bf16.mxu0 %v4366
  %4428 = vmatpush1.bf16.msra.mxu0 %v4365
  %4429 = vmatprep.subr.bf16.mxu0 %v4370
  %4430 = vmatpush1.bf16.msra.mxu0 %v4369
  %4431 = vmatprep.subr.bf16.mxu0 %v4374
  %4432 = vmatpush1.bf16.msra.mxu0 %v4373
  %4433 = vmatprep.subr.bf16.mxu0 %v4378
  %4434 = vmatpush1.bf16.msra.mxu0 %v4377
  %4435 = vmatprep.subr.bf16.mxu0 %v4382
  %4436 = vmatpush1.bf16.msra.mxu0 %v4381
  %4437 = vmatprep.subr.bf16.mxu0 %v4386
  %4438 = vmatpush1.bf16.msra.mxu0 %v4385
  %4439 = vmatprep.subr.bf16.mxu0 %v4390
  %4440 = vmatpush1.bf16.msra.mxu0 %v4389
  %4441 = vmatprep.subr.bf16.mxu0 0
  %4442 = vmatpush1.bf16.msra.mxu0 0
  %4443 = vmatprep.subr.bf16.mxu0 0
  %4444 = vmatpush1.bf16.msra.mxu0 0
  %4445 = vmatprep.subr.bf16.mxu0 0
  %4446 = vmatpush1.bf16.msra.mxu0 0
  %4447 = vmatprep.subr.bf16.mxu0 0
  %4448 = vmatpush1.bf16.msra.mxu0 0
  %4449 = vmatprep.subr.bf16.mxu0 0
  %4450 = vmatpush1.bf16.msra.mxu0 0
  %4451 = vmatprep.subr.bf16.mxu0 0
  %4452 = vmatpush1.bf16.msra.mxu0 0
  %4453 = vmatprep.subr.bf16.mxu0 0
  %4454 = vmatpush1.bf16.msra.mxu0 0
  %4455 = vmatprep.subr.bf16.mxu0 0
  %4456 = vmatpush1.bf16.msra.mxu0 0
  %4457 = vmatprep.mubr.bf16.mxu0 0
  %4458 = vmatmul.mubr.bf16.gmra.mrb[0].mxu0 %v4263
  %v4459 = vpop.f32.mrb[0].mxu0
  %v4460 = vadd.f32 %v4208, %v4459
  %v4461 = vpop.f32.mrb[0].mxu0
  %v4462 = vadd.f32 %v4210, %v4461
  %v4463 = vpop.f32.mrb[0].mxu0
  %v4464 = vadd.f32 %v4212, %v4463
  %v4465 = vpop.f32.mrb[0].mxu0
  %v4466 = vadd.f32 %v4214, %v4465
  %4467 = vdwg.mxu0
  %4468 = vmatprep.subr.bf16.mxu0 %v4364
  %4469 = vmatpush1.bf16.msra.mxu0 %v4363
  %4470 = vmatprep.subr.bf16.mxu0 %v4368
  %4471 = vmatpush1.bf16.msra.mxu0 %v4367
  %4472 = vmatprep.subr.bf16.mxu0 %v4372
  %4473 = vmatpush1.bf16.msra.mxu0 %v4371
  %4474 = vmatprep.subr.bf16.mxu0 %v4376
  %4475 = vmatpush1.bf16.msra.mxu0 %v4375
  %4476 = vmatprep.subr.bf16.mxu0 %v4380
  %4477 = vmatpush1.bf16.msra.mxu0 %v4379
  %4478 = vmatprep.subr.bf16.mxu0 %v4384
  %4479 = vmatpush1.bf16.msra.mxu0 %v4383
  %4480 = vmatprep.subr.bf16.mxu0 %v4388
  %4481 = vmatpush1.bf16.msra.mxu0 %v4387
  %4482 = vmatprep.subr.bf16.mxu0 %v4392
  %4483 = vmatpush1.bf16.msra.mxu0 %v4391
  %4484 = vmatprep.subr.bf16.mxu0 0
  %4485 = vmatpush1.bf16.msra.mxu0 0
  %4486 = vmatprep.subr.bf16.mxu0 0
  %4487 = vmatpush1.bf16.msra.mxu0 0
  %4488 = vmatprep.subr.bf16.mxu0 0
  %4489 = vmatpush1.bf16.msra.mxu0 0
  %4490 = vmatprep.subr.bf16.mxu0 0
  %4491 = vmatpush1.bf16.msra.mxu0 0
  %4492 = vmatprep.subr.bf16.mxu0 0
  %4493 = vmatpush1.bf16.msra.mxu0 0
  %4494 = vmatprep.subr.bf16.mxu0 0
  %4495 = vmatpush1.bf16.msra.mxu0 0
  %4496 = vmatprep.subr.bf16.mxu0 0
  %4497 = vmatpush1.bf16.msra.mxu0 0
  %4498 = vmatprep.subr.bf16.mxu0 0
  %4499 = vmatpush1.bf16.msra.mxu0 0
  %4500 = vmatprep.mubr.bf16.mxu0 0
  %4501 = vmatmul.mubr.bf16.gmra.mrb[0].mxu0 %v4263
  %v4502 = vpop.f32.mrb[0].mxu0
  %v4503 = vadd.f32 %v4251, %v4502
  %v4504 = vpop.f32.mrb[0].mxu0
  %v4505 = vadd.f32 %v4253, %v4504
  %v4506 = vpop.f32.mrb[0].mxu0
  %v4507 = vadd.f32 %v4255, %v4506
  %v4508 = vpop.f32.mrb[0].mxu0
  %v4509 = vadd.f32 %v4257, %v4508
  %4510 = vdwg.mxu0
  %v4511 = vld [vmem:[%s3] sm:$0xf]
  %v4513 = vlaneseq
  %v4514 = vshrl.u32 %v4513, 7
  %v4515 = vsub.s32 0, %v4514
  %v4516 = vrot.slane %v4511, %v4515
  %v4517 = vlaneseq
  %v4518 = vshrl.u32 %v4517, 7
  %v4519 = vsub.s32 1, %v4518
  %v4520 = vrot.slane %v4511, %v4519
  %v4521 = vlaneseq
  %v4522 = vshrl.u32 %v4521, 7
  %v4523 = vsub.s32 2, %v4522
  %v4524 = vrot.slane %v4511, %v4523
  %v4525 = vlaneseq
  %v4526 = vshrl.u32 %v4525, 7
  %v4527 = vsub.s32 3, %v4526
  %v4528 = vrot.slane %v4511, %v4527
  %v4533 = vadd.f32 %v4460, %v4516
  %v4534 = vadd.f32 %v4462, %v4520
  %v4535 = vadd.f32 %v4503, %v4524
  %v4536 = vadd.f32 %v4505, %v4528
  %v4537 = vadd.f32 %v4464, %v4516
  %v4538 = vadd.f32 %v4466, %v4520
  %v4539 = vadd.f32 %v4507, %v4524
  %v4540 = vadd.f32 %v4509, %v4528
  %v4541 = vxor.u32 %v4533, 2147483648
  %v4542 = vxor.u32 %v4534, 2147483648
  %v4543 = vxor.u32 %v4535, 2147483648
  %v4544 = vxor.u32 %v4537, 2147483648
  %v4545 = vxor.u32 %v4538, 2147483648
  %v4546 = vxor.u32 %v4539, 2147483648
  %v4547 = vmul.f32 %v4541, 1.442695
  %v4548 = vpow.pop %v4547
  %v4549 = vmul.f32 %v4542, 1.442695
  %v4550 = vpow.pop %v4549
  %v4551 = vmul.f32 %v4543, 1.442695
  %v4552 = vpow.pop %v4551
  %v4553 = vmul.f32 %v4544, 1.442695
  %v4554 = vpow.pop %v4553
  %v4555 = vmul.f32 %v4545, 1.442695
  %v4556 = vpow.pop %v4555
  %v4557 = vmul.f32 %v4546, 1.442695
  %v4558 = vpow.pop %v4557
  %v4559 = vadd.f32 %v4548, 1.0
  %v4560 = vadd.f32 %v4550, 1.0
  %v4561 = vadd.f32 %v4552, 1.0
  %v4562 = vadd.f32 %v4554, 1.0
  %v4563 = vadd.f32 %v4556, 1.0
  %v4564 = vadd.f32 %v4558, 1.0
  %v4565 = vrcp.pop %v4559
  %v4566 = vmul.f32 1.0, %v4565
  %v4567 = vrcp.pop %v4560
  %v4568 = vmul.f32 1.0, %v4567
  %v4569 = vrcp.pop %v4561
  %v4570 = vmul.f32 1.0, %v4569
  %v4571 = vrcp.pop %v4562
  %v4572 = vmul.f32 1.0, %v4571
  %v4573 = vrcp.pop %v4563
  %v4574 = vmul.f32 1.0, %v4573
  %v4575 = vrcp.pop %v4564
  %v4576 = vmul.f32 1.0, %v4575
  %v4577 = vtanh.pop %v4536
  %v4578 = vtanh.pop %v4540
  %v4579 = vld [vmem:[#allocation3] sm:$0xff]
  %v4580 = vld [vmem:[#allocation3 + $0x8] sm:$0xff]
  %v4581 = vmul.f32 %v4568, %v4579
  %v4582 = vmul.f32 %v4574, %v4580
  %v4583 = vmul.f32 %v4566, %v4577
  %v4584 = vmul.f32 %v4572, %v4578
  %v4585 = vadd.f32 %v4581, %v4583
  %v4586 = vadd.f32 %v4582, %v4584
  %v4587 = vtanh.pop %v4585
  %v4588 = vtanh.pop %v4586
  %v4589 = vmul.f32 %v4570, %v4587
  %v4590 = vmul.f32 %v4576, %v4588
  %4591 = vst [vmem:[#allocation3] sm:$0xff] %v4585
  %4592 = vst [vmem:[#allocation3 + $0x8] sm:$0xff] %v4586
  %4593 = vst [vmem:[#allocation2] sm:$0xff] %v4589
  %4594 = vst [vmem:[#allocation2 + $0x8] sm:$0xff] %v4590
  %s4595 = scalar_lea.vmem %s0, 56
  %v4596 = vld [vmem:[%s4595] sm:$0xf]
  %v4597 = vld [vmem:[%s4595 + $0x4] sm:$0xf]
  %v4598 = vld [vmem:[%s1] sm:$0xff]
  %v4599 = vld [vmem:[%s1 + $0x8] sm:$0xff]
  %v4600 = vld [vmem:[%s1 + $0x10] sm:$0xff]
  %v4601 = vld [vmem:[%s1 + $0x18] sm:$0xff]
  %v4602 = vld [vmem:[%s1 + $0x20] sm:$0xff]
  %v4603 = vld [vmem:[%s1 + $0x28] sm:$0xff]
  %v4604 = vld [vmem:[%s1 + $0x30] sm:$0xff]
  %v4605 = vld [vmem:[%s1 + $0x38] sm:$0xff]
  %v4606 = vld [vmem:[%s1 + $0x40] sm:$0xff]
  %v4607 = vld [vmem:[%s1 + $0x48] sm:$0xff]
  %v4608 = vld [vmem:[%s1 + $0x50] sm:$0xff]
  %v4609 = vld [vmem:[%s1 + $0x58] sm:$0xff]
  %v4610 = vld [vmem:[%s1 + $0x60] sm:$0xff]
  %v4611 = vld [vmem:[%s1 + $0x68] sm:$0xff]
  %v4612 = vld [vmem:[%s1 + $0x70] sm:$0xff]
  %v4613 = vld [vmem:[%s1 + $0x78] sm:$0xff]
  %v4614 = vld [vmem:[%s1 + $0x80] sm:$0xff]
  %v4615 = vld [vmem:[%s1 + $0x88] sm:$0xff]
  %v4616 = vld [vmem:[%s1 + $0x90] sm:$0xff]
  %v4617 = vld [vmem:[%s1 + $0x98] sm:$0xff]
  %v4618 = vld [vmem:[%s1 + $0xa0] sm:$0xff]
  %v4619 = vld [vmem:[%s1 + $0xa8] sm:$0xff]
  %v4620 = vld [vmem:[%s1 + $0xb0] sm:$0xff]
  %v4621 = vld [vmem:[%s1 + $0xb8] sm:$0xff]
  %v4622 = vld [vmem:[%s1 + $0xc0] sm:$0xff]
  %v4623 = vld [vmem:[%s1 + $0xc8] sm:$0xff]
  %v4624 = vld [vmem:[%s1 + $0xd0] sm:$0xff]
  %v4625 = vld [vmem:[%s1 + $0xd8] sm:$0xff]
  %v4626 = vld [vmem:[%s1 + $0xe0] sm:$0xff]
  %v4627 = vld [vmem:[%s1 + $0xe8] sm:$0xff]
  %v4628 = vld [vmem:[%s1 + $0xf0] sm:$0xff]
  %v4629 = vld [vmem:[%s1 + $0xf8] sm:$0xff]
  %v4630 = vld [vmem:[#allocation2] sm:$0xff]
  %v4631 = vld [vmem:[#allocation2 + $0x8] sm:$0xff]
  %v4632 = vpack.c.bf16 %v4631, %v4630
  %v4633 = vld [vmem:[%s2] sm:$0xff]
  %v4634 = vld [vmem:[%s2 + $0x8] sm:$0xff]
  %v4635 = vld [vmem:[%s2 + $0x10] sm:$0xff]
  %v4636 = vld [vmem:[%s2 + $0x18] sm:$0xff]
  %v4637 = vld [vmem:[%s2 + $0x20] sm:$0xff]
  %v4638 = vld [vmem:[%s2 + $0x28] sm:$0xff]
  %v4639 = vld [vmem:[%s2 + $0x30] sm:$0xff]
  %v4640 = vld [vmem:[%s2 + $0x38] sm:$0xff]
  %v4641 = vld [vmem:[%s2 + $0x40] sm:$0xff]
  %v4642 = vld [vmem:[%s2 + $0x48] sm:$0xff]
  %v4643 = vld [vmem:[%s2 + $0x50] sm:$0xff]
  %v4644 = vld [vmem:[%s2 + $0x58] sm:$0xff]
  %v4645 = vld [vmem:[%s2 + $0x60] sm:$0xff]
  %v4646 = vld [vmem:[%s2 + $0x68] sm:$0xff]
  %v4647 = vld [vmem:[%s2 + $0x70] sm:$0xff]
  %v4648 = vld [vmem:[%s2 + $0x78] sm:$0xff]
  %v4649 = vld [vmem:[%s2 + $0x80] sm:$0xff]
  %v4650 = vld [vmem:[%s2 + $0x88] sm:$0xff]
  %v4651 = vld [vmem:[%s2 + $0x90] sm:$0xff]
  %v4652 = vld [vmem:[%s2 + $0x98] sm:$0xff]
  %v4653 = vld [vmem:[%s2 + $0xa0] sm:$0xff]
  %v4654 = vld [vmem:[%s2 + $0xa8] sm:$0xff]
  %v4655 = vld [vmem:[%s2 + $0xb0] sm:$0xff]
  %v4656 = vld [vmem:[%s2 + $0xb8] sm:$0xff]
  %v4657 = vld [vmem:[%s2 + $0xc0] sm:$0xff]
  %v4658 = vld [vmem:[%s2 + $0xc8] sm:$0xff]
  %v4659 = vld [vmem:[%s2 + $0xd0] sm:$0xff]
  %v4660 = vld [vmem:[%s2 + $0xd8] sm:$0xff]
  %v4661 = vld [vmem:[%s2 + $0xe0] sm:$0xff]
  %v4662 = vld [vmem:[%s2 + $0xe8] sm:$0xff]
  %v4663 = vld [vmem:[%s2 + $0xf0] sm:$0xff]
  %v4664 = vld [vmem:[%s2 + $0xf8] sm:$0xff]
  %v4697 = vunpack.c.l.b16 %v4633
  %v4698 = vunpack.c.h.b16 %v4633
  %v4699 = vunpack.c.l.b16 %v4634
  %v4700 = vunpack.c.h.b16 %v4634
  %v4701 = vunpack.c.l.b16 %v4635
  %v4702 = vunpack.c.h.b16 %v4635
  %v4703 = vunpack.c.l.b16 %v4636
  %v4704 = vunpack.c.h.b16 %v4636
  %v4705 = vunpack.c.l.b16 %v4637
  %v4706 = vunpack.c.h.b16 %v4637
  %v4707 = vunpack.c.l.b16 %v4638
  %v4708 = vunpack.c.h.b16 %v4638
  %v4709 = vunpack.c.l.b16 %v4639
  %v4710 = vunpack.c.h.b16 %v4639
  %v4711 = vunpack.c.l.b16 %v4640
  %v4712 = vunpack.c.h.b16 %v4640
  %v4713 = vunpack.c.l.b16 %v4641
  %v4714 = vunpack.c.h.b16 %v4641
  %v4715 = vunpack.c.l.b16 %v4642
  %v4716 = vunpack.c.h.b16 %v4642
  %v4717 = vunpack.c.l.b16 %v4643
  %v4718 = vunpack.c.h.b16 %v4643
  %v4719 = vunpack.c.l.b16 %v4644
  %v4720 = vunpack.c.h.b16 %v4644
  %v4721 = vunpack.c.l.b16 %v4645
  %v4722 = vunpack.c.h.b16 %v4645
  %v4723 = vunpack.c.l.b16 %v4646
  %v4724 = vunpack.c.h.b16 %v4646
  %v4725 = vunpack.c.l.b16 %v4647
  %v4726 = vunpack.c.h.b16 %v4647
  %v4727 = vunpack.c.l.b16 %v4648
  %v4728 = vunpack.c.h.b16 %v4648
  %v4729 = vunpack.c.l.b16 %v4649
  %v4730 = vunpack.c.h.b16 %v4649
  %v4731 = vunpack.c.l.b16 %v4650
  %v4732 = vunpack.c.h.b16 %v4650
  %v4733 = vunpack.c.l.b16 %v4651
  %v4734 = vunpack.c.h.b16 %v4651
  %v4735 = vunpack.c.l.b16 %v4652
  %v4736 = vunpack.c.h.b16 %v4652
  %v4737 = vunpack.c.l.b16 %v4653
  %v4738 = vunpack.c.h.b16 %v4653
  %v4739 = vunpack.c.l.b16 %v4654
  %v4740 = vunpack.c.h.b16 %v4654
  %v4741 = vunpack.c.l.b16 %v4655
  %v4742 = vunpack.c.h.b16 %v4655
  %v4743 = vunpack.c.l.b16 %v4656
  %v4744 = vunpack.c.h.b16 %v4656
  %v4745 = vunpack.c.l.b16 %v4657
  %v4746 = vunpack.c.h.b16 %v4657
  %v4747 = vunpack.c.l.b16 %v4658
  %v4748 = vunpack.c.h.b16 %v4658
  %v4749 = vunpack.c.l.b16 %v4659
  %v4750 = vunpack.c.h.b16 %v4659
  %v4751 = vunpack.c.l.b16 %v4660
  %v4752 = vunpack.c.h.b16 %v4660
  %v4753 = vunpack.c.l.b16 %v4661
  %v4754 = vunpack.c.h.b16 %v4661
  %v4755 = vunpack.c.l.b16 %v4662
  %v4756 = vunpack.c.h.b16 %v4662
  %v4757 = vunpack.c.l.b16 %v4663
  %v4758 = vunpack.c.h.b16 %v4663
  %v4759 = vunpack.c.l.b16 %v4664
  %v4760 = vunpack.c.h.b16 %v4664
  %v4761 = vpack.c.b16 %v4701, %v4697
  %v4762 = vpack.c.b16 %v4702, %v4698
  %v4763 = vpack.c.b16 %v4703, %v4699
  %v4764 = vpack.c.b16 %v4704, %v4700
  %v4765 = vpack.c.b16 %v4709, %v4705
  %v4766 = vpack.c.b16 %v4710, %v4706
  %v4767 = vpack.c.b16 %v4711, %v4707
  %v4768 = vpack.c.b16 %v4712, %v4708
  %v4769 = vpack.c.b16 %v4717, %v4713
  %v4770 = vpack.c.b16 %v4718, %v4714
  %v4771 = vpack.c.b16 %v4719, %v4715
  %v4772 = vpack.c.b16 %v4720, %v4716
  %v4773 = vpack.c.b16 %v4725, %v4721
  %v4774 = vpack.c.b16 %v4726, %v4722
  %v4775 = vpack.c.b16 %v4727, %v4723
  %v4776 = vpack.c.b16 %v4728, %v4724
  %v4777 = vpack.c.b16 %v4733, %v4729
  %v4778 = vpack.c.b16 %v4734, %v4730
  %v4779 = vpack.c.b16 %v4735, %v4731
  %v4780 = vpack.c.b16 %v4736, %v4732
  %v4781 = vpack.c.b16 %v4741, %v4737
  %v4782 = vpack.c.b16 %v4742, %v4738
  %v4783 = vpack.c.b16 %v4743, %v4739
  %v4784 = vpack.c.b16 %v4744, %v4740
  %v4785 = vpack.c.b16 %v4749, %v4745
  %v4786 = vpack.c.b16 %v4750, %v4746
  %v4787 = vpack.c.b16 %v4751, %v4747
  %v4788 = vpack.c.b16 %v4752, %v4748
  %v4789 = vpack.c.b16 %v4757, %v4753
  %v4790 = vpack.c.b16 %v4758, %v4754
  %v4791 = vpack.c.b16 %v4759, %v4755
  %v4792 = vpack.c.b16 %v4760, %v4756
  %4825 = vmatprep.subr.bf16.mxu0 %v4762
  %4826 = vmatpush1.bf16.msra.mxu0 %v4761
  %4827 = vmatprep.subr.bf16.mxu0 %v4766
  %4828 = vmatpush1.bf16.msra.mxu0 %v4765
  %4829 = vmatprep.subr.bf16.mxu0 %v4770
  %4830 = vmatpush1.bf16.msra.mxu0 %v4769
  %4831 = vmatprep.subr.bf16.mxu0 %v4774
  %4832 = vmatpush1.bf16.msra.mxu0 %v4773
  %4833 = vmatprep.subr.bf16.mxu0 %v4778
  %4834 = vmatpush1.bf16.msra.mxu0 %v4777
  %4835 = vmatprep.subr.bf16.mxu0 %v4782
  %4836 = vmatpush1.bf16.msra.mxu0 %v4781
  %4837 = vmatprep.subr.bf16.mxu0 %v4786
  %4838 = vmatpush1.bf16.msra.mxu0 %v4785
  %4839 = vmatprep.subr.bf16.mxu0 %v4790
  %4840 = vmatpush1.bf16.msra.mxu0 %v4789
  %4841 = vmatprep.subr.bf16.mxu0 0
  %4842 = vmatpush1.bf16.msra.mxu0 0
  %4843 = vmatprep.subr.bf16.mxu0 0
  %4844 = vmatpush1.bf16.msra.mxu0 0
  %4845 = vmatprep.subr.bf16.mxu0 0
  %4846 = vmatpush1.bf16.msra.mxu0 0
  %4847 = vmatprep.subr.bf16.mxu0 0
  %4848 = vmatpush1.bf16.msra.mxu0 0
  %4849 = vmatprep.subr.bf16.mxu0 0
  %4850 = vmatpush1.bf16.msra.mxu0 0
  %4851 = vmatprep.subr.bf16.mxu0 0
  %4852 = vmatpush1.bf16.msra.mxu0 0
  %4853 = vmatprep.subr.bf16.mxu0 0
  %4854 = vmatpush1.bf16.msra.mxu0 0
  %4855 = vmatprep.subr.bf16.mxu0 0
  %4856 = vmatpush1.bf16.msra.mxu0 0
  %4857 = vmatprep.mubr.bf16.mxu0 0
  %4858 = vmatmul.mubr.bf16.gmra.mrb[0].mxu0 %v4632
  %v4859 = vpop.f32.mrb[0].mxu0
  %v4860 = vadd.f32 0.0, %v4859
  %v4861 = vpop.f32.mrb[0].mxu0
  %v4862 = vadd.f32 0.0, %v4861
  %v4863 = vpop.f32.mrb[0].mxu0
  %v4864 = vadd.f32 0.0, %v4863
  %v4865 = vpop.f32.mrb[0].mxu0
  %v4866 = vadd.f32 0.0, %v4865
  %4867 = vdwg.mxu0
  %4868 = vmatprep.subr.bf16.mxu0 %v4764
  %4869 = vmatpush1.bf16.msra.mxu0 %v4763
  %4870 = vmatprep.subr.bf16.mxu0 %v4768
  %4871 = vmatpush1.bf16.msra.mxu0 %v4767
  %4872 = vmatprep.subr.bf16.mxu0 %v4772
  %4873 = vmatpush1.bf16.msra.mxu0 %v4771
  %4874 = vmatprep.subr.bf16.mxu0 %v4776
  %4875 = vmatpush1.bf16.msra.mxu0 %v4775
  %4876 = vmatprep.subr.bf16.mxu0 %v4780
  %4877 = vmatpush1.bf16.msra.mxu0 %v4779
  %4878 = vmatprep.subr.bf16.mxu0 %v4784
  %4879 = vmatpush1.bf16.msra.mxu0 %v4783
  %4880 = vmatprep.subr.bf16.mxu0 %v4788
  %4881 = vmatpush1.bf16.msra.mxu0 %v4787
  %4882 = vmatprep.subr.bf16.mxu0 %v4792
  %4883 = vmatpush1.bf16.msra.mxu0 %v4791
  %4884 = vmatprep.subr.bf16.mxu0 0
  %4885 = vmatpush1.bf16.msra.mxu0 0
  %4886 = vmatprep.subr.bf16.mxu0 0
  %4887 = vmatpush1.bf16.msra.mxu0 0
  %4888 = vmatprep.subr.bf16.mxu0 0
  %4889 = vmatpush1.bf16.msra.mxu0 0
  %4890 = vmatprep.subr.bf16.mxu0 0
  %4891 = vmatpush1.bf16.msra.mxu0 0
  %4892 = vmatprep.subr.bf16.mxu0 0
  %4893 = vmatpush1.bf16.msra.mxu0 0
  %4894 = vmatprep.subr.bf16.mxu0 0
  %4895 = vmatpush1.bf16.msra.mxu0 0
  %4896 = vmatprep.subr.bf16.mxu0 0
  %4897 = vmatpush1.bf16.msra.mxu0 0
  %4898 = vmatprep.subr.bf16.mxu0 0
  %4899 = vmatpush1.bf16.msra.mxu0 0
  %4900 = vmatprep.mubr.bf16.mxu0 0
  %4901 = vmatmul.mubr.bf16.gmra.mrb[0].mxu0 %v4632
  %v4902 = vpop.f32.mrb[0].mxu0
  %v4903 = vadd.f32 0.0, %v4902
  %v4904 = vpop.f32.mrb[0].mxu0
  %v4905 = vadd.f32 0.0, %v4904
  %v4906 = vpop.f32.mrb[0].mxu0
  %v4907 = vadd.f32 0.0, %v4906
  %v4908 = vpop.f32.mrb[0].mxu0
  %v4909 = vadd.f32 0.0, %v4908
  %4910 = vdwg.mxu0
  %v4913 = vunpack.c.l.b16 %v4596
  %v4914 = vunpack.c.l.b16 %v4597
  %v4915 = vpack.c.b16 %v4914, %v4913
  %v4949 = vunpack.c.l.b16 %v4598
  %v4950 = vunpack.c.h.b16 %v4598
  %v4951 = vunpack.c.l.b16 %v4599
  %v4952 = vunpack.c.h.b16 %v4599
  %v4953 = vunpack.c.l.b16 %v4600
  %v4954 = vunpack.c.h.b16 %v4600
  %v4955 = vunpack.c.l.b16 %v4601
  %v4956 = vunpack.c.h.b16 %v4601
  %v4957 = vunpack.c.l.b16 %v4602
  %v4958 = vunpack.c.h.b16 %v4602
  %v4959 = vunpack.c.l.b16 %v4603
  %v4960 = vunpack.c.h.b16 %v4603
  %v4961 = vunpack.c.l.b16 %v4604
  %v4962 = vunpack.c.h.b16 %v4604
  %v4963 = vunpack.c.l.b16 %v4605
  %v4964 = vunpack.c.h.b16 %v4605
  %v4965 = vunpack.c.l.b16 %v4606
  %v4966 = vunpack.c.h.b16 %v4606
  %v4967 = vunpack.c.l.b16 %v4607
  %v4968 = vunpack.c.h.b16 %v4607
  %v4969 = vunpack.c.l.b16 %v4608
  %v4970 = vunpack.c.h.b16 %v4608
  %v4971 = vunpack.c.l.b16 %v4609
  %v4972 = vunpack.c.h.b16 %v4609
  %v4973 = vunpack.c.l.b16 %v4610
  %v4974 = vunpack.c.h.b16 %v4610
  %v4975 = vunpack.c.l.b16 %v4611
  %v4976 = vunpack.c.h.b16 %v4611
  %v4977 = vunpack.c.l.b16 %v4612
  %v4978 = vunpack.c.h.b16 %v4612
  %v4979 = vunpack.c.l.b16 %v4613
  %v4980 = vunpack.c.h.b16 %v4613
  %v4981 = vunpack.c.l.b16 %v4614
  %v4982 = vunpack.c.h.b16 %v4614
  %v4983 = vunpack.c.l.b16 %v4615
  %v4984 = vunpack.c.h.b16 %v4615
  %v4985 = vunpack.c.l.b16 %v4616
  %v4986 = vunpack.c.h.b16 %v4616
  %v4987 = vunpack.c.l.b16 %v4617
  %v4988 = vunpack.c.h.b16 %v4617
  %v4989 = vunpack.c.l.b16 %v4618
  %v4990 = vunpack.c.h.b16 %v4618
  %v4991 = vunpack.c.l.b16 %v4619
  %v4992 = vunpack.c.h.b16 %v4619
  %v4993 = vunpack.c.l.b16 %v4620
  %v4994 = vunpack.c.h.b16 %v4620
  %v4995 = vunpack.c.l.b16 %v4621
  %v4996 = vunpack.c.h.b16 %v4621
  %v4997 = vunpack.c.l.b16 %v4622
  %v4998 = vunpack.c.h.b16 %v4622
  %v4999 = vunpack.c.l.b16 %v4623
  %v5000 = vunpack.c.h.b16 %v4623
  %v5001 = vunpack.c.l.b16 %v4624
  %v5002 = vunpack.c.h.b16 %v4624
  %v5003 = vunpack.c.l.b16 %v4625
  %v5004 = vunpack.c.h.b16 %v4625
  %v5005 = vunpack.c.l.b16 %v4626
  %v5006 = vunpack.c.h.b16 %v4626
  %v5007 = vunpack.c.l.b16 %v4627
  %v5008 = vunpack.c.h.b16 %v4627
  %v5009 = vunpack.c.l.b16 %v4628
  %v5010 = vunpack.c.h.b16 %v4628
  %v5011 = vunpack.c.l.b16 %v4629
  %v5012 = vunpack.c.h.b16 %v4629
  %v5013 = vpack.c.b16 %v4953, %v4949
  %v5014 = vpack.c.b16 %v4954, %v4950
  %v5015 = vpack.c.b16 %v4955, %v4951
  %v5016 = vpack.c.b16 %v4956, %v4952
  %v5017 = vpack.c.b16 %v4961, %v4957
  %v5018 = vpack.c.b16 %v4962, %v4958
  %v5019 = vpack.c.b16 %v4963, %v4959
  %v5020 = vpack.c.b16 %v4964, %v4960
  %v5021 = vpack.c.b16 %v4969, %v4965
  %v5022 = vpack.c.b16 %v4970, %v4966
  %v5023 = vpack.c.b16 %v4971, %v4967
  %v5024 = vpack.c.b16 %v4972, %v4968
  %v5025 = vpack.c.b16 %v4977, %v4973
  %v5026 = vpack.c.b16 %v4978, %v4974
  %v5027 = vpack.c.b16 %v4979, %v4975
  %v5028 = vpack.c.b16 %v4980, %v4976
  %v5029 = vpack.c.b16 %v4985, %v4981
  %v5030 = vpack.c.b16 %v4986, %v4982
  %v5031 = vpack.c.b16 %v4987, %v4983
  %v5032 = vpack.c.b16 %v4988, %v4984
  %v5033 = vpack.c.b16 %v4993, %v4989
  %v5034 = vpack.c.b16 %v4994, %v4990
  %v5035 = vpack.c.b16 %v4995, %v4991
  %v5036 = vpack.c.b16 %v4996, %v4992
  %v5037 = vpack.c.b16 %v5001, %v4997
  %v5038 = vpack.c.b16 %v5002, %v4998
  %v5039 = vpack.c.b16 %v5003, %v4999
  %v5040 = vpack.c.b16 %v5004, %v5000
  %v5041 = vpack.c.b16 %v5009, %v5005
  %v5042 = vpack.c.b16 %v5010, %v5006
  %v5043 = vpack.c.b16 %v5011, %v5007
  %v5044 = vpack.c.b16 %v5012, %v5008
  %5077 = vmatprep.subr.bf16.mxu0 %v5014
  %5078 = vmatpush1.bf16.msra.mxu0 %v5013
  %5079 = vmatprep.subr.bf16.mxu0 %v5018
  %5080 = vmatpush1.bf16.msra.mxu0 %v5017
  %5081 = vmatprep.subr.bf16.mxu0 %v5022
  %5082 = vmatpush1.bf16.msra.mxu0 %v5021
  %5083 = vmatprep.subr.bf16.mxu0 %v5026
  %5084 = vmatpush1.bf16.msra.mxu0 %v5025
  %5085 = vmatprep.subr.bf16.mxu0 %v5030
  %5086 = vmatpush1.bf16.msra.mxu0 %v5029
  %5087 = vmatprep.subr.bf16.mxu0 %v5034
  %5088 = vmatpush1.bf16.msra.mxu0 %v5033
  %5089 = vmatprep.subr.bf16.mxu0 %v5038
  %5090 = vmatpush1.bf16.msra.mxu0 %v5037
  %5091 = vmatprep.subr.bf16.mxu0 %v5042
  %5092 = vmatpush1.bf16.msra.mxu0 %v5041
  %5093 = vmatprep.subr.bf16.mxu0 0
  %5094 = vmatpush1.bf16.msra.mxu0 0
  %5095 = vmatprep.subr.bf16.mxu0 0
  %5096 = vmatpush1.bf16.msra.mxu0 0
  %5097 = vmatprep.subr.bf16.mxu0 0
  %5098 = vmatpush1.bf16.msra.mxu0 0
  %5099 = vmatprep.subr.bf16.mxu0 0
  %5100 = vmatpush1.bf16.msra.mxu0 0
  %5101 = vmatprep.subr.bf16.mxu0 0
  %5102 = vmatpush1.bf16.msra.mxu0 0
  %5103 = vmatprep.subr.bf16.mxu0 0
  %5104 = vmatpush1.bf16.msra.mxu0 0
  %5105 = vmatprep.subr.bf16.mxu0 0
  %5106 = vmatpush1.bf16.msra.mxu0 0
  %5107 = vmatprep.subr.bf16.mxu0 0
  %5108 = vmatpush1.bf16.msra.mxu0 0
  %5109 = vmatprep.mubr.bf16.mxu0 0
  %5110 = vmatmul.mubr.bf16.gmra.mrb[0].mxu0 %v4915
  %v5111 = vpop.f32.mrb[0].mxu0
  %v5112 = vadd.f32 %v4860, %v5111
  %v5113 = vpop.f32.mrb[0].mxu0
  %v5114 = vadd.f32 %v4862, %v5113
  %v5115 = vpop.f32.mrb[0].mxu0
  %v5116 = vadd.f32 %v4864, %v5115
  %v5117 = vpop.f32.mrb[0].mxu0
  %v5118 = vadd.f32 %v4866, %v5117
  %5119 = vdwg.mxu0
  %5120 = vmatprep.subr.bf16.mxu0 %v5016
  %5121 = vmatpush1.bf16.msra.mxu0 %v5015
  %5122 = vmatprep.subr.bf16.mxu0 %v5020
  %5123 = vmatpush1.bf16.msra.mxu0 %v5019
  %5124 = vmatprep.subr.bf16.mxu0 %v5024
  %5125 = vmatpush1.bf16.msra.mxu0 %v5023
  %5126 = vmatprep.subr.bf16.mxu0 %v5028
  %5127 = vmatpush1.bf16.msra.mxu0 %v5027
  %5128 = vmatprep.subr.bf16.mxu0 %v5032
  %5129 = vmatpush1.bf16.msra.mxu0 %v5031
  %5130 = vmatprep.subr.bf16.mxu0 %v5036
  %5131 = vmatpush1.bf16.msra.mxu0 %v5035
  %5132 = vmatprep.subr.bf16.mxu0 %v5040
  %5133 = vmatpush1.bf16.msra.mxu0 %v5039
  %5134 = vmatprep.subr.bf16.mxu0 %v5044
  %5135 = vmatpush1.bf16.msra.mxu0 %v5043
  %5136 = vmatprep.subr.bf16.mxu0 0
  %5137 = vmatpush1.bf16.msra.mxu0 0
  %5138 = vmatprep.subr.bf16.mxu0 0
  %5139 = vmatpush1.bf16.msra.mxu0 0
  %5140 = vmatprep.subr.bf16.mxu0 0
  %5141 = vmatpush1.bf16.msra.mxu0 0
  %5142 = vmatprep.subr.bf16.mxu0 0
  %5143 = vmatpush1.bf16.msra.mxu0 0
  %5144 = vmatprep.subr.bf16.mxu0 0
  %5145 = vmatpush1.bf16.msra.mxu0 0
  %5146 = vmatprep.subr.bf16.mxu0 0
  %5147 = vmatpush1.bf16.msra.mxu0 0
  %5148 = vmatprep.subr.bf16.mxu0 0
  %5149 = vmatpush1.bf16.msra.mxu0 0
  %5150 = vmatprep.subr.bf16.mxu0 0
  %5151 = vmatpush1.bf16.msra.mxu0 0
  %5152 = vmatprep.mubr.bf16.mxu0 0
  %5153 = vmatmul.mubr.bf16.gmra.mrb[0].mxu0 %v4915
  %v5154 = vpop.f32.mrb[0].mxu0
  %v5155 = vadd.f32 %v4903, %v5154
  %v5156 = vpop.f32.mrb[0].mxu0
  %v5157 = vadd.f32 %v4905, %v5156
  %v5158 = vpop.f32.mrb[0].mxu0
  %v5159 = vadd.f32 %v4907, %v5158
  %v5160 = vpop.f32.mrb[0].mxu0
  %v5161 = vadd.f32 %v4909, %v5160
  %5162 = vdwg.mxu0
  %v5163 = vld [vmem:[%s3] sm:$0xf]
  %v5165 = vlaneseq
  %v5166 = vshrl.u32 %v5165, 7
  %v5167 = vsub.s32 0, %v5166
  %v5168 = vrot.slane %v5163, %v5167
  %v5169 = vlaneseq
  %v5170 = vshrl.u32 %v5169, 7
  %v5171 = vsub.s32 1, %v5170
  %v5172 = vrot.slane %v5163, %v5171
  %v5173 = vlaneseq
  %v5174 = vshrl.u32 %v5173, 7
  %v5175 = vsub.s32 2, %v5174
  %v5176 = vrot.slane %v5163, %v5175
  %v5177 = vlaneseq
  %v5178 = vshrl.u32 %v5177, 7
  %v5179 = vsub.s32 3, %v5178
  %v5180 = vrot.slane %v5163, %v5179
  %v5185 = vadd.f32 %v5112, %v5168
  %v5186 = vadd.f32 %v5114, %v5172
  %v5187 = vadd.f32 %v5155, %v5176
  %v5188 = vadd.f32 %v5157, %v5180
  %v5189 = vadd.f32 %v5116, %v5168
  %v5190 = vadd.f32 %v5118, %v5172
  %v5191 = vadd.f32 %v5159, %v5176
  %v5192 = vadd.f32 %v5161, %v5180
  %v5193 = vxor.u32 %v5185, 2147483648
  %v5194 = vxor.u32 %v5186, 2147483648
  %v5195 = vxor.u32 %v5187, 2147483648
  %v5196 = vxor.u32 %v5189, 2147483648
  %v5197 = vxor.u32 %v5190, 2147483648
  %v5198 = vxor.u32 %v5191, 2147483648
  %v5199 = vmul.f32 %v5193, 1.442695
  %v5200 = vpow.pop %v5199
  %v5201 = vmul.f32 %v5194, 1.442695
  %v5202 = vpow.pop %v5201
  %v5203 = vmul.f32 %v5195, 1.442695
  %v5204 = vpow.pop %v5203
  %v5205 = vmul.f32 %v5196, 1.442695
  %v5206 = vpow.pop %v5205
  %v5207 = vmul.f32 %v5197, 1.442695
  %v5208 = vpow.pop %v5207
  %v5209 = vmul.f32 %v5198, 1.442695
  %v5210 = vpow.pop %v5209
  %v5211 = vadd.f32 %v5200, 1.0
  %v5212 = vadd.f32 %v5202, 1.0
  %v5213 = vadd.f32 %v5204, 1.0
  %v5214 = vadd.f32 %v5206, 1.0
  %v5215 = vadd.f32 %v5208, 1.0
  %v5216 = vadd.f32 %v5210, 1.0
  %v5217 = vrcp.pop %v5211
  %v5218 = vmul.f32 1.0, %v5217
  %v5219 = vrcp.pop %v5212
  %v5220 = vmul.f32 1.0, %v5219
  %v5221 = vrcp.pop %v5213
  %v5222 = vmul.f32 1.0, %v5221
  %v5223 = vrcp.pop %v5214
  %v5224 = vmul.f32 1.0, %v5223
  %v5225 = vrcp.pop %v5215
  %v5226 = vmul.f32 1.0, %v5225
  %v5227 = vrcp.pop %v5216
  %v5228 = vmul.f32 1.0, %v5227
  %v5229 = vtanh.pop %v5188
  %v5230 = vtanh.pop %v5192
  %v5231 = vld [vmem:[#allocation3] sm:$0xff]
  %v5232 = vld [vmem:[#allocation3 + $0x8] sm:$0xff]
  %v5233 = vmul.f32 %v5220, %v5231
  %v5234 = vmul.f32 %v5226, %v5232
  %v5235 = vmul.f32 %v5218, %v5229
  %v5236 = vmul.f32 %v5224, %v5230
  %v5237 = vadd.f32 %v5233, %v5235
  %v5238 = vadd.f32 %v5234, %v5236
  %v5239 = vtanh.pop %v5237
  %v5240 = vtanh.pop %v5238
  %v5241 = vmul.f32 %v5222, %v5239
  %v5242 = vmul.f32 %v5228, %v5240
  %5243 = vst [vmem:[#allocation3] sm:$0xff] %v5237
  %5244 = vst [vmem:[#allocation3 + $0x8] sm:$0xff] %v5238
  %5245 = vst [vmem:[#allocation2] sm:$0xff] %v5241
  %5246 = vst [vmem:[#allocation2 + $0x8] sm:$0xff] %v5242
  // Predicated region
  $region30: #{lstm_embeddings_forward.1} parent=0 // pred_check
    %p5247 = pneg %p24
  $region31: #{lstm_embeddings_forward.1} parent=0 // pred_check_branch
    %5249 = sbr.rel (%p5247) target = $region33
  $region32: #{lstm_embeddings_forward.1} parent=0 // pred_region
    %v5250 = vld [vmem:[#allocation2] sm:$0xff]
    %v5251 = vld [vmem:[#allocation2 + $0x8] sm:$0xff]
    %v5252 = vpack.c.bf16 %v5251, %v5250
    %v5253 = vld [vmem:[%s4] sm:$0xf]
    %v5254 = vld [vmem:[%s4 + $0x4] sm:$0xf]
    %v5255 = vld [vmem:[%s4 + $0x8] sm:$0xf]
    %v5256 = vld [vmem:[%s4 + $0xc] sm:$0xf]
    %v5257 = vld [vmem:[%s4 + $0x10] sm:$0xf]
    %v5258 = vld [vmem:[%s4 + $0x14] sm:$0xf]
    %v5259 = vld [vmem:[%s4 + $0x18] sm:$0xf]
    %v5260 = vld [vmem:[%s4 + $0x1c] sm:$0xf]
    %v5261 = vld [vmem:[%s4 + $0x20] sm:$0xf]
    %v5262 = vld [vmem:[%s4 + $0x24] sm:$0xf]
    %v5263 = vld [vmem:[%s4 + $0x28] sm:$0xf]
    %v5264 = vld [vmem:[%s4 + $0x2c] sm:$0xf]
    %v5265 = vld [vmem:[%s4 + $0x30] sm:$0xf]
    %v5266 = vld [vmem:[%s4 + $0x34] sm:$0xf]
    %v5267 = vld [vmem:[%s4 + $0x38] sm:$0xf]
    %v5268 = vld [vmem:[%s4 + $0x3c] sm:$0xf]
    %v5269 = vld [vmem:[%s5] sm:$0x1]
    %v5271 = vlaneseq
    %v5272 = vshrl.u32 %v5271, 7
    %v5273 = vsub.s32 0, %v5272
    %v5274 = vrot.slane %v5269, %v5273
    %v5292 = vunpack.c.l.b16 %v5253
    %v5293 = vunpack.c.l.b16 %v5254
    %v5294 = vunpack.c.l.b16 %v5255
    %v5295 = vunpack.c.l.b16 %v5256
    %v5296 = vunpack.c.l.b16 %v5257
    %v5297 = vunpack.c.l.b16 %v5258
    %v5298 = vunpack.c.l.b16 %v5259
    %v5299 = vunpack.c.l.b16 %v5260
    %v5300 = vunpack.c.l.b16 %v5261
    %v5301 = vunpack.c.l.b16 %v5262
    %v5302 = vunpack.c.l.b16 %v5263
    %v5303 = vunpack.c.l.b16 %v5264
    %v5304 = vunpack.c.l.b16 %v5265
    %v5305 = vunpack.c.l.b16 %v5266
    %v5306 = vunpack.c.l.b16 %v5267
    %v5307 = vunpack.c.l.b16 %v5268
    %v5308 = vpack.c.b16 %v5293, %v5292
    %v5309 = vpack.c.b16 %v5295, %v5294
    %v5310 = vpack.c.b16 %v5297, %v5296
    %v5311 = vpack.c.b16 %v5299, %v5298
    %v5312 = vpack.c.b16 %v5301, %v5300
    %v5313 = vpack.c.b16 %v5303, %v5302
    %v5314 = vpack.c.b16 %v5305, %v5304
    %v5315 = vpack.c.b16 %v5307, %v5306
    %5324 = vmatprep.subr.bf16.mxu0 0
    %5325 = vmatpush1.bf16.msra.mxu0 %v5308
    %5326 = vmatprep.subr.bf16.mxu0 0
    %5327 = vmatpush1.bf16.msra.mxu0 %v5309
    %5328 = vmatprep.subr.bf16.mxu0 0
    %5329 = vmatpush1.bf16.msra.mxu0 %v5310
    %5330 = vmatprep.subr.bf16.mxu0 0
    %5331 = vmatpush1.bf16.msra.mxu0 %v5311
    %5332 = vmatprep.subr.bf16.mxu0 0
    %5333 = vmatpush1.bf16.msra.mxu0 %v5312
    %5334 = vmatprep.subr.bf16.mxu0 0
    %5335 = vmatpush1.bf16.msra.mxu0 %v5313
    %5336 = vmatprep.subr.bf16.mxu0 0
    %5337 = vmatpush1.bf16.msra.mxu0 %v5314
    %5338 = vmatprep.subr.bf16.mxu0 0
    %5339 = vmatpush1.bf16.msra.mxu0 %v5315
    %5340 = vmatprep.subr.bf16.mxu0 0
    %5341 = vmatpush1.bf16.msra.mxu0 0
    %5342 = vmatprep.subr.bf16.mxu0 0
    %5343 = vmatpush1.bf16.msra.mxu0 0
    %5344 = vmatprep.subr.bf16.mxu0 0
    %5345 = vmatpush1.bf16.msra.mxu0 0
    %5346 = vmatprep.subr.bf16.mxu0 0
    %5347 = vmatpush1.bf16.msra.mxu0 0
    %5348 = vmatprep.subr.bf16.mxu0 0
    %5349 = vmatpush1.bf16.msra.mxu0 0
    %5350 = vmatprep.subr.bf16.mxu0 0
    %5351 = vmatpush1.bf16.msra.mxu0 0
    %5352 = vmatprep.subr.bf16.mxu0 0
    %5353 = vmatpush1.bf16.msra.mxu0 0
    %5354 = vmatprep.subr.bf16.mxu0 0
    %5355 = vmatpush1.bf16.msra.mxu0 0
    %5356 = vmatprep.mubr.bf16.mxu0 0
    %5357 = vmatmul.mubr.bf16.gmra.mrb[0].mxu0 %v5252
    %v5358 = vpop.f32.mrb[0].mxu0
    %v5359 = vadd.f32 %v5274, %v5358
    %v5360 = vpop.f32.mrb[0].mxu0
    %v5361 = vpop.f32.mrb[0].mxu0
    %v5362 = vadd.f32 %v5274, %v5361
    %v5363 = vpop.f32.mrb[0].mxu0
    %5364 = vdwg.mxu0
    %5365 = vst [vmem:[%s6] sm:$0xff] %v5359
    %5366 = vst [vmem:[%s6 + $0x8] sm:$0xff] %v5362
  $region33: #{lstm_embeddings_forward.1} parent=0 // pred_fallthru
    _
  // Predicated region
  $region34: #{lstm_embeddings_forward.1} parent=0 // pred_check
    _
  $region35: #{lstm_embeddings_forward.1} parent=0 // pred_check_branch
    %5368 = sbr.rel (0) target = $region37
  $region36: #{lstm_embeddings_forward.1} parent=0 // pred_region
    _
  $region37: #{lstm_embeddings_forward.1} parent=0 // pred_fallthru
    _
  // Predicated region
  $region38: #{lstm_embeddings_forward.1} parent=0 // pred_check
    _
  $region39: #{lstm_embeddings_forward.1} parent=0 // pred_check_branch
    %5370 = sbr.rel (0) target = $region41
  $region40: #{lstm_embeddings_forward.1} parent=0 // pred_region
    _
  $region41: #{lstm_embeddings_forward.1} parent=0 // pred_fallthru
    _

</llo_original>
